<compile_context>
chip_gen: v6e
topology: v6e:2x2x1
jax: 0.10.0
libtpu: 0.0.40
codegen_flags: <defaults>
</compile_context>

<pallas_src>
import functools

import jax
import jax.numpy as jnp
from jax.experimental import pallas as pl
from jax.experimental.pallas import tpu as pltpu

# Model hyper-parameters (shrunk from the PyTorch defaults for a fast test).
BATCH = 2
SAMPLE = 16          # "sample" in the torch module: sequence length S
DIMS = 32            # "dims"
BLOCK_NUM = 2        # number of channel blocks / ConvNeXt stages
INPUT_CH = 21
INPUT_CH_VIEWS = 9
EPS = 1e-6
OUT_W = 8            # packed output lanes: [rgb(3) | alpha(1) | z_val(1) | pad(3)]


# ----------------------------- fused Pallas kernel ---------------------------

def fused_cnn_kernel(*refs, seq):
    """Entire CNN.forward for the whole (flattened) batch, fully fused.

    refs = (pts_ref, views_ref, <38 weight refs in _weight_list order>, out_ref)

    pts_ref/views_ref/out_ref carry all batch elements flattened to rows
    (N*S, C); `seq` = S is only needed to mask the k=3 conv taps so they do
    not leak across batch boundaries.

    Flow (matches the PyTorch forward):
      channel blocks: Conv1d(k=3,p=1) -> LayerNorm(channels_first) -> Linear
                      -> (+residual for i>0) -> ReLU
      z head:         coord_linear -> [concat views] -> z_linear -> ReLU
      stages:         Linear(d,2d) -> ReLU -> Linear(2d,d) -> +res -> ReLU
      heads:          alpha_linear; feature_linear -> [concat views]
                      -> view_linear -> ReLU -> rgb_linear; sigmoid(z_linear1)
    The three scalar heads are emitted as one lane-packed (NS, 8) matmul so the
    kernel has a single dense output store.
    """
    pts_ref, views_ref = refs[0], refs[1]
    out_ref = refs[-1]
    w_it = iter(refs[2:-1])

    def take(k):
        return [next(w_it) for _ in range(k)]

    views = views_ref[...]                       # (NS, 9)
    h = pts_ref[...]                             # (NS, 21)
    ns = h.shape[0]

    # Batch-boundary masks for the k=3 "same" conv over the sample axis:
    # row r of the flat (N*S) layout is sample (r % S) of batch (r // S).
    # Hoisted once; reused by every channel block.
    pos = jax.lax.broadcasted_iota(jnp.int32, (ns, 1), 0) % seq
    not_first = pos != 0                         # x[s-1] tap is valid
    not_last = pos != (seq - 1)                  # x[s+1] tap is valid
    zrow = jnp.zeros((1, DIMS), jnp.float32)

    # ---- channel blocks ------------------------------------------------------
    for i in range(BLOCK_NUM):
        w0, w1, w2, bc, lnw, lnb, wp, bp = take(8)
        # Conv1d(k=3, p=1): y[s] = x[s-1]@w0 + x[s]@w1 + x[s+1]@w2 + b.  Padding
        # is realized by shifting each tap's matmul output one row along the
        # sublane axis and zeroing the per-batch edge rows with the masks above.
        m0 = jnp.dot(h, w0[...], preferred_element_type=jnp.float32)
        m1 = jnp.dot(h, w1[...], preferred_element_type=jnp.float32)
        m2 = jnp.dot(h, w2[...], preferred_element_type=jnp.float32)
        prev_tap = jnp.concatenate([zrow, m0[:ns - 1, :]], axis=0)   # x[s-1]@w0
        next_tap = jnp.concatenate([m2[1:, :], zrow], axis=0)        # x[s+1]@w2
        y = (jnp.where(not_first, prev_tap, 0.0) + m1
             + jnp.where(not_last, next_tap, 0.0) + bc[...])
        # LayerNorm(channels_first): normalize over the channel (lane) axis.
        u = jnp.mean(y, axis=-1, keepdims=True)
        d = y - u
        v = jnp.mean(d * d, axis=-1, keepdims=True)
        y = d * jax.lax.rsqrt(v + EPS) * lnw[...] + lnb[...]
        # proj: nn.Linear(dims, dims)
        y = jnp.dot(y, wp[...], preferred_element_type=jnp.float32) + bp[...]
        if i != 0:
            y = y + h                            # residual (skipped for block 0)
        h = jnp.maximum(y, 0.0)                  # (NS, DIMS)

    # ---- z head (before the stages, as in forward_features) -----------------
    wc, bcz, wz_x, wz_v, bz = take(5)
    coord = jnp.dot(h, wc[...], preferred_element_type=jnp.float32) + bcz[...]
    zh = jnp.maximum(
        jnp.dot(coord, wz_x[...], preferred_element_type=jnp.float32)
        + jnp.dot(views, wz_v[...], preferred_element_type=jnp.float32)
        + bz[...], 0.0)                          # (NS, DIMS//2)

    # ---- ConvNeXt-style MLP stages -------------------------------------------
    for i in range(BLOCK_NUM):
        w1s, b1s, w2s, b2s = take(4)
        t = jnp.maximum(
            jnp.dot(h, w1s[...], preferred_element_type=jnp.float32) + b1s[...], 0.0)
        t = jnp.dot(t, w2s[...], preferred_element_type=jnp.float32) + b2s[...]
        h = jnp.maximum(h + t, 0.0)

    # ---- rgb head intermediate -----------------------------------------------
    wf, bf, wv_f, wv_v, bv = take(5)
    feature = jnp.dot(h, wf[...], preferred_element_type=jnp.float32) + bf[...]
    rgbh = jnp.maximum(
        jnp.dot(feature, wv_f[...], preferred_element_type=jnp.float32)
        + jnp.dot(views, wv_v[...], preferred_element_type=jnp.float32)
        + bv[...], 0.0)                          # (NS, DIMS//2)

    # ---- lane-packed final heads: cols [0:3]=rgb, [3]=alpha, [4]=z_val -------
    wpk_rgb, wpk_a, wpk_z, bpk = take(4)
    lin = (jnp.dot(rgbh, wpk_rgb[...], preferred_element_type=jnp.float32)
           + jnp.dot(h, wpk_a[...], preferred_element_type=jnp.float32)
           + jnp.dot(zh, wpk_z[...], preferred_element_type=jnp.float32)
           + bpk[...])                           # (NS, OUT_W)
    col = jax.lax.broadcasted_iota(jnp.int32, lin.shape, 1)
    out_ref[...] = jnp.where(col == 4, jax.nn.sigmoid(lin), lin)


# ---------------------------- pallas_call wrapper ----------------------------

def _weight_list(params):
    """Flat weight list in exactly the order the kernel consumes them."""
    ws = []
    for p in params["channel"]:
        ws += [p["w0"], p["w1"], p["w2"], p["bc"], p["lnw"], p["lnb"],
               p["wp"], p["bp"]]
    zp = params["z"]
    ws += [zp["wc"], zp["bc"], zp["wz_x"], zp["wz_v"], zp["bz"]]
    for sp in params["stage"]:
        ws += [sp["w1"], sp["b1"], sp["w2"], sp["b2"]]
    hd = params["head"]
    ws += [hd["wf"], hd["bf"], hd["wv_f"], hd["wv_v"], hd["bv"]]
    pk = params["packed"]
    ws += [pk["w_rgb"], pk["w_alpha"], pk["w_z"], pk["b"]]
    return ws


@jax.jit
def cnn_forward(params, x):
    """x: (N, S, INPUT_CH + INPUT_CH_VIEWS), float32.  Returns (outputs, z_val)."""
    N, S, _ = x.shape
    # Flatten batch into rows: free (contiguous) reshape in the wrapper; the
    # kernel then runs once over all N*S rows with every weight DMA'd once.
    input_pts = x[..., :INPUT_CH].reshape(N * S, INPUT_CH)
    input_views = x[..., INPUT_CH:].reshape(N * S, INPUT_CH_VIEWS)
    weights = _weight_list(params)
    n_in = 2 + len(weights)

    out = pl.pallas_call(
        functools.partial(fused_cnn_kernel, seq=S),
        in_specs=[pl.BlockSpec(memory_space=pltpu.MemorySpace.VMEM)
                  for _ in range(n_in)],
        out_specs=pl.BlockSpec(memory_space=pltpu.MemorySpace.VMEM),
        out_shape=jax.ShapeDtypeStruct((N * S, OUT_W), jnp.float32),
    )(input_pts, input_views, *weights)

    out = out.reshape(N, S, OUT_W)
    outputs = out[..., 0:4]      # [rgb(3) | alpha(1)]
    z_val = out[..., 4:5]        # sigmoid(z_linear1(...))
    return outputs, z_val


# --------------------------- params & reference ------------------------------

def init_params(key):
    def dense(k, shape, scale=0.05):
        return scale * jax.random.normal(k, shape, dtype=jnp.float32)

    keys = iter(jax.random.split(key, 64))
    params = {"channel": [], "stage": []}
    for i in range(BLOCK_NUM):
        cin = INPUT_CH if i == 0 else DIMS
        params["channel"].append(dict(
            w0=dense(next(keys), (cin, DIMS)),      # conv tap k=0, stored (Cin, Cout)
            w1=dense(next(keys), (cin, DIMS)),      # conv tap k=1
            w2=dense(next(keys), (cin, DIMS)),      # conv tap k=2
            bc=dense(next(keys), (1, DIMS), 0.01),
            lnw=jnp.ones((1, DIMS), jnp.float32),
            lnb=jnp.zeros((1, DIMS), jnp.float32),
            wp=dense(next(keys), (DIMS, DIMS)),
            bp=dense(next(keys), (1, DIMS), 0.01),
        ))
        params["stage"].append(dict(
            w1=dense(next(keys), (DIMS, 2 * DIMS)),
            b1=dense(next(keys), (1, 2 * DIMS), 0.01),
            w2=dense(next(keys), (2 * DIMS, DIMS)),
            b2=dense(next(keys), (1, DIMS), 0.01),
        ))
    params["z"] = dict(
        wc=dense(next(keys), (DIMS, DIMS)),
        bc=dense(next(keys), (1, DIMS), 0.01),
        wz_x=dense(next(keys), (DIMS, DIMS // 2)),
        wz_v=dense(next(keys), (INPUT_CH_VIEWS, DIMS // 2)),
        bz=dense(next(keys), (1, DIMS // 2), 0.01),
        wz1=dense(next(keys), (DIMS // 2, 1)),
        bz1=dense(next(keys), (1, 1), 0.01),
    )
    params["head"] = dict(
        wa=dense(next(keys), (DIMS, 1)),
        ba=dense(next(keys), (1, 1), 0.01),
        wf=dense(next(keys), (DIMS, DIMS)),
        bf=dense(next(keys), (1, DIMS), 0.01),
        wv_f=dense(next(keys), (DIMS, DIMS // 2)),
        wv_v=dense(next(keys), (INPUT_CH_VIEWS, DIMS // 2)),
        bv=dense(next(keys), (1, DIMS // 2), 0.01),
        wr=dense(next(keys), (DIMS // 2, 3)),
        br=dense(next(keys), (1, 3), 0.01),
    )
    # Lane-packed final-head weights (built once at init, no per-call prep):
    # output columns 0-2 = rgb_linear, 3 = alpha_linear, 4 = z_linear1.
    hd, zp = params["head"], params["z"]
    params["packed"] = dict(
        w_rgb=jnp.zeros((DIMS // 2, OUT_W), jnp.float32).at[:, 0:3].set(hd["wr"]),
        w_alpha=jnp.zeros((DIMS, OUT_W), jnp.float32).at[:, 3:4].set(hd["wa"]),
        w_z=jnp.zeros((DIMS // 2, OUT_W), jnp.float32).at[:, 4:5].set(zp["wz1"]),
        b=jnp.zeros((1, OUT_W), jnp.float32)
            .at[:, 0:3].set(hd["br"])
            .at[:, 3:4].set(hd["ba"])
            .at[:, 4:5].set(zp["bz1"]),
    )
    return params


def ref_forward(params, x):
    """Pure-JAX reference mirroring the PyTorch forward semantics."""
    relu = jax.nn.relu
    input_pts, input_views = x[..., :INPUT_CH], x[..., INPUT_CH:]
    N, S, _ = x.shape
    h = input_pts
    for i in range(BLOCK_NUM):
        p = params["channel"][i]
        hp = jnp.pad(h, ((0, 0), (1, 1), (0, 0)))
        y = (hp[:, 0:S] @ p["w0"] + hp[:, 1:S + 1] @ p["w1"]
             + hp[:, 2:S + 2] @ p["w2"] + p["bc"])
        u = y.mean(-1, keepdims=True)
        v = ((y - u) ** 2).mean(-1, keepdims=True)
        y = (y - u) / jnp.sqrt(v + EPS) * p["lnw"] + p["lnb"]
        y = y @ p["wp"] + p["bp"]
        if i != 0:
            y = y + h
        h = relu(y)
    zp = params["z"]
    coord = h @ zp["wc"] + zp["bc"]
    z = relu(coord @ zp["wz_x"] + input_views @ zp["wz_v"] + zp["bz"])
    z_val = jax.nn.sigmoid(z @ zp["wz1"] + zp["bz1"])
    for i in range(BLOCK_NUM):
        sp = params["stage"][i]
        t = relu(h @ sp["w1"] + sp["b1"]) @ sp["w2"] + sp["b2"]
        h = relu(h + t)
    hd = params["head"]
    alpha = h @ hd["wa"] + hd["ba"]
    feature = h @ hd["wf"] + hd["bf"]
    rgb = relu(feature @ hd["wv_f"] + input_views @ hd["wv_v"] + hd["bv"])
    rgb = rgb @ hd["wr"] + hd["br"]
    return jnp.concatenate([rgb, alpha], -1), z_val


if __name__ == "__main__":
    key = jax.random.PRNGKey(0)
    pk, xk = jax.random.split(key)
    params = init_params(pk)
    x = jax.random.normal(
        xk, (BATCH, SAMPLE, INPUT_CH + INPUT_CH_VIEWS), dtype=jnp.float32)

    outputs, z_val = cnn_forward(params, x)
    outputs, z_val = jax.block_until_ready((outputs, z_val))

    ref_out, ref_z = ref_forward(params, x)
    assert outputs.shape == (BATCH, SAMPLE, 4)
    assert z_val.shape == (BATCH, SAMPLE, 1)
    assert jnp.allclose(outputs, ref_out, atol=1e-4, rtol=1e-4)
    assert jnp.allclose(z_val, ref_z, atol=1e-4, rtol=1e-4)
    print("KERNEL_OK")
</pallas_src>

<mosaic_0001>
module attributes {stable_mosaic.version = 11 : i64} {
  func.func @fused_cnn_kernel(%arg0: memref<32x21xf32, #tpu.memory_space<vmem>>, %arg1: memref<32x9xf32, #tpu.memory_space<vmem>>, %arg2: memref<21x32xf32, #tpu.memory_space<vmem>>, %arg3: memref<21x32xf32, #tpu.memory_space<vmem>>, %arg4: memref<21x32xf32, #tpu.memory_space<vmem>>, %arg5: memref<1x32xf32, #tpu.memory_space<vmem>>, %arg6: memref<1x32xf32, #tpu.memory_space<vmem>>, %arg7: memref<1x32xf32, #tpu.memory_space<vmem>>, %arg8: memref<32x32xf32, #tpu.memory_space<vmem>>, %arg9: memref<1x32xf32, #tpu.memory_space<vmem>>, %arg10: memref<32x32xf32, #tpu.memory_space<vmem>>, %arg11: memref<32x32xf32, #tpu.memory_space<vmem>>, %arg12: memref<32x32xf32, #tpu.memory_space<vmem>>, %arg13: memref<1x32xf32, #tpu.memory_space<vmem>>, %arg14: memref<1x32xf32, #tpu.memory_space<vmem>>, %arg15: memref<1x32xf32, #tpu.memory_space<vmem>>, %arg16: memref<32x32xf32, #tpu.memory_space<vmem>>, %arg17: memref<1x32xf32, #tpu.memory_space<vmem>>, %arg18: memref<32x32xf32, #tpu.memory_space<vmem>>, %arg19: memref<1x32xf32, #tpu.memory_space<vmem>>, %arg20: memref<32x16xf32, #tpu.memory_space<vmem>>, %arg21: memref<9x16xf32, #tpu.memory_space<vmem>>, %arg22: memref<1x16xf32, #tpu.memory_space<vmem>>, %arg23: memref<32x64xf32, #tpu.memory_space<vmem>>, %arg24: memref<1x64xf32, #tpu.memory_space<vmem>>, %arg25: memref<64x32xf32, #tpu.memory_space<vmem>>, %arg26: memref<1x32xf32, #tpu.memory_space<vmem>>, %arg27: memref<32x64xf32, #tpu.memory_space<vmem>>, %arg28: memref<1x64xf32, #tpu.memory_space<vmem>>, %arg29: memref<64x32xf32, #tpu.memory_space<vmem>>, %arg30: memref<1x32xf32, #tpu.memory_space<vmem>>, %arg31: memref<32x32xf32, #tpu.memory_space<vmem>>, %arg32: memref<1x32xf32, #tpu.memory_space<vmem>>, %arg33: memref<32x16xf32, #tpu.memory_space<vmem>>, %arg34: memref<9x16xf32, #tpu.memory_space<vmem>>, %arg35: memref<1x16xf32, #tpu.memory_space<vmem>>, %arg36: memref<16x8xf32, #tpu.memory_space<vmem>>, %arg37: memref<32x8xf32, #tpu.memory_space<vmem>>, %arg38: memref<16x8xf32, #tpu.memory_space<vmem>>, %arg39: memref<1x8xf32, #tpu.memory_space<vmem>>, %arg40: memref<32x8xf32, #tpu.memory_space<vmem>>) attributes {dimension_semantics = [], scalar_prefetch = 0 : i64, scratch_operands = 0 : i64, tpu.core_type = #tpu.core_type<tc>} {
    %c0 = arith.constant 0 : index
    %c0_0 = arith.constant 0 : index
    %0 = vector.load %arg1[%c0, %c0_0] : memref<32x9xf32, #tpu.memory_space<vmem>>, vector<32x9xf32>
    %c0_1 = arith.constant 0 : index
    %c0_2 = arith.constant 0 : index
    %1 = vector.load %arg0[%c0_1, %c0_2] : memref<32x21xf32, #tpu.memory_space<vmem>>, vector<32x21xf32>
    %2 = tpu.iota {dimensions = array<i32: 0>} : vector<32x1xi32>
    %c16_i32 = arith.constant 16 : i32
    %c0_i32 = arith.constant 0 : i32
    %3 = arith.cmpi eq, %c16_i32, %c0_i32 : i32
    %c1_i32 = arith.constant 1 : i32
    %4 = arith.select %3, %c1_i32, %c16_i32 : i32
    %5 = vector.broadcast %4 : i32 to vector<32x1xi32>
    %6 = arith.remsi %2, %5 : vector<32x1xi32>
    %c0_i32_3 = arith.constant 0 : i32
    %7 = vector.broadcast %c0_i32_3 : i32 to vector<32x1xi32>
    %8 = arith.cmpi ne, %6, %7 : vector<32x1xi32>
    %c0_i32_4 = arith.constant 0 : i32
    %9 = vector.broadcast %c0_i32_4 : i32 to vector<32x1xi32>
    %10 = arith.cmpi slt, %6, %9 : vector<32x1xi32>
    %c0_i32_5 = arith.constant 0 : i32
    %11 = arith.cmpi slt, %4, %c0_i32_5 : i32
    %12 = vector.broadcast %11 : i1 to vector<32x1xi1>
    %13 = vector.broadcast %12 : vector<32x1xi1> to vector<32x1xi1>
    %14 = arith.xori %10, %13 : vector<32x1xi1>
    %15 = arith.andi %14, %8 : vector<32x1xi1>
    %16 = vector.broadcast %4 : i32 to vector<32x1xi32>
    %17 = arith.addi %6, %16 : vector<32x1xi32>
    %18 = arith.select %15, %17, %6 : vector<32x1xi1>, vector<32x1xi32>
    %c0_i32_6 = arith.constant 0 : i32
    %19 = vector.broadcast %c0_i32_6 : i32 to vector<32x1xi32>
    %20 = arith.cmpi ne, %18, %19 : vector<32x1xi32>
    %c15_i32 = arith.constant 15 : i32
    %21 = vector.broadcast %c15_i32 : i32 to vector<32x1xi32>
    %22 = arith.cmpi ne, %18, %21 : vector<32x1xi32>
    %cst = arith.constant 0.000000e+00 : f32
    %23 = vector.broadcast %cst : f32 to vector<1x32xf32>
    %c0_7 = arith.constant 0 : index
    %c0_8 = arith.constant 0 : index
    %24 = vector.load %arg2[%c0_7, %c0_8] : memref<21x32xf32, #tpu.memory_space<vmem>>, vector<21x32xf32>
    %cst_9 = arith.constant dense<0.000000e+00> : vector<32x32xf32>
    %25 = tpu.matmul %1, %24, %cst_9 {dimension_numbers = #tpu.dot_dimension_numbers<[1], [0], [0], [1], [0, 0, 1, 1], [], []>} : vector<32x21xf32>, vector<21x32xf32>, vector<32x32xf32> -> vector<32x32xf32>
    %c0_10 = arith.constant 0 : index
    %c0_11 = arith.constant 0 : index
    %26 = vector.load %arg3[%c0_10, %c0_11] : memref<21x32xf32, #tpu.memory_space<vmem>>, vector<21x32xf32>
    %cst_12 = arith.constant dense<0.000000e+00> : vector<32x32xf32>
    %27 = tpu.matmul %1, %26, %cst_12 {dimension_numbers = #tpu.dot_dimension_numbers<[1], [0], [0], [1], [0, 0, 1, 1], [], []>} : vector<32x21xf32>, vector<21x32xf32>, vector<32x32xf32> -> vector<32x32xf32>
    %c0_13 = arith.constant 0 : index
    %c0_14 = arith.constant 0 : index
    %28 = vector.load %arg4[%c0_13, %c0_14] : memref<21x32xf32, #tpu.memory_space<vmem>>, vector<21x32xf32>
    %cst_15 = arith.constant dense<0.000000e+00> : vector<32x32xf32>
    %29 = tpu.matmul %1, %28, %cst_15 {dimension_numbers = #tpu.dot_dimension_numbers<[1], [0], [0], [1], [0, 0, 1, 1], [], []>} : vector<32x21xf32>, vector<21x32xf32>, vector<32x32xf32> -> vector<32x32xf32>
    %30 = vector.extract_strided_slice %25 {offsets = [0, 0], sizes = [31, 32], strides = [1, 1]} : vector<32x32xf32> to vector<31x32xf32>
    %31 = tpu.concatenate %23, %30 in 0 : vector<1x32xf32>, vector<31x32xf32> -> vector<32x32xf32>
    %32 = vector.extract_strided_slice %29 {offsets = [1, 0], sizes = [31, 32], strides = [1, 1]} : vector<32x32xf32> to vector<31x32xf32>
    %33 = tpu.concatenate %32, %23 in 0 : vector<31x32xf32>, vector<1x32xf32> -> vector<32x32xf32>
    %cst_16 = arith.constant 0.000000e+00 : f32
    %34 = vector.shape_cast %20 : vector<32x1xi1> to vector<32x1xi1>
    %35 = vector.broadcast %34 : vector<32x1xi1> to vector<32x32xi1>
    %36 = vector.broadcast %cst_16 : f32 to vector<32x32xf32>
    %37 = arith.select %35, %31, %36 : vector<32x32xi1>, vector<32x32xf32>
    %38 = arith.addf %37, %27 : vector<32x32xf32>
    %cst_17 = arith.constant 0.000000e+00 : f32
    %39 = vector.shape_cast %22 : vector<32x1xi1> to vector<32x1xi1>
    %40 = vector.broadcast %39 : vector<32x1xi1> to vector<32x32xi1>
    %41 = vector.broadcast %cst_17 : f32 to vector<32x32xf32>
    %42 = arith.select %40, %33, %41 : vector<32x32xi1>, vector<32x32xf32>
    %43 = arith.addf %38, %42 : vector<32x32xf32>
    %c0_18 = arith.constant 0 : index
    %c0_19 = arith.constant 0 : index
    %44 = vector.load %arg5[%c0_18, %c0_19] : memref<1x32xf32, #tpu.memory_space<vmem>>, vector<1x32xf32>
    %45 = vector.broadcast %44 : vector<1x32xf32> to vector<32x32xf32>
    %46 = arith.addf %43, %45 : vector<32x32xf32>
    %cst_20 = arith.constant dense<0.000000e+00> : vector<32xf32>
    %47 = vector.multi_reduction <add>, %46, %cst_20 [1] : vector<32x32xf32> to vector<32xf32>
    %48 = vector.shape_cast %47 : vector<32xf32> to vector<32x1xf32>
    %cst_21 = arith.constant 3.200000e+01 : f32
    %49 = vector.broadcast %cst_21 : f32 to vector<32x1xf32>
    %50 = arith.divf %48, %49 : vector<32x1xf32>
    %51 = vector.broadcast %50 : vector<32x1xf32> to vector<32x32xf32>
    %52 = arith.subf %46, %51 : vector<32x32xf32>
    %53 = arith.mulf %52, %52 : vector<32x32xf32>
    %cst_22 = arith.constant dense<0.000000e+00> : vector<32xf32>
    %54 = vector.multi_reduction <add>, %53, %cst_22 [1] : vector<32x32xf32> to vector<32xf32>
    %55 = vector.shape_cast %54 : vector<32xf32> to vector<32x1xf32>
    %cst_23 = arith.constant 3.200000e+01 : f32
    %56 = vector.broadcast %cst_23 : f32 to vector<32x1xf32>
    %57 = arith.divf %55, %56 : vector<32x1xf32>
    %cst_24 = arith.constant 9.99999997E-7 : f32
    %58 = vector.broadcast %cst_24 : f32 to vector<32x1xf32>
    %59 = arith.addf %57, %58 : vector<32x1xf32>
    %60 = math.rsqrt %59 : vector<32x1xf32>
    %61 = vector.broadcast %60 : vector<32x1xf32> to vector<32x32xf32>
    %62 = arith.mulf %52, %61 : vector<32x32xf32>
    %c0_25 = arith.constant 0 : index
    %c0_26 = arith.constant 0 : index
    %63 = vector.load %arg6[%c0_25, %c0_26] : memref<1x32xf32, #tpu.memory_space<vmem>>, vector<1x32xf32>
    %64 = vector.broadcast %63 : vector<1x32xf32> to vector<32x32xf32>
    %65 = arith.mulf %62, %64 : vector<32x32xf32>
    %c0_27 = arith.constant 0 : index
    %c0_28 = arith.constant 0 : index
    %66 = vector.load %arg7[%c0_27, %c0_28] : memref<1x32xf32, #tpu.memory_space<vmem>>, vector<1x32xf32>
    %67 = vector.broadcast %66 : vector<1x32xf32> to vector<32x32xf32>
    %68 = arith.addf %65, %67 : vector<32x32xf32>
    %c0_29 = arith.constant 0 : index
    %c0_30 = arith.constant 0 : index
    %69 = vector.load %arg8[%c0_29, %c0_30] : memref<32x32xf32, #tpu.memory_space<vmem>>, vector<32x32xf32>
    %cst_31 = arith.constant dense<0.000000e+00> : vector<32x32xf32>
    %70 = tpu.matmul %68, %69, %cst_31 {dimension_numbers = #tpu.dot_dimension_numbers<[1], [0], [0], [1], [0, 0, 1, 1], [], []>} : vector<32x32xf32>, vector<32x32xf32>, vector<32x32xf32> -> vector<32x32xf32>
    %c0_32 = arith.constant 0 : index
    %c0_33 = arith.constant 0 : index
    %71 = vector.load %arg9[%c0_32, %c0_33] : memref<1x32xf32, #tpu.memory_space<vmem>>, vector<1x32xf32>
    %72 = vector.broadcast %71 : vector<1x32xf32> to vector<32x32xf32>
    %73 = arith.addf %70, %72 : vector<32x32xf32>
    %cst_34 = arith.constant 0.000000e+00 : f32
    %74 = vector.broadcast %cst_34 : f32 to vector<32x32xf32>
    %75 = arith.maximumf %73, %74 : vector<32x32xf32>
    %c0_35 = arith.constant 0 : index
    %c0_36 = arith.constant 0 : index
    %76 = vector.load %arg10[%c0_35, %c0_36] : memref<32x32xf32, #tpu.memory_space<vmem>>, vector<32x32xf32>
    %cst_37 = arith.constant dense<0.000000e+00> : vector<32x32xf32>
    %77 = tpu.matmul %75, %76, %cst_37 {dimension_numbers = #tpu.dot_dimension_numbers<[1], [0], [0], [1], [0, 0, 1, 1], [], []>} : vector<32x32xf32>, vector<32x32xf32>, vector<32x32xf32> -> vector<32x32xf32>
    %c0_38 = arith.constant 0 : index
    %c0_39 = arith.constant 0 : index
    %78 = vector.load %arg11[%c0_38, %c0_39] : memref<32x32xf32, #tpu.memory_space<vmem>>, vector<32x32xf32>
    %cst_40 = arith.constant dense<0.000000e+00> : vector<32x32xf32>
    %79 = tpu.matmul %75, %78, %cst_40 {dimension_numbers = #tpu.dot_dimension_numbers<[1], [0], [0], [1], [0, 0, 1, 1], [], []>} : vector<32x32xf32>, vector<32x32xf32>, vector<32x32xf32> -> vector<32x32xf32>
    %c0_41 = arith.constant 0 : index
    %c0_42 = arith.constant 0 : index
    %80 = vector.load %arg12[%c0_41, %c0_42] : memref<32x32xf32, #tpu.memory_space<vmem>>, vector<32x32xf32>
    %cst_43 = arith.constant dense<0.000000e+00> : vector<32x32xf32>
    %81 = tpu.matmul %75, %80, %cst_43 {dimension_numbers = #tpu.dot_dimension_numbers<[1], [0], [0], [1], [0, 0, 1, 1], [], []>} : vector<32x32xf32>, vector<32x32xf32>, vector<32x32xf32> -> vector<32x32xf32>
    %82 = vector.extract_strided_slice %77 {offsets = [0, 0], sizes = [31, 32], strides = [1, 1]} : vector<32x32xf32> to vector<31x32xf32>
    %83 = tpu.concatenate %23, %82 in 0 : vector<1x32xf32>, vector<31x32xf32> -> vector<32x32xf32>
    %84 = vector.extract_strided_slice %81 {offsets = [1, 0], sizes = [31, 32], strides = [1, 1]} : vector<32x32xf32> to vector<31x32xf32>
    %85 = tpu.concatenate %84, %23 in 0 : vector<31x32xf32>, vector<1x32xf32> -> vector<32x32xf32>
    %cst_44 = arith.constant 0.000000e+00 : f32
    %86 = vector.shape_cast %20 : vector<32x1xi1> to vector<32x1xi1>
    %87 = vector.broadcast %86 : vector<32x1xi1> to vector<32x32xi1>
    %88 = vector.broadcast %cst_44 : f32 to vector<32x32xf32>
    %89 = arith.select %87, %83, %88 : vector<32x32xi1>, vector<32x32xf32>
    %90 = arith.addf %89, %79 : vector<32x32xf32>
    %cst_45 = arith.constant 0.000000e+00 : f32
    %91 = vector.shape_cast %22 : vector<32x1xi1> to vector<32x1xi1>
    %92 = vector.broadcast %91 : vector<32x1xi1> to vector<32x32xi1>
    %93 = vector.broadcast %cst_45 : f32 to vector<32x32xf32>
    %94 = arith.select %92, %85, %93 : vector<32x32xi1>, vector<32x32xf32>
    %95 = arith.addf %90, %94 : vector<32x32xf32>
    %c0_46 = arith.constant 0 : index
    %c0_47 = arith.constant 0 : index
    %96 = vector.load %arg13[%c0_46, %c0_47] : memref<1x32xf32, #tpu.memory_space<vmem>>, vector<1x32xf32>
    %97 = vector.broadcast %96 : vector<1x32xf32> to vector<32x32xf32>
    %98 = arith.addf %95, %97 : vector<32x32xf32>
    %cst_48 = arith.constant dense<0.000000e+00> : vector<32xf32>
    %99 = vector.multi_reduction <add>, %98, %cst_48 [1] : vector<32x32xf32> to vector<32xf32>
    %100 = vector.shape_cast %99 : vector<32xf32> to vector<32x1xf32>
    %cst_49 = arith.constant 3.200000e+01 : f32
    %101 = vector.broadcast %cst_49 : f32 to vector<32x1xf32>
    %102 = arith.divf %100, %101 : vector<32x1xf32>
    %103 = vector.broadcast %102 : vector<32x1xf32> to vector<32x32xf32>
    %104 = arith.subf %98, %103 : vector<32x32xf32>
    %105 = arith.mulf %104, %104 : vector<32x32xf32>
    %cst_50 = arith.constant dense<0.000000e+00> : vector<32xf32>
    %106 = vector.multi_reduction <add>, %105, %cst_50 [1] : vector<32x32xf32> to vector<32xf32>
    %107 = vector.shape_cast %106 : vector<32xf32> to vector<32x1xf32>
    %cst_51 = arith.constant 3.200000e+01 : f32
    %108 = vector.broadcast %cst_51 : f32 to vector<32x1xf32>
    %109 = arith.divf %107, %108 : vector<32x1xf32>
    %cst_52 = arith.constant 9.99999997E-7 : f32
    %110 = vector.broadcast %cst_52 : f32 to vector<32x1xf32>
    %111 = arith.addf %109, %110 : vector<32x1xf32>
    %112 = math.rsqrt %111 : vector<32x1xf32>
    %113 = vector.broadcast %112 : vector<32x1xf32> to vector<32x32xf32>
    %114 = arith.mulf %104, %113 : vector<32x32xf32>
    %c0_53 = arith.constant 0 : index
    %c0_54 = arith.constant 0 : index
    %115 = vector.load %arg14[%c0_53, %c0_54] : memref<1x32xf32, #tpu.memory_space<vmem>>, vector<1x32xf32>
    %116 = vector.broadcast %115 : vector<1x32xf32> to vector<32x32xf32>
    %117 = arith.mulf %114, %116 : vector<32x32xf32>
    %c0_55 = arith.constant 0 : index
    %c0_56 = arith.constant 0 : index
    %118 = vector.load %arg15[%c0_55, %c0_56] : memref<1x32xf32, #tpu.memory_space<vmem>>, vector<1x32xf32>
    %119 = vector.broadcast %118 : vector<1x32xf32> to vector<32x32xf32>
    %120 = arith.addf %117, %119 : vector<32x32xf32>
    %c0_57 = arith.constant 0 : index
    %c0_58 = arith.constant 0 : index
    %121 = vector.load %arg16[%c0_57, %c0_58] : memref<32x32xf32, #tpu.memory_space<vmem>>, vector<32x32xf32>
    %cst_59 = arith.constant dense<0.000000e+00> : vector<32x32xf32>
    %122 = tpu.matmul %120, %121, %cst_59 {dimension_numbers = #tpu.dot_dimension_numbers<[1], [0], [0], [1], [0, 0, 1, 1], [], []>} : vector<32x32xf32>, vector<32x32xf32>, vector<32x32xf32> -> vector<32x32xf32>
    %c0_60 = arith.constant 0 : index
    %c0_61 = arith.constant 0 : index
    %123 = vector.load %arg17[%c0_60, %c0_61] : memref<1x32xf32, #tpu.memory_space<vmem>>, vector<1x32xf32>
    %124 = vector.broadcast %123 : vector<1x32xf32> to vector<32x32xf32>
    %125 = arith.addf %122, %124 : vector<32x32xf32>
    %126 = arith.addf %125, %75 : vector<32x32xf32>
    %cst_62 = arith.constant 0.000000e+00 : f32
    %127 = vector.broadcast %cst_62 : f32 to vector<32x32xf32>
    %128 = arith.maximumf %126, %127 : vector<32x32xf32>
    %c0_63 = arith.constant 0 : index
    %c0_64 = arith.constant 0 : index
    %129 = vector.load %arg18[%c0_63, %c0_64] : memref<32x32xf32, #tpu.memory_space<vmem>>, vector<32x32xf32>
    %cst_65 = arith.constant dense<0.000000e+00> : vector<32x32xf32>
    %130 = tpu.matmul %128, %129, %cst_65 {dimension_numbers = #tpu.dot_dimension_numbers<[1], [0], [0], [1], [0, 0, 1, 1], [], []>} : vector<32x32xf32>, vector<32x32xf32>, vector<32x32xf32> -> vector<32x32xf32>
    %c0_66 = arith.constant 0 : index
    %c0_67 = arith.constant 0 : index
    %131 = vector.load %arg19[%c0_66, %c0_67] : memref<1x32xf32, #tpu.memory_space<vmem>>, vector<1x32xf32>
    %132 = vector.broadcast %131 : vector<1x32xf32> to vector<32x32xf32>
    %133 = arith.addf %130, %132 : vector<32x32xf32>
    %c0_68 = arith.constant 0 : index
    %c0_69 = arith.constant 0 : index
    %134 = vector.load %arg20[%c0_68, %c0_69] : memref<32x16xf32, #tpu.memory_space<vmem>>, vector<32x16xf32>
    %cst_70 = arith.constant dense<0.000000e+00> : vector<32x16xf32>
    %135 = tpu.matmul %133, %134, %cst_70 {dimension_numbers = #tpu.dot_dimension_numbers<[1], [0], [0], [1], [0, 0, 1, 1], [], []>} : vector<32x32xf32>, vector<32x16xf32>, vector<32x16xf32> -> vector<32x16xf32>
    %c0_71 = arith.constant 0 : index
    %c0_72 = arith.constant 0 : index
    %136 = vector.load %arg21[%c0_71, %c0_72] : memref<9x16xf32, #tpu.memory_space<vmem>>, vector<9x16xf32>
    %cst_73 = arith.constant dense<0.000000e+00> : vector<32x16xf32>
    %137 = tpu.matmul %0, %136, %cst_73 {dimension_numbers = #tpu.dot_dimension_numbers<[1], [0], [0], [1], [0, 0, 1, 1], [], []>} : vector<32x9xf32>, vector<9x16xf32>, vector<32x16xf32> -> vector<32x16xf32>
    %138 = arith.addf %135, %137 : vector<32x16xf32>
    %c0_74 = arith.constant 0 : index
    %c0_75 = arith.constant 0 : index
    %139 = vector.load %arg22[%c0_74, %c0_75] : memref<1x16xf32, #tpu.memory_space<vmem>>, vector<1x16xf32>
    %140 = vector.broadcast %139 : vector<1x16xf32> to vector<32x16xf32>
    %141 = arith.addf %138, %140 : vector<32x16xf32>
    %cst_76 = arith.constant 0.000000e+00 : f32
    %142 = vector.broadcast %cst_76 : f32 to vector<32x16xf32>
    %143 = arith.maximumf %141, %142 : vector<32x16xf32>
    %c0_77 = arith.constant 0 : index
    %c0_78 = arith.constant 0 : index
    %144 = vector.load %arg23[%c0_77, %c0_78] : memref<32x64xf32, #tpu.memory_space<vmem>>, vector<32x64xf32>
    %cst_79 = arith.constant dense<0.000000e+00> : vector<32x64xf32>
    %145 = tpu.matmul %128, %144, %cst_79 {dimension_numbers = #tpu.dot_dimension_numbers<[1], [0], [0], [1], [0, 0, 1, 1], [], []>} : vector<32x32xf32>, vector<32x64xf32>, vector<32x64xf32> -> vector<32x64xf32>
    %c0_80 = arith.constant 0 : index
    %c0_81 = arith.constant 0 : index
    %146 = vector.load %arg24[%c0_80, %c0_81] : memref<1x64xf32, #tpu.memory_space<vmem>>, vector<1x64xf32>
    %147 = vector.broadcast %146 : vector<1x64xf32> to vector<32x64xf32>
    %148 = arith.addf %145, %147 : vector<32x64xf32>
    %cst_82 = arith.constant 0.000000e+00 : f32
    %149 = vector.broadcast %cst_82 : f32 to vector<32x64xf32>
    %150 = arith.maximumf %148, %149 : vector<32x64xf32>
    %c0_83 = arith.constant 0 : index
    %c0_84 = arith.constant 0 : index
    %151 = vector.load %arg25[%c0_83, %c0_84] : memref<64x32xf32, #tpu.memory_space<vmem>>, vector<64x32xf32>
    %cst_85 = arith.constant dense<0.000000e+00> : vector<32x32xf32>
    %152 = tpu.matmul %150, %151, %cst_85 {dimension_numbers = #tpu.dot_dimension_numbers<[1], [0], [0], [1], [0, 0, 1, 1], [], []>} : vector<32x64xf32>, vector<64x32xf32>, vector<32x32xf32> -> vector<32x32xf32>
    %c0_86 = arith.constant 0 : index
    %c0_87 = arith.constant 0 : index
    %153 = vector.load %arg26[%c0_86, %c0_87] : memref<1x32xf32, #tpu.memory_space<vmem>>, vector<1x32xf32>
    %154 = vector.broadcast %153 : vector<1x32xf32> to vector<32x32xf32>
    %155 = arith.addf %152, %154 : vector<32x32xf32>
    %156 = arith.addf %128, %155 : vector<32x32xf32>
    %cst_88 = arith.constant 0.000000e+00 : f32
    %157 = vector.broadcast %cst_88 : f32 to vector<32x32xf32>
    %158 = arith.maximumf %156, %157 : vector<32x32xf32>
    %c0_89 = arith.constant 0 : index
    %c0_90 = arith.constant 0 : index
    %159 = vector.load %arg27[%c0_89, %c0_90] : memref<32x64xf32, #tpu.memory_space<vmem>>, vector<32x64xf32>
    %cst_91 = arith.constant dense<0.000000e+00> : vector<32x64xf32>
    %160 = tpu.matmul %158, %159, %cst_91 {dimension_numbers = #tpu.dot_dimension_numbers<[1], [0], [0], [1], [0, 0, 1, 1], [], []>} : vector<32x32xf32>, vector<32x64xf32>, vector<32x64xf32> -> vector<32x64xf32>
    %c0_92 = arith.constant 0 : index
    %c0_93 = arith.constant 0 : index
    %161 = vector.load %arg28[%c0_92, %c0_93] : memref<1x64xf32, #tpu.memory_space<vmem>>, vector<1x64xf32>
    %162 = vector.broadcast %161 : vector<1x64xf32> to vector<32x64xf32>
    %163 = arith.addf %160, %162 : vector<32x64xf32>
    %cst_94 = arith.constant 0.000000e+00 : f32
    %164 = vector.broadcast %cst_94 : f32 to vector<32x64xf32>
    %165 = arith.maximumf %163, %164 : vector<32x64xf32>
    %c0_95 = arith.constant 0 : index
    %c0_96 = arith.constant 0 : index
    %166 = vector.load %arg29[%c0_95, %c0_96] : memref<64x32xf32, #tpu.memory_space<vmem>>, vector<64x32xf32>
    %cst_97 = arith.constant dense<0.000000e+00> : vector<32x32xf32>
    %167 = tpu.matmul %165, %166, %cst_97 {dimension_numbers = #tpu.dot_dimension_numbers<[1], [0], [0], [1], [0, 0, 1, 1], [], []>} : vector<32x64xf32>, vector<64x32xf32>, vector<32x32xf32> -> vector<32x32xf32>
    %c0_98 = arith.constant 0 : index
    %c0_99 = arith.constant 0 : index
    %168 = vector.load %arg30[%c0_98, %c0_99] : memref<1x32xf32, #tpu.memory_space<vmem>>, vector<1x32xf32>
    %169 = vector.broadcast %168 : vector<1x32xf32> to vector<32x32xf32>
    %170 = arith.addf %167, %169 : vector<32x32xf32>
    %171 = arith.addf %158, %170 : vector<32x32xf32>
    %cst_100 = arith.constant 0.000000e+00 : f32
    %172 = vector.broadcast %cst_100 : f32 to vector<32x32xf32>
    %173 = arith.maximumf %171, %172 : vector<32x32xf32>
    %c0_101 = arith.constant 0 : index
    %c0_102 = arith.constant 0 : index
    %174 = vector.load %arg31[%c0_101, %c0_102] : memref<32x32xf32, #tpu.memory_space<vmem>>, vector<32x32xf32>
    %cst_103 = arith.constant dense<0.000000e+00> : vector<32x32xf32>
    %175 = tpu.matmul %173, %174, %cst_103 {dimension_numbers = #tpu.dot_dimension_numbers<[1], [0], [0], [1], [0, 0, 1, 1], [], []>} : vector<32x32xf32>, vector<32x32xf32>, vector<32x32xf32> -> vector<32x32xf32>
    %c0_104 = arith.constant 0 : index
    %c0_105 = arith.constant 0 : index
    %176 = vector.load %arg32[%c0_104, %c0_105] : memref<1x32xf32, #tpu.memory_space<vmem>>, vector<1x32xf32>
    %177 = vector.broadcast %176 : vector<1x32xf32> to vector<32x32xf32>
    %178 = arith.addf %175, %177 : vector<32x32xf32>
    %c0_106 = arith.constant 0 : index
    %c0_107 = arith.constant 0 : index
    %179 = vector.load %arg33[%c0_106, %c0_107] : memref<32x16xf32, #tpu.memory_space<vmem>>, vector<32x16xf32>
    %cst_108 = arith.constant dense<0.000000e+00> : vector<32x16xf32>
    %180 = tpu.matmul %178, %179, %cst_108 {dimension_numbers = #tpu.dot_dimension_numbers<[1], [0], [0], [1], [0, 0, 1, 1], [], []>} : vector<32x32xf32>, vector<32x16xf32>, vector<32x16xf32> -> vector<32x16xf32>
    %c0_109 = arith.constant 0 : index
    %c0_110 = arith.constant 0 : index
    %181 = vector.load %arg34[%c0_109, %c0_110] : memref<9x16xf32, #tpu.memory_space<vmem>>, vector<9x16xf32>
    %cst_111 = arith.constant dense<0.000000e+00> : vector<32x16xf32>
    %182 = tpu.matmul %0, %181, %cst_111 {dimension_numbers = #tpu.dot_dimension_numbers<[1], [0], [0], [1], [0, 0, 1, 1], [], []>} : vector<32x9xf32>, vector<9x16xf32>, vector<32x16xf32> -> vector<32x16xf32>
    %183 = arith.addf %180, %182 : vector<32x16xf32>
    %c0_112 = arith.constant 0 : index
    %c0_113 = arith.constant 0 : index
    %184 = vector.load %arg35[%c0_112, %c0_113] : memref<1x16xf32, #tpu.memory_space<vmem>>, vector<1x16xf32>
    %185 = vector.broadcast %184 : vector<1x16xf32> to vector<32x16xf32>
    %186 = arith.addf %183, %185 : vector<32x16xf32>
    %cst_114 = arith.constant 0.000000e+00 : f32
    %187 = vector.broadcast %cst_114 : f32 to vector<32x16xf32>
    %188 = arith.maximumf %186, %187 : vector<32x16xf32>
    %c0_115 = arith.constant 0 : index
    %c0_116 = arith.constant 0 : index
    %189 = vector.load %arg36[%c0_115, %c0_116] : memref<16x8xf32, #tpu.memory_space<vmem>>, vector<16x8xf32>
    %cst_117 = arith.constant dense<0.000000e+00> : vector<32x8xf32>
    %190 = tpu.matmul %188, %189, %cst_117 {dimension_numbers = #tpu.dot_dimension_numbers<[1], [0], [0], [1], [0, 0, 1, 1], [], []>} : vector<32x16xf32>, vector<16x8xf32>, vector<32x8xf32> -> vector<32x8xf32>
    %c0_118 = arith.constant 0 : index
    %c0_119 = arith.constant 0 : index
    %191 = vector.load %arg37[%c0_118, %c0_119] : memref<32x8xf32, #tpu.memory_space<vmem>>, vector<32x8xf32>
    %cst_120 = arith.constant dense<0.000000e+00> : vector<32x8xf32>
    %192 = tpu.matmul %173, %191, %cst_120 {dimension_numbers = #tpu.dot_dimension_numbers<[1], [0], [0], [1], [0, 0, 1, 1], [], []>} : vector<32x32xf32>, vector<32x8xf32>, vector<32x8xf32> -> vector<32x8xf32>
    %193 = arith.addf %190, %192 : vector<32x8xf32>
    %c0_121 = arith.constant 0 : index
    %c0_122 = arith.constant 0 : index
    %194 = vector.load %arg38[%c0_121, %c0_122] : memref<16x8xf32, #tpu.memory_space<vmem>>, vector<16x8xf32>
    %cst_123 = arith.constant dense<0.000000e+00> : vector<32x8xf32>
    %195 = tpu.matmul %143, %194, %cst_123 {dimension_numbers = #tpu.dot_dimension_numbers<[1], [0], [0], [1], [0, 0, 1, 1], [], []>} : vector<32x16xf32>, vector<16x8xf32>, vector<32x8xf32> -> vector<32x8xf32>
    %196 = arith.addf %193, %195 : vector<32x8xf32>
    %c0_124 = arith.constant 0 : index
    %c0_125 = arith.constant 0 : index
    %197 = vector.load %arg39[%c0_124, %c0_125] : memref<1x8xf32, #tpu.memory_space<vmem>>, vector<1x8xf32>
    %198 = vector.broadcast %197 : vector<1x8xf32> to vector<32x8xf32>
    %199 = arith.addf %196, %198 : vector<32x8xf32>
    %200 = tpu.iota {dimensions = array<i32: 1>} : vector<32x8xi32>
    %c4_i32 = arith.constant 4 : i32
    %201 = vector.broadcast %c4_i32 : i32 to vector<32x8xi32>
    %202 = arith.cmpi eq, %200, %201 : vector<32x8xi32>
    %203 = arith.negf %199 : vector<32x8xf32>
    %204 = math.exp %203 : vector<32x8xf32>
    %cst_126 = arith.constant 1.000000e+00 : f32
    %205 = vector.broadcast %cst_126 : f32 to vector<32x8xf32>
    %206 = arith.addf %205, %204 : vector<32x8xf32>
    %207 = arith.divf %205, %206 : vector<32x8xf32>
    %208 = arith.select %202, %207, %199 : vector<32x8xi1>, vector<32x8xf32>
    %c0_127 = arith.constant 0 : index
    %c0_128 = arith.constant 0 : index
    %209 = vector.load %arg40[%c0_127, %c0_128] : memref<32x8xf32, #tpu.memory_space<vmem>>, vector<32x8xf32>
    tpu.vector_store %arg40[%c0_127, %c0_128], %208 {strides = array<i32>} : memref<32x8xf32, #tpu.memory_space<vmem>>, vector<32x8xf32>,
    return
  }
}

</mosaic_0001>

<llo_original>
// kernel: cnn_forward.1
$region0: #{cnn_forward.1}
  #allocation0 [shape = 'u32[]', space=smem, size = 0x4, offset = 0x4, fixed_abs, tag = 'smem constant byte address 0x4 - core index']
  #allocation1 [shape = 'u32[144,128]{1,0:T(1,128)}', space=vmem, size = 0x12000, scoped, tag = 'internal scratch']
  %s0 = inlined_call_operand.smem [shape: u32[41], index: -1, kind: input, shape index: {}]
  %s1 = sld [smem:[%s0]]
  %s2 = scalar_lea.smem %s0, 1
  %s3 = sld [smem:[%s2]]
  %s4 = scalar_lea.smem %s0, 2
  %s5 = sld [smem:[%s4]]
  %s6 = scalar_lea.smem %s0, 3
  %s7 = sld [smem:[%s6]]
  %s8 = scalar_lea.smem %s0, 4
  %s9 = sld [smem:[%s8]]
  %s10 = scalar_lea.smem %s0, 5
  %s11 = sld [smem:[%s10]]
  %s12 = scalar_lea.smem %s0, 6
  %s13 = sld [smem:[%s12]]
  %s14 = scalar_lea.smem %s0, 7
  %s15 = sld [smem:[%s14]]
  %s16 = scalar_lea.smem %s0, 8
  %s17 = sld [smem:[%s16]]
  %s18 = scalar_lea.smem %s0, 9
  %s19 = sld [smem:[%s18]]
  %s20 = scalar_lea.smem %s0, 10
  %s21 = sld [smem:[%s20]]
  %s22 = scalar_lea.smem %s0, 11
  %s23 = sld [smem:[%s22]]
  %s24 = scalar_lea.smem %s0, 12
  %s25 = sld [smem:[%s24]]
  %s26 = scalar_lea.smem %s0, 13
  %s27 = sld [smem:[%s26]]
  %s28 = scalar_lea.smem %s0, 14
  %s29 = sld [smem:[%s28]]
  %s30 = scalar_lea.smem %s0, 15
  %s31 = sld [smem:[%s30]]
  %s32 = scalar_lea.smem %s0, 16
  %s33 = sld [smem:[%s32]]
  %s34 = scalar_lea.smem %s0, 17
  %s35 = sld [smem:[%s34]]
  %s36 = scalar_lea.smem %s0, 18
  %s37 = sld [smem:[%s36]]
  %s38 = scalar_lea.smem %s0, 19
  %s39 = sld [smem:[%s38]]
  %s40 = scalar_lea.smem %s0, 20
  %s41 = sld [smem:[%s40]]
  %s42 = scalar_lea.smem %s0, 21
  %s43 = sld [smem:[%s42]]
  %s44 = scalar_lea.smem %s0, 22
  %s45 = sld [smem:[%s44]]
  %s46 = scalar_lea.smem %s0, 23
  %s47 = sld [smem:[%s46]]
  %s48 = scalar_lea.smem %s0, 24
  %s49 = sld [smem:[%s48]]
  %s50 = scalar_lea.smem %s0, 25
  %s51 = sld [smem:[%s50]]
  %s52 = scalar_lea.smem %s0, 26
  %s53 = sld [smem:[%s52]]
  %s54 = scalar_lea.smem %s0, 27
  %s55 = sld [smem:[%s54]]
  %s56 = scalar_lea.smem %s0, 28
  %s57 = sld [smem:[%s56]]
  %s58 = scalar_lea.smem %s0, 29
  %s59 = sld [smem:[%s58]]
  %s60 = scalar_lea.smem %s0, 30
  %s61 = sld [smem:[%s60]]
  %s62 = scalar_lea.smem %s0, 31
  %s63 = sld [smem:[%s62]]
  %s64 = scalar_lea.smem %s0, 32
  %s65 = sld [smem:[%s64]]
  %s66 = scalar_lea.smem %s0, 33
  %s67 = sld [smem:[%s66]]
  %s68 = scalar_lea.smem %s0, 34
  %s69 = sld [smem:[%s68]]
  %s70 = scalar_lea.smem %s0, 35
  %s71 = sld [smem:[%s70]]
  %s72 = scalar_lea.smem %s0, 36
  %s73 = sld [smem:[%s72]]
  %s74 = scalar_lea.smem %s0, 37
  %s75 = sld [smem:[%s74]]
  %s76 = scalar_lea.smem %s0, 38
  %s77 = sld [smem:[%s76]]
  %s78 = scalar_lea.smem %s0, 39
  %s79 = sld [smem:[%s78]]
  %s80 = scalar_lea.smem %s0, 40
  %s81 = sld [smem:[%s80]]
  %s82 = sld [smem:[#allocation0]]
  $region210: #{cnn_forward.1} parent=0
    _
  %s84 = ssub.s32 1, %s82
  %s85 = scalar_select 0, %s84, %s82
  $region1: #{cnn_forward.1} parent=0
    #allocation2 [shape = 'u8[12288]{0}', space=vmem, size = 0x3000, scoped, tag = 'input window, operand 4, single buffered']
    #allocation3 [shape = 's32[1]{0}', space=sflag, size = 0x4, scoped, tag = 'scoped memory for cnn_forward.1']
    #allocation4 [shape = 'u8[512]{0}', space=vmem, size = 0x400, scoped, tag = 'input window, operand 7, single buffered']
    #allocation5 [shape = 's32[1]{0}', space=sflag, size = 0x4, scoped, tag = 'scoped memory for cnn_forward.1']
    #allocation6 [shape = 'u8[512]{0}', space=vmem, size = 0x400, scoped, tag = 'input window, operand 9, single buffered']
    #allocation7 [shape = 'u8[512]{0}', space=vmem, size = 0x400, scoped, tag = 'input window, operand 14, single buffered']
    #allocation8 [shape = 's32[1]{0}', space=sflag, size = 0x4, scoped, tag = 'scoped memory for cnn_forward.1']
    #allocation9 [shape = 'u8[512]{0}', space=vmem, size = 0x400, scoped, tag = 'input window, operand 15, single buffered']
    #allocation10 [shape = 'u8[512]{0}', space=vmem, size = 0x400, scoped, tag = 'input window, operand 17, single buffered']
    #allocation11 [shape = 's32[1]{0}', space=sflag, size = 0x4, scoped, tag = 'scoped memory for cnn_forward.1']
    #allocation12 [shape = 'u8[512]{0}', space=vmem, size = 0x400, scoped, tag = 'input window, operand 32, single buffered']
    #allocation13 [shape = 'u8[8192]{0}', space=vmem, size = 0x2000, scoped, tag = 'input window, operand 34, single buffered']
    #allocation14 [shape = 's32[1]{0}', space=sflag, size = 0x4, scoped, tag = 'scoped memory for cnn_forward.1']
    #allocation15 [shape = 'u8[512]{0}', space=vmem, size = 0x400, scoped, tag = 'input window, operand 35, single buffered']
    #allocation16 [shape = 'u8[512]{0}', space=vmem, size = 0x400, scoped, tag = 'input window, operand 39, single buffered']
    #allocation17 [shape = 's32[1]{0}', space=sflag, size = 0x4, scoped, tag = 'scoped memory for cnn_forward.1']
    %86 = vsyncpa [#allocation3], 0
    %87 = vsyncpa [#allocation5], 0
    %88 = vsyncpa [#allocation8], 0
    %89 = vsyncpa [#allocation11], 0
    %90 = vsyncpa [#allocation14], 0
    %91 = vsyncpa [#allocation17], 0
    // Predicated region
    $region2: #{cnn_forward.1} parent=1 // pred_check
      _
    $region3: #{cnn_forward.1} parent=1 // pred_check_branch
      %93 = sbr.rel (0) target = $region5
    $region4: #{cnn_forward.1} parent=1 // pred_region
      _
    $region5: #{cnn_forward.1} parent=1 // pred_fallthru
      _
    // Predicated region
    $region6: #{cnn_forward.1} parent=1 // pred_check
      _
    $region7: #{cnn_forward.1} parent=1 // pred_check_branch
      %95 = sbr.rel (0) target = $region9
    $region8: #{cnn_forward.1} parent=1 // pred_region
      _
    $region9: #{cnn_forward.1} parent=1 // pred_fallthru
      _
    // Predicated region
    $region10: #{cnn_forward.1} parent=1 // pred_check
      _
    $region11: #{cnn_forward.1} parent=1 // pred_check_branch
      %97 = sbr.rel (0) target = $region13
    $region12: #{cnn_forward.1} parent=1 // pred_region
      _
    $region13: #{cnn_forward.1} parent=1 // pred_fallthru
      _
    // Predicated region
    $region14: #{cnn_forward.1} parent=1 // pred_check
      _
    $region15: #{cnn_forward.1} parent=1 // pred_check_branch
      %99 = sbr.rel (0) target = $region17
    $region16: #{cnn_forward.1} parent=1 // pred_region
      _
    $region17: #{cnn_forward.1} parent=1 // pred_fallthru
      _
    // Predicated region
    $region18: #{cnn_forward.1} parent=1 // pred_check
      _
    $region19: #{cnn_forward.1} parent=1 // pred_check_branch
      %101 = sbr.rel (0) target = $region21
    $region20: #{cnn_forward.1} parent=1 // pred_region
      %s103 = ssub.s32 384, 384
      %104 = vsyncadd [#allocation3], %s103
      %s105 = sshll.u32 [#allocation2], 4
      %s106 = int_to_ptr.vmem [resolvable:$true] %s105
      %111 = dma.hbm_to_vmem [thread:$0]  %s9, 384, %s106, [#allocation3], 128, 128, 8
    $region21: #{cnn_forward.1} parent=1 // pred_fallthru
      _
    // Predicated region
    $region22: #{cnn_forward.1} parent=1 // pred_check
      _
    $region23: #{cnn_forward.1} parent=1 // pred_check_branch
      %113 = sbr.rel (0) target = $region25
    $region24: #{cnn_forward.1} parent=1 // pred_region
      _
    $region25: #{cnn_forward.1} parent=1 // pred_fallthru
      _
    // Predicated region
    $region26: #{cnn_forward.1} parent=1 // pred_check
      _
    $region27: #{cnn_forward.1} parent=1 // pred_check_branch
      %115 = sbr.rel (0) target = $region29
    $region28: #{cnn_forward.1} parent=1 // pred_region
      _
    $region29: #{cnn_forward.1} parent=1 // pred_fallthru
      _
    // Predicated region
    $region30: #{cnn_forward.1} parent=1 // pred_check
      _
    $region31: #{cnn_forward.1} parent=1 // pred_check_branch
      %117 = sbr.rel (0) target = $region33
    $region32: #{cnn_forward.1} parent=1 // pred_region
      %s119 = ssub.s32 16, 16
      %120 = vsyncadd [#allocation5], %s119
      %s122 = sshll.u32 [#allocation4], 4
      %s123 = int_to_ptr.vmem [resolvable:$true] %s122
      %125 = dma.hbm_to_vmem [thread:$0]  %s15, 16, %s123, [#allocation5]
    $region33: #{cnn_forward.1} parent=1 // pred_fallthru
      _
    // Predicated region
    $region34: #{cnn_forward.1} parent=1 // pred_check
      _
    $region35: #{cnn_forward.1} parent=1 // pred_check_branch
      %127 = sbr.rel (0) target = $region37
    $region36: #{cnn_forward.1} parent=1 // pred_region
      _
    $region37: #{cnn_forward.1} parent=1 // pred_fallthru
      _
    // Predicated region
    $region38: #{cnn_forward.1} parent=1 // pred_check
      _
    $region39: #{cnn_forward.1} parent=1 // pred_check_branch
      %129 = sbr.rel (0) target = $region41
    $region40: #{cnn_forward.1} parent=1 // pred_region
      %s131 = ssub.s32 16, 16
      %132 = vsyncadd [#allocation5], %s131
      %s134 = sshll.u32 [#allocation6], 4
      %s135 = int_to_ptr.vmem [resolvable:$true] %s134
      %137 = dma.hbm_to_vmem [thread:$0]  %s19, 16, %s135, [#allocation5]
    $region41: #{cnn_forward.1} parent=1 // pred_fallthru
      _
    // Predicated region
    $region42: #{cnn_forward.1} parent=1 // pred_check
      _
    $region43: #{cnn_forward.1} parent=1 // pred_check_branch
      %139 = sbr.rel (0) target = $region45
    $region44: #{cnn_forward.1} parent=1 // pred_region
      _
    $region45: #{cnn_forward.1} parent=1 // pred_fallthru
      _
    // Predicated region
    $region46: #{cnn_forward.1} parent=1 // pred_check
      _
    $region47: #{cnn_forward.1} parent=1 // pred_check_branch
      %141 = sbr.rel (0) target = $region49
    $region48: #{cnn_forward.1} parent=1 // pred_region
      _
    $region49: #{cnn_forward.1} parent=1 // pred_fallthru
      _
    // Predicated region
    $region50: #{cnn_forward.1} parent=1 // pred_check
      _
    $region51: #{cnn_forward.1} parent=1 // pred_check_branch
      %143 = sbr.rel (0) target = $region53
    $region52: #{cnn_forward.1} parent=1 // pred_region
      _
    $region53: #{cnn_forward.1} parent=1 // pred_fallthru
      _
    // Predicated region
    $region54: #{cnn_forward.1} parent=1 // pred_check
      _
    $region55: #{cnn_forward.1} parent=1 // pred_check_branch
      %145 = sbr.rel (0) target = $region57
    $region56: #{cnn_forward.1} parent=1 // pred_region
      _
    $region57: #{cnn_forward.1} parent=1 // pred_fallthru
      _
    // Predicated region
    $region58: #{cnn_forward.1} parent=1 // pred_check
      _
    $region59: #{cnn_forward.1} parent=1 // pred_check_branch
      %147 = sbr.rel (0) target = $region61
    $region60: #{cnn_forward.1} parent=1 // pred_region
      %s149 = ssub.s32 16, 16
      %150 = vsyncadd [#allocation8], %s149
      %s152 = sshll.u32 [#allocation7], 4
      %s153 = int_to_ptr.vmem [resolvable:$true] %s152
      %155 = dma.hbm_to_vmem [thread:$0]  %s29, 16, %s153, [#allocation8]
    $region61: #{cnn_forward.1} parent=1 // pred_fallthru
      _
    // Predicated region
    $region62: #{cnn_forward.1} parent=1 // pred_check
      _
    $region63: #{cnn_forward.1} parent=1 // pred_check_branch
      %157 = sbr.rel (0) target = $region65
    $region64: #{cnn_forward.1} parent=1 // pred_region
      %s159 = ssub.s32 16, 16
      %160 = vsyncadd [#allocation8], %s159
      %s162 = sshll.u32 [#allocation9], 4
      %s163 = int_to_ptr.vmem [resolvable:$true] %s162
      %165 = dma.hbm_to_vmem [thread:$0]  %s31, 16, %s163, [#allocation8]
    $region65: #{cnn_forward.1} parent=1 // pred_fallthru
      _
    // Predicated region
    $region66: #{cnn_forward.1} parent=1 // pred_check
      _
    $region67: #{cnn_forward.1} parent=1 // pred_check_branch
      %167 = sbr.rel (0) target = $region69
    $region68: #{cnn_forward.1} parent=1 // pred_region
      _
    $region69: #{cnn_forward.1} parent=1 // pred_fallthru
      _
    // Predicated region
    $region70: #{cnn_forward.1} parent=1 // pred_check
      _
    $region71: #{cnn_forward.1} parent=1 // pred_check_branch
      %169 = sbr.rel (0) target = $region73
    $region72: #{cnn_forward.1} parent=1 // pred_region
      %s171 = ssub.s32 16, 16
      %172 = vsyncadd [#allocation11], %s171
      %s174 = sshll.u32 [#allocation10], 4
      %s175 = int_to_ptr.vmem [resolvable:$true] %s174
      %177 = dma.hbm_to_vmem [thread:$0]  %s35, 16, %s175, [#allocation11]
    $region73: #{cnn_forward.1} parent=1 // pred_fallthru
      _
    // Predicated region
    $region74: #{cnn_forward.1} parent=1 // pred_check
      _
    $region75: #{cnn_forward.1} parent=1 // pred_check_branch
      %179 = sbr.rel (0) target = $region77
    $region76: #{cnn_forward.1} parent=1 // pred_region
      _
    $region77: #{cnn_forward.1} parent=1 // pred_fallthru
      _
    // Predicated region
    $region78: #{cnn_forward.1} parent=1 // pred_check
      _
    $region79: #{cnn_forward.1} parent=1 // pred_check_branch
      %181 = sbr.rel (0) target = $region81
    $region80: #{cnn_forward.1} parent=1 // pred_region
      _
    $region81: #{cnn_forward.1} parent=1 // pred_fallthru
      _
    // Predicated region
    $region82: #{cnn_forward.1} parent=1 // pred_check
      _
    $region83: #{cnn_forward.1} parent=1 // pred_check_branch
      %183 = sbr.rel (0) target = $region85
    $region84: #{cnn_forward.1} parent=1 // pred_region
      _
    $region85: #{cnn_forward.1} parent=1 // pred_fallthru
      _
    // Predicated region
    $region86: #{cnn_forward.1} parent=1 // pred_check
      _
    $region87: #{cnn_forward.1} parent=1 // pred_check_branch
      %185 = sbr.rel (0) target = $region89
    $region88: #{cnn_forward.1} parent=1 // pred_region
      _
    $region89: #{cnn_forward.1} parent=1 // pred_fallthru
      _
    // Predicated region
    $region90: #{cnn_forward.1} parent=1 // pred_check
      _
    $region91: #{cnn_forward.1} parent=1 // pred_check_branch
      %187 = sbr.rel (0) target = $region93
    $region92: #{cnn_forward.1} parent=1 // pred_region
      _
    $region93: #{cnn_forward.1} parent=1 // pred_fallthru
      _
    // Predicated region
    $region94: #{cnn_forward.1} parent=1 // pred_check
      _
    $region95: #{cnn_forward.1} parent=1 // pred_check_branch
      %189 = sbr.rel (0) target = $region97
    $region96: #{cnn_forward.1} parent=1 // pred_region
      _
    $region97: #{cnn_forward.1} parent=1 // pred_fallthru
      _
    // Predicated region
    $region98: #{cnn_forward.1} parent=1 // pred_check
      _
    $region99: #{cnn_forward.1} parent=1 // pred_check_branch
      %191 = sbr.rel (0) target = $region101
    $region100: #{cnn_forward.1} parent=1 // pred_region
      _
    $region101: #{cnn_forward.1} parent=1 // pred_fallthru
      _
    // Predicated region
    $region102: #{cnn_forward.1} parent=1 // pred_check
      _
    $region103: #{cnn_forward.1} parent=1 // pred_check_branch
      %193 = sbr.rel (0) target = $region105
    $region104: #{cnn_forward.1} parent=1 // pred_region
      _
    $region105: #{cnn_forward.1} parent=1 // pred_fallthru
      _
    // Predicated region
    $region106: #{cnn_forward.1} parent=1 // pred_check
      _
    $region107: #{cnn_forward.1} parent=1 // pred_check_branch
      %195 = sbr.rel (0) target = $region109
    $region108: #{cnn_forward.1} parent=1 // pred_region
      _
    $region109: #{cnn_forward.1} parent=1 // pred_fallthru
      _
    // Predicated region
    $region110: #{cnn_forward.1} parent=1 // pred_check
      _
    $region111: #{cnn_forward.1} parent=1 // pred_check_branch
      %197 = sbr.rel (0) target = $region113
    $region112: #{cnn_forward.1} parent=1 // pred_region
      _
    $region113: #{cnn_forward.1} parent=1 // pred_fallthru
      _
    // Predicated region
    $region114: #{cnn_forward.1} parent=1 // pred_check
      _
    $region115: #{cnn_forward.1} parent=1 // pred_check_branch
      %199 = sbr.rel (0) target = $region117
    $region116: #{cnn_forward.1} parent=1 // pred_region
      _
    $region117: #{cnn_forward.1} parent=1 // pred_fallthru
      _
    // Predicated region
    $region118: #{cnn_forward.1} parent=1 // pred_check
      _
    $region119: #{cnn_forward.1} parent=1 // pred_check_branch
      %201 = sbr.rel (0) target = $region121
    $region120: #{cnn_forward.1} parent=1 // pred_region
      _
    $region121: #{cnn_forward.1} parent=1 // pred_fallthru
      _
    // Predicated region
    $region122: #{cnn_forward.1} parent=1 // pred_check
      _
    $region123: #{cnn_forward.1} parent=1 // pred_check_branch
      %203 = sbr.rel (0) target = $region125
    $region124: #{cnn_forward.1} parent=1 // pred_region
      _
    $region125: #{cnn_forward.1} parent=1 // pred_fallthru
      _
    // Predicated region
    $region126: #{cnn_forward.1} parent=1 // pred_check
      _
    $region127: #{cnn_forward.1} parent=1 // pred_check_branch
      %205 = sbr.rel (0) target = $region129
    $region128: #{cnn_forward.1} parent=1 // pred_region
      _
    $region129: #{cnn_forward.1} parent=1 // pred_fallthru
      _
    // Predicated region
    $region130: #{cnn_forward.1} parent=1 // pred_check
      _
    $region131: #{cnn_forward.1} parent=1 // pred_check_branch
      %207 = sbr.rel (0) target = $region133
    $region132: #{cnn_forward.1} parent=1 // pred_region
      %s209 = ssub.s32 16, 16
      %210 = vsyncadd [#allocation11], %s209
      %s212 = sshll.u32 [#allocation12], 4
      %s213 = int_to_ptr.vmem [resolvable:$true] %s212
      %215 = dma.hbm_to_vmem [thread:$0]  %s65, 16, %s213, [#allocation11]
    $region133: #{cnn_forward.1} parent=1 // pred_fallthru
      _
    // Predicated region
    $region134: #{cnn_forward.1} parent=1 // pred_check
      _
    $region135: #{cnn_forward.1} parent=1 // pred_check_branch
      %217 = sbr.rel (0) target = $region137
    $region136: #{cnn_forward.1} parent=1 // pred_region
      _
    $region137: #{cnn_forward.1} parent=1 // pred_fallthru
      _
    // Predicated region
    $region138: #{cnn_forward.1} parent=1 // pred_check
      _
    $region139: #{cnn_forward.1} parent=1 // pred_check_branch
      %219 = sbr.rel (0) target = $region141
    $region140: #{cnn_forward.1} parent=1 // pred_region
      %s221 = ssub.s32 256, 256
      %222 = vsyncadd [#allocation14], %s221
      %s223 = sshll.u32 [#allocation13], 4
      %s224 = int_to_ptr.vmem [resolvable:$true] %s223
      %229 = dma.hbm_to_vmem [thread:$0]  %s69, 256, %s224, [#allocation14], 128, 128, 8
    $region141: #{cnn_forward.1} parent=1 // pred_fallthru
      _
    // Predicated region
    $region142: #{cnn_forward.1} parent=1 // pred_check
      _
    $region143: #{cnn_forward.1} parent=1 // pred_check_branch
      %231 = sbr.rel (0) target = $region145
    $region144: #{cnn_forward.1} parent=1 // pred_region
      %s233 = ssub.s32 16, 16
      %234 = vsyncadd [#allocation14], %s233
      %s236 = sshll.u32 [#allocation15], 4
      %s237 = int_to_ptr.vmem [resolvable:$true] %s236
      %239 = dma.hbm_to_vmem [thread:$0]  %s71, 16, %s237, [#allocation14]
    $region145: #{cnn_forward.1} parent=1 // pred_fallthru
      _
    // Predicated region
    $region146: #{cnn_forward.1} parent=1 // pred_check
      _
    $region147: #{cnn_forward.1} parent=1 // pred_check_branch
      %241 = sbr.rel (0) target = $region149
    $region148: #{cnn_forward.1} parent=1 // pred_region
      _
    $region149: #{cnn_forward.1} parent=1 // pred_fallthru
      _
    // Predicated region
    $region150: #{cnn_forward.1} parent=1 // pred_check
      _
    $region151: #{cnn_forward.1} parent=1 // pred_check_branch
      %243 = sbr.rel (0) target = $region153
    $region152: #{cnn_forward.1} parent=1 // pred_region
      _
    $region153: #{cnn_forward.1} parent=1 // pred_fallthru
      _
    // Predicated region
    $region154: #{cnn_forward.1} parent=1 // pred_check
      _
    $region155: #{cnn_forward.1} parent=1 // pred_check_branch
      %245 = sbr.rel (0) target = $region157
    $region156: #{cnn_forward.1} parent=1 // pred_region
      _
    $region157: #{cnn_forward.1} parent=1 // pred_fallthru
      _
    // Predicated region
    $region158: #{cnn_forward.1} parent=1 // pred_check
      _
    $region159: #{cnn_forward.1} parent=1 // pred_check_branch
      %247 = sbr.rel (0) target = $region161
    $region160: #{cnn_forward.1} parent=1 // pred_region
      %s249 = ssub.s32 16, 16
      %250 = vsyncadd [#allocation17], %s249
      %s252 = sshll.u32 [#allocation16], 4
      %s253 = int_to_ptr.vmem [resolvable:$true] %s252
      %255 = dma.hbm_to_vmem [thread:$0]  %s79, 16, %s253, [#allocation17]
    $region161: #{cnn_forward.1} parent=1 // pred_fallthru
      _
    // Predicated region
    $region162: #{cnn_forward.1} parent=1 // pred_check
      _
    $region163: #{cnn_forward.1} parent=1 // pred_check_branch
      %257 = sbr.rel (0) target = $region165
    $region164: #{cnn_forward.1} parent=1 // pred_region
      %258 = dma.done [#allocation3], 384
    $region165: #{cnn_forward.1} parent=1 // pred_fallthru
      _
    // Predicated region
    $region166: #{cnn_forward.1} parent=1 // pred_check
      _
    $region167: #{cnn_forward.1} parent=1 // pred_check_branch
      %260 = sbr.rel (0) target = $region169
    $region168: #{cnn_forward.1} parent=1 // pred_region
      %261 = dma.done [#allocation5], 16
    $region169: #{cnn_forward.1} parent=1 // pred_fallthru
      _
    // Predicated region
    $region170: #{cnn_forward.1} parent=1 // pred_check
      _
    $region171: #{cnn_forward.1} parent=1 // pred_check_branch
      %263 = sbr.rel (0) target = $region173
    $region172: #{cnn_forward.1} parent=1 // pred_region
      %264 = dma.done [#allocation5], 16
    $region173: #{cnn_forward.1} parent=1 // pred_fallthru
      _
    // Predicated region
    $region174: #{cnn_forward.1} parent=1 // pred_check
      _
    $region175: #{cnn_forward.1} parent=1 // pred_check_branch
      %266 = sbr.rel (0) target = $region177
    $region176: #{cnn_forward.1} parent=1 // pred_region
      %267 = dma.done [#allocation8], 16
    $region177: #{cnn_forward.1} parent=1 // pred_fallthru
      _
    // Predicated region
    $region178: #{cnn_forward.1} parent=1 // pred_check
      _
    $region179: #{cnn_forward.1} parent=1 // pred_check_branch
      %269 = sbr.rel (0) target = $region181
    $region180: #{cnn_forward.1} parent=1 // pred_region
      %270 = dma.done [#allocation8], 16
    $region181: #{cnn_forward.1} parent=1 // pred_fallthru
      _
    // Predicated region
    $region182: #{cnn_forward.1} parent=1 // pred_check
      _
    $region183: #{cnn_forward.1} parent=1 // pred_check_branch
      %272 = sbr.rel (0) target = $region185
    $region184: #{cnn_forward.1} parent=1 // pred_region
      %273 = dma.done [#allocation11], 16
    $region185: #{cnn_forward.1} parent=1 // pred_fallthru
      _
    // Predicated region
    $region186: #{cnn_forward.1} parent=1 // pred_check
      _
    $region187: #{cnn_forward.1} parent=1 // pred_check_branch
      %275 = sbr.rel (0) target = $region189
    $region188: #{cnn_forward.1} parent=1 // pred_region
      %276 = dma.done [#allocation11], 16
    $region189: #{cnn_forward.1} parent=1 // pred_fallthru
      _
    // Predicated region
    $region190: #{cnn_forward.1} parent=1 // pred_check
      _
    $region191: #{cnn_forward.1} parent=1 // pred_check_branch
      %278 = sbr.rel (0) target = $region193
    $region192: #{cnn_forward.1} parent=1 // pred_region
      %279 = dma.done [#allocation14], 256
    $region193: #{cnn_forward.1} parent=1 // pred_fallthru
      _
    // Predicated region
    $region194: #{cnn_forward.1} parent=1 // pred_check
      _
    $region195: #{cnn_forward.1} parent=1 // pred_check_branch
      %281 = sbr.rel (0) target = $region197
    $region196: #{cnn_forward.1} parent=1 // pred_region
      %282 = dma.done [#allocation14], 16
    $region197: #{cnn_forward.1} parent=1 // pred_fallthru
      _
    // Predicated region
    $region198: #{cnn_forward.1} parent=1 // pred_check
      _
    $region199: #{cnn_forward.1} parent=1 // pred_check_branch
      %284 = sbr.rel (0) target = $region201
    $region200: #{cnn_forward.1} parent=1 // pred_region
      %285 = dma.done [#allocation17], 16
    $region201: #{cnn_forward.1} parent=1 // pred_fallthru
      _
    %v286 = vld [vmem:[%s3] sm:$0xff]
    %v287 = vld [vmem:[%s3 + $0x8] sm:$0xff]
    %v288 = vld [vmem:[%s3 + $0x10] sm:$0xff]
    %v289 = vld [vmem:[%s3 + $0x18] sm:$0xff]
    %v290 = vld [vmem:[%s1] sm:$0xff]
    %v291 = vld [vmem:[%s1 + $0x8] sm:$0xff]
    %v292 = vld [vmem:[%s1 + $0x10] sm:$0xff]
    %v293 = vld [vmem:[%s1 + $0x18] sm:$0xff]
    %v294 = vlaneseq
    %v295 = vshrl.u32 %v294, 7
    %v296 = vadd.s32 %v295, 8
    %v297 = vadd.s32 %v295, 16
    %v298 = vadd.s32 %v295, 24
    %vm299 = vcmp.lt.s32.totalorder %v295, 0
    %v300 = vsub.s32 0, %v295
    %v301 = vsel %vm299, %v300, %v295
    %v302 = vshrl.u32 %v301, 4
    %v303 = vand.u32 %v301, 15
    %v304 = vsub.s32 0, %v303
    %v305 = vsel %vm299, %v304, %v303
    %vm306 = vcmp.lt.s32.totalorder %v296, 0
    %v307 = vsub.s32 0, %v296
    %v308 = vsel %vm306, %v307, %v296
    %v309 = vshrl.u32 %v308, 4
    %v310 = vand.u32 %v308, 15
    %v311 = vsub.s32 0, %v310
    %v312 = vsel %vm306, %v311, %v310
    %vm313 = vcmp.lt.s32.totalorder %v297, 0
    %v314 = vsub.s32 0, %v297
    %v315 = vsel %vm313, %v314, %v297
    %v316 = vshrl.u32 %v315, 4
    %v317 = vand.u32 %v315, 15
    %v318 = vsub.s32 0, %v317
    %v319 = vsel %vm313, %v318, %v317
    %vm320 = vcmp.lt.s32.totalorder %v298, 0
    %v321 = vsub.s32 0, %v298
    %v322 = vsel %vm320, %v321, %v298
    %v323 = vshrl.u32 %v322, 4
    %v324 = vand.u32 %v322, 15
    %v325 = vsub.s32 0, %v324
    %v326 = vsel %vm320, %v325, %v324
    %vm327 = vcmp.ne.s32.totalorder %v305, 0
    %vm328 = vcmp.ne.s32.totalorder %v312, 0
    %vm329 = vcmp.ne.s32.totalorder %v319, 0
    %vm330 = vcmp.ne.s32.totalorder %v326, 0
    %vm331 = vcmp.lt.s32.totalorder %v305, 0
    %vm332 = vcmp.lt.s32.totalorder %v312, 0
    %vm333 = vcmp.lt.s32.totalorder %v319, 0
    %vm334 = vcmp.lt.s32.totalorder %v326, 0
    %vm335 = vmand %vm331, %vm327
    %vm336 = vmand %vm332, %vm328
    %vm337 = vmand %vm333, %vm329
    %vm338 = vmand %vm334, %vm330
    %v339 = vadd.s32 %v305, 16
    %v340 = vadd.s32 %v312, 16
    %v341 = vadd.s32 %v319, 16
    %v342 = vadd.s32 %v326, 16
    %v343 = vsel %vm335, %v339, %v305
    %v344 = vsel %vm336, %v340, %v312
    %v345 = vsel %vm337, %v341, %v319
    %v346 = vsel %vm338, %v342, %v326
    %vm347 = vcmp.ne.s32.totalorder %v343, 0
    %vm348 = vcmp.ne.s32.totalorder %v344, 0
    %vm349 = vcmp.ne.s32.totalorder %v345, 0
    %vm350 = vcmp.ne.s32.totalorder %v346, 0
    %vm351 = vcmp.ne.s32.totalorder %v343, 15
    %vm352 = vcmp.ne.s32.totalorder %v344, 15
    %vm353 = vcmp.ne.s32.totalorder %v345, 15
    %vm354 = vcmp.ne.s32.totalorder %v346, 15
    %v355 = vld [vmem:[%s5] sm:$0xff]
    %v356 = vld [vmem:[%s5 + $0x8] sm:$0xff]
    %v357 = vld [vmem:[%s5 + $0x10] sm:$0x1f]
    %vm358 = vcmask 171008
    %v360 = vsel %vm358, %v290, 0
    %v363 = vsel %vm358, %v291, 0
    %v366 = vsel %vm358, %v292, 0
    %v369 = vsel %vm358, %v293, 0
    %vm371 = vcmask 1044480
    %v373 = vsel %vm371, %v357, 0
    %375 = vmatprep.subr.mxu0 0.0
    %376 = vmatpush1.msra.mxu0 0.0
    %377 = vmatprep.subr.mxu0 0.0
    %378 = vmatpush1.msra.mxu0 0.0
    %379 = vmatprep.subr.mxu0 0.0
    %380 = vmatpush1.msra.mxu0 0.0
    %381 = vmatprep.subr.mxu0 0.0
    %382 = vmatpush1.msra.mxu0 0.0
    %383 = vmatprep.subr.mxu0 0.0
    %384 = vmatpush1.msra.mxu0 0.0
    %385 = vmatprep.subr.mxu0 0.0
    %386 = vmatpush1.msra.mxu0 0.0
    %387 = vmatprep.subr.mxu0 0.0
    %388 = vmatpush1.msra.mxu0 0.0
    %389 = vmatprep.subr.mxu0 0.0
    %390 = vmatpush1.msra.mxu0 0.0
    %391 = vmatprep.subr.mxu0 0.0
    %392 = vmatpush1.msra.mxu0 0.0
    %393 = vmatprep.subr.mxu0 0.0
    %394 = vmatpush1.msra.mxu0 0.0
    %395 = vmatprep.subr.mxu0 0.0
    %396 = vmatpush1.msra.mxu0 0.0
    %397 = vmatprep.subr.mxu0 0.0
    %398 = vmatpush1.msra.mxu0 0.0
    %399 = vmatprep.subr.mxu0 0.0
    %400 = vmatpush1.msra.mxu0 0.0
    %401 = vmatprep.subr.mxu0 0.0
    %402 = vmatpush1.msra.mxu0 %v373
    %403 = vmatprep.subr.mxu0 0.0
    %404 = vmatpush1.msra.mxu0 %v356
    %405 = vmatprep.subr.mxu0 0.0
    %406 = vmatpush1.msra.mxu0 %v355
    %407 = vmatprep.subr.mxu0 0.0
    %408 = vmatpush2.msra.mxu0 0.0
    %409 = vmatprep.subr.mxu0 0.0
    %410 = vmatpush2.msra.mxu0 0.0
    %411 = vmatprep.subr.mxu0 0.0
    %412 = vmatpush2.msra.mxu0 0.0
    %413 = vmatprep.subr.mxu0 0.0
    %414 = vmatpush2.msra.mxu0 0.0
    %415 = vmatprep.subr.mxu0 0.0
    %416 = vmatpush2.msra.mxu0 0.0
    %417 = vmatprep.subr.mxu0 0.0
    %418 = vmatpush2.msra.mxu0 0.0
    %419 = vmatprep.subr.mxu0 0.0
    %420 = vmatpush2.msra.mxu0 0.0
    %421 = vmatprep.subr.mxu0 0.0
    %422 = vmatpush2.msra.mxu0 0.0
    %423 = vmatprep.subr.mxu0 0.0
    %424 = vmatpush2.msra.mxu0 0.0
    %425 = vmatprep.subr.mxu0 0.0
    %426 = vmatpush2.msra.mxu0 0.0
    %427 = vmatprep.subr.mxu0 0.0
    %428 = vmatpush2.msra.mxu0 0.0
    %429 = vmatprep.subr.mxu0 0.0
    %430 = vmatpush2.msra.mxu0 0.0
    %431 = vmatprep.subr.mxu0 0.0
    %432 = vmatpush2.msra.mxu0 0.0
    %433 = vmatprep.subr.mxu0 0.0
    %434 = vmatpush2.msra.mxu0 0.0
    %435 = vmatprep.subr.mxu0 0.0
    %436 = vmatpush2.msra.mxu0 0.0
    %437 = vmatprep.subr.mxu0 0.0
    %438 = vmatpush2.msra.mxu0 0.0
    %439 = vmatprep.mubr.f32.mxu0 0.0
    %440 = vmatmul.mubr.f32.gmra.mxu0 %v360
    %v441 = vpop.f32.mrf.mxu0
    %v442 = vadd.f32 0.0, %v441
    %v443 = vpop.f32.mrf.mxu0
    %444 = vmatprep.mubr.f32.mxu0 0.0
    %445 = vmatmul.mubr.f32.gmra.mxu0 %v363
    %v446 = vpop.f32.mrf.mxu0
    %v447 = vadd.f32 0.0, %v446
    %v448 = vpop.f32.mrf.mxu0
    %449 = vmatprep.mubr.f32.mxu0 0.0
    %450 = vmatmul.mubr.f32.gmra.mxu0 %v366
    %v451 = vpop.f32.mrf.mxu0
    %v452 = vadd.f32 0.0, %v451
    %v453 = vpop.f32.mrf.mxu0
    %454 = vmatprep.mubr.f32.mxu0 0.0
    %455 = vmatmul.mubr.f32.gmra.mxu0 %v369
    %v456 = vpop.f32.mrf.mxu0
    %v457 = vadd.f32 0.0, %v456
    %v458 = vpop.f32.mrf.mxu0
    %459 = vdwg.mxu0
    %v460 = vld [vmem:[%s7] sm:$0xff]
    %v461 = vld [vmem:[%s7 + $0x8] sm:$0xff]
    %v462 = vld [vmem:[%s7 + $0x10] sm:$0x1f]
    %v464 = vsel %vm371, %v462, 0
    %466 = vmatprep.subr.mxu0 0.0
    %467 = vmatpush1.msra.mxu0 0.0
    %468 = vmatprep.subr.mxu0 0.0
    %469 = vmatpush1.msra.mxu0 0.0
    %470 = vmatprep.subr.mxu0 0.0
    %471 = vmatpush1.msra.mxu0 0.0
    %472 = vmatprep.subr.mxu0 0.0
    %473 = vmatpush1.msra.mxu0 0.0
    %474 = vmatprep.subr.mxu0 0.0
    %475 = vmatpush1.msra.mxu0 0.0
    %476 = vmatprep.subr.mxu0 0.0
    %477 = vmatpush1.msra.mxu0 0.0
    %478 = vmatprep.subr.mxu0 0.0
    %479 = vmatpush1.msra.mxu0 0.0
    %480 = vmatprep.subr.mxu0 0.0
    %481 = vmatpush1.msra.mxu0 0.0
    %482 = vmatprep.subr.mxu0 0.0
    %483 = vmatpush1.msra.mxu0 0.0
    %484 = vmatprep.subr.mxu0 0.0
    %485 = vmatpush1.msra.mxu0 0.0
    %486 = vmatprep.subr.mxu0 0.0
    %487 = vmatpush1.msra.mxu0 0.0
    %488 = vmatprep.subr.mxu0 0.0
    %489 = vmatpush1.msra.mxu0 0.0
    %490 = vmatprep.subr.mxu0 0.0
    %491 = vmatpush1.msra.mxu0 0.0
    %492 = vmatprep.subr.mxu0 0.0
    %493 = vmatpush1.msra.mxu0 %v464
    %494 = vmatprep.subr.mxu0 0.0
    %495 = vmatpush1.msra.mxu0 %v461
    %496 = vmatprep.subr.mxu0 0.0
    %497 = vmatpush1.msra.mxu0 %v460
    %498 = vmatprep.subr.mxu0 0.0
    %499 = vmatpush2.msra.mxu0 0.0
    %500 = vmatprep.subr.mxu0 0.0
    %501 = vmatpush2.msra.mxu0 0.0
    %502 = vmatprep.subr.mxu0 0.0
    %503 = vmatpush2.msra.mxu0 0.0
    %504 = vmatprep.subr.mxu0 0.0
    %505 = vmatpush2.msra.mxu0 0.0
    %506 = vmatprep.subr.mxu0 0.0
    %507 = vmatpush2.msra.mxu0 0.0
    %508 = vmatprep.subr.mxu0 0.0
    %509 = vmatpush2.msra.mxu0 0.0
    %510 = vmatprep.subr.mxu0 0.0
    %511 = vmatpush2.msra.mxu0 0.0
    %512 = vmatprep.subr.mxu0 0.0
    %513 = vmatpush2.msra.mxu0 0.0
    %514 = vmatprep.subr.mxu0 0.0
    %515 = vmatpush2.msra.mxu0 0.0
    %516 = vmatprep.subr.mxu0 0.0
    %517 = vmatpush2.msra.mxu0 0.0
    %518 = vmatprep.subr.mxu0 0.0
    %519 = vmatpush2.msra.mxu0 0.0
    %520 = vmatprep.subr.mxu0 0.0
    %521 = vmatpush2.msra.mxu0 0.0
    %522 = vmatprep.subr.mxu0 0.0
    %523 = vmatpush2.msra.mxu0 0.0
    %524 = vmatprep.subr.mxu0 0.0
    %525 = vmatpush2.msra.mxu0 0.0
    %526 = vmatprep.subr.mxu0 0.0
    %527 = vmatpush2.msra.mxu0 0.0
    %528 = vmatprep.subr.mxu0 0.0
    %529 = vmatpush2.msra.mxu0 0.0
    %530 = vmatprep.mubr.f32.mxu0 0.0
    %531 = vmatmul.mubr.f32.gmra.mxu0 %v360
    %v532 = vpop.f32.mrf.mxu0
    %v533 = vadd.f32 0.0, %v532
    %v534 = vpop.f32.mrf.mxu0
    %535 = vmatprep.mubr.f32.mxu0 0.0
    %536 = vmatmul.mubr.f32.gmra.mxu0 %v363
    %v537 = vpop.f32.mrf.mxu0
    %v538 = vadd.f32 0.0, %v537
    %v539 = vpop.f32.mrf.mxu0
    %540 = vmatprep.mubr.f32.mxu0 0.0
    %541 = vmatmul.mubr.f32.gmra.mxu0 %v366
    %v542 = vpop.f32.mrf.mxu0
    %v543 = vadd.f32 0.0, %v542
    %v544 = vpop.f32.mrf.mxu0
    %545 = vmatprep.mubr.f32.mxu0 0.0
    %546 = vmatmul.mubr.f32.gmra.mxu0 %v369
    %v547 = vpop.f32.mrf.mxu0
    %v548 = vadd.f32 0.0, %v547
    %v549 = vpop.f32.mrf.mxu0
    %550 = vdwg.mxu0
    %v551 = vld [vmem:[#allocation2] sm:$0xff]
    %v552 = vld [vmem:[#allocation2 + $0x8] sm:$0xff]
    %v553 = vld [vmem:[#allocation2 + $0x10] sm:$0x1f]
    %v555 = vsel %vm371, %v553, 0
    %557 = vmatprep.subr.mxu0 0.0
    %558 = vmatpush1.msra.mxu0 0.0
    %559 = vmatprep.subr.mxu0 0.0
    %560 = vmatpush1.msra.mxu0 0.0
    %561 = vmatprep.subr.mxu0 0.0
    %562 = vmatpush1.msra.mxu0 0.0
    %563 = vmatprep.subr.mxu0 0.0
    %564 = vmatpush1.msra.mxu0 0.0
    %565 = vmatprep.subr.mxu0 0.0
    %566 = vmatpush1.msra.mxu0 0.0
    %567 = vmatprep.subr.mxu0 0.0
    %568 = vmatpush1.msra.mxu0 0.0
    %569 = vmatprep.subr.mxu0 0.0
    %570 = vmatpush1.msra.mxu0 0.0
    %571 = vmatprep.subr.mxu0 0.0
    %572 = vmatpush1.msra.mxu0 0.0
    %573 = vmatprep.subr.mxu0 0.0
    %574 = vmatpush1.msra.mxu0 0.0
    %575 = vmatprep.subr.mxu0 0.0
    %576 = vmatpush1.msra.mxu0 0.0
    %577 = vmatprep.subr.mxu0 0.0
    %578 = vmatpush1.msra.mxu0 0.0
    %579 = vmatprep.subr.mxu0 0.0
    %580 = vmatpush1.msra.mxu0 0.0
    %581 = vmatprep.subr.mxu0 0.0
    %582 = vmatpush1.msra.mxu0 0.0
    %583 = vmatprep.subr.mxu0 0.0
    %584 = vmatpush1.msra.mxu0 %v555
    %585 = vmatprep.subr.mxu0 0.0
    %586 = vmatpush1.msra.mxu0 %v552
    %587 = vmatprep.subr.mxu0 0.0
    %588 = vmatpush1.msra.mxu0 %v551
    %589 = vmatprep.subr.mxu0 0.0
    %590 = vmatpush2.msra.mxu0 0.0
    %591 = vmatprep.subr.mxu0 0.0
    %592 = vmatpush2.msra.mxu0 0.0
    %593 = vmatprep.subr.mxu0 0.0
    %594 = vmatpush2.msra.mxu0 0.0
    %595 = vmatprep.subr.mxu0 0.0
    %596 = vmatpush2.msra.mxu0 0.0
    %597 = vmatprep.subr.mxu0 0.0
    %598 = vmatpush2.msra.mxu0 0.0
    %599 = vmatprep.subr.mxu0 0.0
    %600 = vmatpush2.msra.mxu0 0.0
    %601 = vmatprep.subr.mxu0 0.0
    %602 = vmatpush2.msra.mxu0 0.0
    %603 = vmatprep.subr.mxu0 0.0
    %604 = vmatpush2.msra.mxu0 0.0
    %605 = vmatprep.subr.mxu0 0.0
    %606 = vmatpush2.msra.mxu0 0.0
    %607 = vmatprep.subr.mxu0 0.0
    %608 = vmatpush2.msra.mxu0 0.0
    %609 = vmatprep.subr.mxu0 0.0
    %610 = vmatpush2.msra.mxu0 0.0
    %611 = vmatprep.subr.mxu0 0.0
    %612 = vmatpush2.msra.mxu0 0.0
    %613 = vmatprep.subr.mxu0 0.0
    %614 = vmatpush2.msra.mxu0 0.0
    %615 = vmatprep.subr.mxu0 0.0
    %616 = vmatpush2.msra.mxu0 0.0
    %617 = vmatprep.subr.mxu0 0.0
    %618 = vmatpush2.msra.mxu0 0.0
    %619 = vmatprep.subr.mxu0 0.0
    %620 = vmatpush2.msra.mxu0 0.0
    %621 = vmatprep.mubr.f32.mxu0 0.0
    %622 = vmatmul.mubr.f32.gmra.mxu0 %v360
    %v623 = vpop.f32.mrf.mxu0
    %v624 = vadd.f32 0.0, %v623
    %v625 = vpop.f32.mrf.mxu0
    %626 = vmatprep.mubr.f32.mxu0 0.0
    %627 = vmatmul.mubr.f32.gmra.mxu0 %v363
    %v628 = vpop.f32.mrf.mxu0
    %v629 = vadd.f32 0.0, %v628
    %v630 = vpop.f32.mrf.mxu0
    %631 = vmatprep.mubr.f32.mxu0 0.0
    %632 = vmatmul.mubr.f32.gmra.mxu0 %v366
    %v633 = vpop.f32.mrf.mxu0
    %v634 = vadd.f32 0.0, %v633
    %v635 = vpop.f32.mrf.mxu0
    %636 = vmatprep.mubr.f32.mxu0 0.0
    %637 = vmatmul.mubr.f32.gmra.mxu0 %v369
    %v638 = vpop.f32.mrf.mxu0
    %v639 = vadd.f32 0.0, %v638
    %v640 = vpop.f32.mrf.mxu0
    %641 = vdwg.mxu0
    %vm646 = vcmask 1040384
    %v647 = vrot.slane %v442, 7
    %v648 = vrot.slane %v447, 7
    %v649 = vsel %vm646, %v647, %v648
    %v650 = vrot.slane %v452, 7
    %v651 = vsel %vm646, %v648, %v650
    %v652 = vrot.slane %v457, 7
    %v653 = vsel %vm646, %v650, %v652
    %v658 = vsel %vm646, 0.0, %v647
    %vm663 = vcmask 1046528
    %v664 = vrot.slane %v624, 1
    %v665 = vrot.slane %v629, 1
    %v666 = vsel %vm663, %v664, %v665
    %v667 = vrot.slane %v634, 1
    %v668 = vsel %vm663, %v665, %v667
    %v669 = vrot.slane %v639, 1
    %v670 = vsel %vm663, %v667, %v669
    %v675 = vsel %vm663, %v669, 0.0
    %v676 = vsel %vm347, 1, 0
    %v677 = vsel %vm348, 1, 0
    %v678 = vsel %vm349, 1, 0
    %v679 = vsel %vm350, 1, 0
    %vm680 = vcmp.eq.s32.totalorder %v676, 1
    %vm681 = vcmp.eq.s32.totalorder %v677, 1
    %vm682 = vcmp.eq.s32.totalorder %v678, 1
    %vm683 = vcmp.eq.s32.totalorder %v679, 1
    %v684 = vsel %vm680, %v658, 0.0
    %v685 = vsel %vm681, %v649, 0.0
    %v686 = vsel %vm682, %v651, 0.0
    %v687 = vsel %vm683, %v653, 0.0
    %v688 = vadd.f32 %v684, %v533
    %v689 = vadd.f32 %v685, %v538
    %v690 = vadd.f32 %v686, %v543
    %v691 = vadd.f32 %v687, %v548
    %v692 = vsel %vm351, 1, 0
    %v693 = vsel %vm352, 1, 0
    %v694 = vsel %vm353, 1, 0
    %v695 = vsel %vm354, 1, 0
    %vm696 = vcmp.eq.s32.totalorder %v692, 1
    %vm697 = vcmp.eq.s32.totalorder %v693, 1
    %vm698 = vcmp.eq.s32.totalorder %v694, 1
    %vm699 = vcmp.eq.s32.totalorder %v695, 1
    %v700 = vsel %vm696, %v666, 0.0
    %v701 = vsel %vm697, %v668, 0.0
    %v702 = vsel %vm698, %v670, 0.0
    %v703 = vsel %vm699, %v675, 0.0
    %v704 = vadd.f32 %v688, %v700
    %v705 = vadd.f32 %v689, %v701
    %v706 = vadd.f32 %v690, %v702
    %v707 = vadd.f32 %v691, %v703
    %v708 = vld [vmem:[%s11] sm:$0x1]
    %v710 = vlaneseq
    %v711 = vshrl.u32 %v710, 7
    %v712 = vsub.s32 0, %v711
    %v713 = vrot.slane %v708, %v712
    %v715 = vadd.f32 %v704, %v713
    %v716 = vadd.f32 %v705, %v713
    %v717 = vadd.f32 %v706, %v713
    %v718 = vadd.f32 %v707, %v713
    %vm719 = vcmask 261120
    %v720 = vsel %vm719, %v715, 0.0
    %721 = vadd.xlane.f32.xlu0 %v720
    %v722 = vpop.xlane.xlu0 %721
    %v723 = vsel %vm719, %v716, 0.0
    %724 = vadd.xlane.f32.xlu0 %v723
    %v725 = vpop.xlane.xlu0 %724
    %v726 = vsel %vm719, %v717, 0.0
    %727 = vadd.xlane.f32.xlu0 %v726
    %v728 = vpop.xlane.xlu0 %727
    %v729 = vsel %vm719, %v718, 0.0
    %730 = vadd.xlane.f32.xlu0 %v729
    %v731 = vpop.xlane.xlu0 %730
    %v732 = vrcp.pop 32.0
    %v733 = vmul.f32 %v722, %v732
    %v734 = vmul.f32 %v725, %v732
    %v735 = vmul.f32 %v728, %v732
    %v736 = vmul.f32 %v731, %v732
    %v737 = vsub.f32 %v715, %v733
    %v738 = vsub.f32 %v716, %v734
    %v739 = vsub.f32 %v717, %v735
    %v740 = vsub.f32 %v718, %v736
    %v741 = vmul.f32 %v737, %v737
    %v742 = vmul.f32 %v738, %v738
    %v743 = vmul.f32 %v739, %v739
    %v744 = vmul.f32 %v740, %v740
    %v745 = vsel %vm719, %v741, 0.0
    %746 = vadd.xlane.f32.xlu0 %v745
    %v747 = vpop.xlane.xlu0 %746
    %v748 = vsel %vm719, %v742, 0.0
    %749 = vadd.xlane.f32.xlu0 %v748
    %v750 = vpop.xlane.xlu0 %749
    %v751 = vsel %vm719, %v743, 0.0
    %752 = vadd.xlane.f32.xlu0 %v751
    %v753 = vpop.xlane.xlu0 %752
    %v754 = vsel %vm719, %v744, 0.0
    %755 = vadd.xlane.f32.xlu0 %v754
    %v756 = vpop.xlane.xlu0 %755
    %v757 = vmul.f32 %v747, %v732
    %v758 = vmul.f32 %v750, %v732
    %v759 = vmul.f32 %v753, %v732
    %v760 = vmul.f32 %v756, %v732
    %v761 = vadd.f32 %v757, 1e-06
    %v762 = vadd.f32 %v758, 1e-06
    %v763 = vadd.f32 %v759, 1e-06
    %v764 = vadd.f32 %v760, 1e-06
    %v765 = vrsqrt.pop %v761
    %v766 = vrsqrt.pop %v762
    %v767 = vrsqrt.pop %v763
    %v768 = vrsqrt.pop %v764
    %v769 = vmul.f32 %v737, %v765
    %v770 = vmul.f32 %v738, %v766
    %v771 = vmul.f32 %v739, %v767
    %v772 = vmul.f32 %v740, %v768
    %v773 = vld [vmem:[%s13] sm:$0x1]
    %v775 = vlaneseq
    %v776 = vshrl.u32 %v775, 7
    %v777 = vsub.s32 0, %v776
    %v778 = vrot.slane %v773, %v777
    %v780 = vmul.f32 %v769, %v778
    %v781 = vmul.f32 %v770, %v778
    %v782 = vmul.f32 %v771, %v778
    %v783 = vmul.f32 %v772, %v778
    %v784 = vld [vmem:[#allocation4] sm:$0x1]
    %v786 = vlaneseq
    %v787 = vshrl.u32 %v786, 7
    %v788 = vsub.s32 0, %v787
    %v789 = vrot.slane %v784, %v788
    %v791 = vadd.f32 %v780, %v789
    %v792 = vadd.f32 %v781, %v789
    %v793 = vadd.f32 %v782, %v789
    %v794 = vadd.f32 %v783, %v789
    %v795 = vld [vmem:[%s17] sm:$0xff]
    %v796 = vld [vmem:[%s17 + $0x8] sm:$0xff]
    %v797 = vld [vmem:[%s17 + $0x10] sm:$0xff]
    %v798 = vld [vmem:[%s17 + $0x18] sm:$0xff]
    %v799 = vld [vmem:[#allocation6] sm:$0x1]
    %v801 = vlaneseq
    %v802 = vshrl.u32 %v801, 7
    %v803 = vsub.s32 0, %v802
    %v804 = vrot.slane %v799, %v803
    %v807 = vsel %vm719, %v791, 0
    %v810 = vsel %vm719, %v792, 0
    %v813 = vsel %vm719, %v793, 0
    %v816 = vsel %vm719, %v794, 0
    %818 = vmatprep.subr.mxu0 0.0
    %819 = vmatpush1.msra.mxu0 0.0
    %820 = vmatprep.subr.mxu0 0.0
    %821 = vmatpush1.msra.mxu0 0.0
    %822 = vmatprep.subr.mxu0 0.0
    %823 = vmatpush1.msra.mxu0 0.0
    %824 = vmatprep.subr.mxu0 0.0
    %825 = vmatpush1.msra.mxu0 0.0
    %826 = vmatprep.subr.mxu0 0.0
    %827 = vmatpush1.msra.mxu0 0.0
    %828 = vmatprep.subr.mxu0 0.0
    %829 = vmatpush1.msra.mxu0 0.0
    %830 = vmatprep.subr.mxu0 0.0
    %831 = vmatpush1.msra.mxu0 0.0
    %832 = vmatprep.subr.mxu0 0.0
    %833 = vmatpush1.msra.mxu0 0.0
    %834 = vmatprep.subr.mxu0 0.0
    %835 = vmatpush1.msra.mxu0 0.0
    %836 = vmatprep.subr.mxu0 0.0
    %837 = vmatpush1.msra.mxu0 0.0
    %838 = vmatprep.subr.mxu0 0.0
    %839 = vmatpush1.msra.mxu0 0.0
    %840 = vmatprep.subr.mxu0 0.0
    %841 = vmatpush1.msra.mxu0 0.0
    %842 = vmatprep.subr.mxu0 0.0
    %843 = vmatpush1.msra.mxu0 %v798
    %844 = vmatprep.subr.mxu0 0.0
    %845 = vmatpush1.msra.mxu0 %v797
    %846 = vmatprep.subr.mxu0 0.0
    %847 = vmatpush1.msra.mxu0 %v796
    %848 = vmatprep.subr.mxu0 0.0
    %849 = vmatpush1.msra.mxu0 %v795
    %850 = vmatprep.subr.mxu0 0.0
    %851 = vmatpush2.msra.mxu0 0.0
    %852 = vmatprep.subr.mxu0 0.0
    %853 = vmatpush2.msra.mxu0 0.0
    %854 = vmatprep.subr.mxu0 0.0
    %855 = vmatpush2.msra.mxu0 0.0
    %856 = vmatprep.subr.mxu0 0.0
    %857 = vmatpush2.msra.mxu0 0.0
    %858 = vmatprep.subr.mxu0 0.0
    %859 = vmatpush2.msra.mxu0 0.0
    %860 = vmatprep.subr.mxu0 0.0
    %861 = vmatpush2.msra.mxu0 0.0
    %862 = vmatprep.subr.mxu0 0.0
    %863 = vmatpush2.msra.mxu0 0.0
    %864 = vmatprep.subr.mxu0 0.0
    %865 = vmatpush2.msra.mxu0 0.0
    %866 = vmatprep.subr.mxu0 0.0
    %867 = vmatpush2.msra.mxu0 0.0
    %868 = vmatprep.subr.mxu0 0.0
    %869 = vmatpush2.msra.mxu0 0.0
    %870 = vmatprep.subr.mxu0 0.0
    %871 = vmatpush2.msra.mxu0 0.0
    %872 = vmatprep.subr.mxu0 0.0
    %873 = vmatpush2.msra.mxu0 0.0
    %874 = vmatprep.subr.mxu0 0.0
    %875 = vmatpush2.msra.mxu0 0.0
    %876 = vmatprep.subr.mxu0 0.0
    %877 = vmatpush2.msra.mxu0 0.0
    %878 = vmatprep.subr.mxu0 0.0
    %879 = vmatpush2.msra.mxu0 0.0
    %880 = vmatprep.subr.mxu0 0.0
    %881 = vmatpush2.msra.mxu0 0.0
    %882 = vmatprep.mubr.f32.mxu0 0.0
    %883 = vmatmul.mubr.f32.gmra.mxu0 %v807
    %v884 = vpop.f32.mrf.mxu0
    %v885 = vadd.f32 %v804, %v884
    %v886 = vpop.f32.mrf.mxu0
    %887 = vmatprep.mubr.f32.mxu0 0.0
    %888 = vmatmul.mubr.f32.gmra.mxu0 %v810
    %v889 = vpop.f32.mrf.mxu0
    %v890 = vadd.f32 %v804, %v889
    %v891 = vpop.f32.mrf.mxu0
    %892 = vmatprep.mubr.f32.mxu0 0.0
    %893 = vmatmul.mubr.f32.gmra.mxu0 %v813
    %v894 = vpop.f32.mrf.mxu0
    %v895 = vadd.f32 %v804, %v894
    %v896 = vpop.f32.mrf.mxu0
    %897 = vmatprep.mubr.f32.mxu0 0.0
    %898 = vmatmul.mubr.f32.gmra.mxu0 %v816
    %v899 = vpop.f32.mrf.mxu0
    %v900 = vadd.f32 %v804, %v899
    %v901 = vpop.f32.mrf.mxu0
    %902 = vdwg.mxu0
    %v903 = vmax.f32 %v885, 0.0
    %v904 = vmax.f32 %v890, 0.0
    %v905 = vmax.f32 %v895, 0.0
    %v906 = vmax.f32 %v900, 0.0
    %v907 = vld [vmem:[%s21] sm:$0xff]
    %v908 = vld [vmem:[%s21 + $0x8] sm:$0xff]
    %v909 = vld [vmem:[%s21 + $0x10] sm:$0xff]
    %v910 = vld [vmem:[%s21 + $0x18] sm:$0xff]
    %v912 = vsel %vm719, %v903, 0
    %v915 = vsel %vm719, %v904, 0
    %v918 = vsel %vm719, %v905, 0
    %v921 = vsel %vm719, %v906, 0
    %923 = vmatprep.subr.mxu0 0.0
    %924 = vmatpush1.msra.mxu0 0.0
    %925 = vmatprep.subr.mxu0 0.0
    %926 = vmatpush1.msra.mxu0 0.0
    %927 = vmatprep.subr.mxu0 0.0
    %928 = vmatpush1.msra.mxu0 0.0
    %929 = vmatprep.subr.mxu0 0.0
    %930 = vmatpush1.msra.mxu0 0.0
    %931 = vmatprep.subr.mxu0 0.0
    %932 = vmatpush1.msra.mxu0 0.0
    %933 = vmatprep.subr.mxu0 0.0
    %934 = vmatpush1.msra.mxu0 0.0
    %935 = vmatprep.subr.mxu0 0.0
    %936 = vmatpush1.msra.mxu0 0.0
    %937 = vmatprep.subr.mxu0 0.0
    %938 = vmatpush1.msra.mxu0 0.0
    %939 = vmatprep.subr.mxu0 0.0
    %940 = vmatpush1.msra.mxu0 0.0
    %941 = vmatprep.subr.mxu0 0.0
    %942 = vmatpush1.msra.mxu0 0.0
    %943 = vmatprep.subr.mxu0 0.0
    %944 = vmatpush1.msra.mxu0 0.0
    %945 = vmatprep.subr.mxu0 0.0
    %946 = vmatpush1.msra.mxu0 0.0
    %947 = vmatprep.subr.mxu0 0.0
    %948 = vmatpush1.msra.mxu0 %v910
    %949 = vmatprep.subr.mxu0 0.0
    %950 = vmatpush1.msra.mxu0 %v909
    %951 = vmatprep.subr.mxu0 0.0
    %952 = vmatpush1.msra.mxu0 %v908
    %953 = vmatprep.subr.mxu0 0.0
    %954 = vmatpush1.msra.mxu0 %v907
    %955 = vmatprep.subr.mxu0 0.0
    %956 = vmatpush2.msra.mxu0 0.0
    %957 = vmatprep.subr.mxu0 0.0
    %958 = vmatpush2.msra.mxu0 0.0
    %959 = vmatprep.subr.mxu0 0.0
    %960 = vmatpush2.msra.mxu0 0.0
    %961 = vmatprep.subr.mxu0 0.0
    %962 = vmatpush2.msra.mxu0 0.0
    %963 = vmatprep.subr.mxu0 0.0
    %964 = vmatpush2.msra.mxu0 0.0
    %965 = vmatprep.subr.mxu0 0.0
    %966 = vmatpush2.msra.mxu0 0.0
    %967 = vmatprep.subr.mxu0 0.0
    %968 = vmatpush2.msra.mxu0 0.0
    %969 = vmatprep.subr.mxu0 0.0
    %970 = vmatpush2.msra.mxu0 0.0
    %971 = vmatprep.subr.mxu0 0.0
    %972 = vmatpush2.msra.mxu0 0.0
    %973 = vmatprep.subr.mxu0 0.0
    %974 = vmatpush2.msra.mxu0 0.0
    %975 = vmatprep.subr.mxu0 0.0
    %976 = vmatpush2.msra.mxu0 0.0
    %977 = vmatprep.subr.mxu0 0.0
    %978 = vmatpush2.msra.mxu0 0.0
    %979 = vmatprep.subr.mxu0 0.0
    %980 = vmatpush2.msra.mxu0 0.0
    %981 = vmatprep.subr.mxu0 0.0
    %982 = vmatpush2.msra.mxu0 0.0
    %983 = vmatprep.subr.mxu0 0.0
    %984 = vmatpush2.msra.mxu0 0.0
    %985 = vmatprep.subr.mxu0 0.0
    %986 = vmatpush2.msra.mxu0 0.0
    %987 = vmatprep.mubr.f32.mxu0 0.0
    %988 = vmatmul.mubr.f32.gmra.mxu0 %v912
    %v989 = vpop.f32.mrf.mxu0
    %v990 = vadd.f32 0.0, %v989
    %v991 = vpop.f32.mrf.mxu0
    %992 = vmatprep.mubr.f32.mxu0 0.0
    %993 = vmatmul.mubr.f32.gmra.mxu0 %v915
    %v994 = vpop.f32.mrf.mxu0
    %v995 = vadd.f32 0.0, %v994
    %v996 = vpop.f32.mrf.mxu0
    %997 = vmatprep.mubr.f32.mxu0 0.0
    %998 = vmatmul.mubr.f32.gmra.mxu0 %v918
    %v999 = vpop.f32.mrf.mxu0
    %v1000 = vadd.f32 0.0, %v999
    %v1001 = vpop.f32.mrf.mxu0
    %1002 = vmatprep.mubr.f32.mxu0 0.0
    %1003 = vmatmul.mubr.f32.gmra.mxu0 %v921
    %v1004 = vpop.f32.mrf.mxu0
    %v1005 = vadd.f32 0.0, %v1004
    %v1006 = vpop.f32.mrf.mxu0
    %1007 = vdwg.mxu0
    %v1008 = vld [vmem:[%s23] sm:$0xff]
    %v1009 = vld [vmem:[%s23 + $0x8] sm:$0xff]
    %v1010 = vld [vmem:[%s23 + $0x10] sm:$0xff]
    %v1011 = vld [vmem:[%s23 + $0x18] sm:$0xff]
    %1012 = vmatprep.subr.mxu0 0.0
    %1013 = vmatpush1.msra.mxu0 0.0
    %1014 = vmatprep.subr.mxu0 0.0
    %1015 = vmatpush1.msra.mxu0 0.0
    %1016 = vmatprep.subr.mxu0 0.0
    %1017 = vmatpush1.msra.mxu0 0.0
    %1018 = vmatprep.subr.mxu0 0.0
    %1019 = vmatpush1.msra.mxu0 0.0
    %1020 = vmatprep.subr.mxu0 0.0
    %1021 = vmatpush1.msra.mxu0 0.0
    %1022 = vmatprep.subr.mxu0 0.0
    %1023 = vmatpush1.msra.mxu0 0.0
    %1024 = vmatprep.subr.mxu0 0.0
    %1025 = vmatpush1.msra.mxu0 0.0
    %1026 = vmatprep.subr.mxu0 0.0
    %1027 = vmatpush1.msra.mxu0 0.0
    %1028 = vmatprep.subr.mxu0 0.0
    %1029 = vmatpush1.msra.mxu0 0.0
    %1030 = vmatprep.subr.mxu0 0.0
    %1031 = vmatpush1.msra.mxu0 0.0
    %1032 = vmatprep.subr.mxu0 0.0
    %1033 = vmatpush1.msra.mxu0 0.0
    %1034 = vmatprep.subr.mxu0 0.0
    %1035 = vmatpush1.msra.mxu0 0.0
    %1036 = vmatprep.subr.mxu0 0.0
    %1037 = vmatpush1.msra.mxu0 %v1011
    %1038 = vmatprep.subr.mxu0 0.0
    %1039 = vmatpush1.msra.mxu0 %v1010
    %1040 = vmatprep.subr.mxu0 0.0
    %1041 = vmatpush1.msra.mxu0 %v1009
    %1042 = vmatprep.subr.mxu0 0.0
    %1043 = vmatpush1.msra.mxu0 %v1008
    %1044 = vmatprep.subr.mxu0 0.0
    %1045 = vmatpush2.msra.mxu0 0.0
    %1046 = vmatprep.subr.mxu0 0.0
    %1047 = vmatpush2.msra.mxu0 0.0
    %1048 = vmatprep.subr.mxu0 0.0
    %1049 = vmatpush2.msra.mxu0 0.0
    %1050 = vmatprep.subr.mxu0 0.0
    %1051 = vmatpush2.msra.mxu0 0.0
    %1052 = vmatprep.subr.mxu0 0.0
    %1053 = vmatpush2.msra.mxu0 0.0
    %1054 = vmatprep.subr.mxu0 0.0
    %1055 = vmatpush2.msra.mxu0 0.0
    %1056 = vmatprep.subr.mxu0 0.0
    %1057 = vmatpush2.msra.mxu0 0.0
    %1058 = vmatprep.subr.mxu0 0.0
    %1059 = vmatpush2.msra.mxu0 0.0
    %1060 = vmatprep.subr.mxu0 0.0
    %1061 = vmatpush2.msra.mxu0 0.0
    %1062 = vmatprep.subr.mxu0 0.0
    %1063 = vmatpush2.msra.mxu0 0.0
    %1064 = vmatprep.subr.mxu0 0.0
    %1065 = vmatpush2.msra.mxu0 0.0
    %1066 = vmatprep.subr.mxu0 0.0
    %1067 = vmatpush2.msra.mxu0 0.0
    %1068 = vmatprep.subr.mxu0 0.0
    %1069 = vmatpush2.msra.mxu0 0.0
    %1070 = vmatprep.subr.mxu0 0.0
    %1071 = vmatpush2.msra.mxu0 0.0
    %1072 = vmatprep.subr.mxu0 0.0
    %1073 = vmatpush2.msra.mxu0 0.0
    %1074 = vmatprep.subr.mxu0 0.0
    %1075 = vmatpush2.msra.mxu0 0.0
    %1076 = vmatprep.mubr.f32.mxu0 0.0
    %1077 = vmatmul.mubr.f32.gmra.mxu0 %v912
    %v1078 = vpop.f32.mrf.mxu0
    %v1079 = vadd.f32 0.0, %v1078
    %v1080 = vpop.f32.mrf.mxu0
    %1081 = vmatprep.mubr.f32.mxu0 0.0
    %1082 = vmatmul.mubr.f32.gmra.mxu0 %v915
    %v1083 = vpop.f32.mrf.mxu0
    %v1084 = vadd.f32 0.0, %v1083
    %v1085 = vpop.f32.mrf.mxu0
    %1086 = vmatprep.mubr.f32.mxu0 0.0
    %1087 = vmatmul.mubr.f32.gmra.mxu0 %v918
    %v1088 = vpop.f32.mrf.mxu0
    %v1089 = vadd.f32 0.0, %v1088
    %v1090 = vpop.f32.mrf.mxu0
    %1091 = vmatprep.mubr.f32.mxu0 0.0
    %1092 = vmatmul.mubr.f32.gmra.mxu0 %v921
    %v1093 = vpop.f32.mrf.mxu0
    %v1094 = vadd.f32 0.0, %v1093
    %v1095 = vpop.f32.mrf.mxu0
    %1096 = vdwg.mxu0
    %v1097 = vld [vmem:[%s25] sm:$0xff]
    %v1098 = vld [vmem:[%s25 + $0x8] sm:$0xff]
    %v1099 = vld [vmem:[%s25 + $0x10] sm:$0xff]
    %v1100 = vld [vmem:[%s25 + $0x18] sm:$0xff]
    %1101 = vmatprep.subr.mxu0 0.0
    %1102 = vmatpush1.msra.mxu0 0.0
    %1103 = vmatprep.subr.mxu0 0.0
    %1104 = vmatpush1.msra.mxu0 0.0
    %1105 = vmatprep.subr.mxu0 0.0
    %1106 = vmatpush1.msra.mxu0 0.0
    %1107 = vmatprep.subr.mxu0 0.0
    %1108 = vmatpush1.msra.mxu0 0.0
    %1109 = vmatprep.subr.mxu0 0.0
    %1110 = vmatpush1.msra.mxu0 0.0
    %1111 = vmatprep.subr.mxu0 0.0
    %1112 = vmatpush1.msra.mxu0 0.0
    %1113 = vmatprep.subr.mxu0 0.0
    %1114 = vmatpush1.msra.mxu0 0.0
    %1115 = vmatprep.subr.mxu0 0.0
    %1116 = vmatpush1.msra.mxu0 0.0
    %1117 = vmatprep.subr.mxu0 0.0
    %1118 = vmatpush1.msra.mxu0 0.0
    %1119 = vmatprep.subr.mxu0 0.0
    %1120 = vmatpush1.msra.mxu0 0.0
    %1121 = vmatprep.subr.mxu0 0.0
    %1122 = vmatpush1.msra.mxu0 0.0
    %1123 = vmatprep.subr.mxu0 0.0
    %1124 = vmatpush1.msra.mxu0 0.0
    %1125 = vmatprep.subr.mxu0 0.0
    %1126 = vmatpush1.msra.mxu0 %v1100
    %1127 = vmatprep.subr.mxu0 0.0
    %1128 = vmatpush1.msra.mxu0 %v1099
    %1129 = vmatprep.subr.mxu0 0.0
    %1130 = vmatpush1.msra.mxu0 %v1098
    %1131 = vmatprep.subr.mxu0 0.0
    %1132 = vmatpush1.msra.mxu0 %v1097
    %1133 = vmatprep.subr.mxu0 0.0
    %1134 = vmatpush2.msra.mxu0 0.0
    %1135 = vmatprep.subr.mxu0 0.0
    %1136 = vmatpush2.msra.mxu0 0.0
    %1137 = vmatprep.subr.mxu0 0.0
    %1138 = vmatpush2.msra.mxu0 0.0
    %1139 = vmatprep.subr.mxu0 0.0
    %1140 = vmatpush2.msra.mxu0 0.0
    %1141 = vmatprep.subr.mxu0 0.0
    %1142 = vmatpush2.msra.mxu0 0.0
    %1143 = vmatprep.subr.mxu0 0.0
    %1144 = vmatpush2.msra.mxu0 0.0
    %1145 = vmatprep.subr.mxu0 0.0
    %1146 = vmatpush2.msra.mxu0 0.0
    %1147 = vmatprep.subr.mxu0 0.0
    %1148 = vmatpush2.msra.mxu0 0.0
    %1149 = vmatprep.subr.mxu0 0.0
    %1150 = vmatpush2.msra.mxu0 0.0
    %1151 = vmatprep.subr.mxu0 0.0
    %1152 = vmatpush2.msra.mxu0 0.0
    %1153 = vmatprep.subr.mxu0 0.0
    %1154 = vmatpush2.msra.mxu0 0.0
    %1155 = vmatprep.subr.mxu0 0.0
    %1156 = vmatpush2.msra.mxu0 0.0
    %1157 = vmatprep.subr.mxu0 0.0
    %1158 = vmatpush2.msra.mxu0 0.0
    %1159 = vmatprep.subr.mxu0 0.0
    %1160 = vmatpush2.msra.mxu0 0.0
    %1161 = vmatprep.subr.mxu0 0.0
    %1162 = vmatpush2.msra.mxu0 0.0
    %1163 = vmatprep.subr.mxu0 0.0
    %1164 = vmatpush2.msra.mxu0 0.0
    %1165 = vmatprep.mubr.f32.mxu0 0.0
    %1166 = vmatmul.mubr.f32.gmra.mxu0 %v912
    %v1167 = vpop.f32.mrf.mxu0
    %v1168 = vadd.f32 0.0, %v1167
    %v1169 = vpop.f32.mrf.mxu0
    %1170 = vmatprep.mubr.f32.mxu0 0.0
    %1171 = vmatmul.mubr.f32.gmra.mxu0 %v915
    %v1172 = vpop.f32.mrf.mxu0
    %v1173 = vadd.f32 0.0, %v1172
    %v1174 = vpop.f32.mrf.mxu0
    %1175 = vmatprep.mubr.f32.mxu0 0.0
    %1176 = vmatmul.mubr.f32.gmra.mxu0 %v918
    %v1177 = vpop.f32.mrf.mxu0
    %v1178 = vadd.f32 0.0, %v1177
    %v1179 = vpop.f32.mrf.mxu0
    %1180 = vmatprep.mubr.f32.mxu0 0.0
    %1181 = vmatmul.mubr.f32.gmra.mxu0 %v921
    %v1182 = vpop.f32.mrf.mxu0
    %v1183 = vadd.f32 0.0, %v1182
    %v1184 = vpop.f32.mrf.mxu0
    %1185 = vdwg.mxu0
    %v1190 = vrot.slane %v990, 7
    %v1191 = vrot.slane %v995, 7
    %v1192 = vsel %vm646, %v1190, %v1191
    %v1193 = vrot.slane %v1000, 7
    %v1194 = vsel %vm646, %v1191, %v1193
    %v1195 = vrot.slane %v1005, 7
    %v1196 = vsel %vm646, %v1193, %v1195
    %v1201 = vsel %vm646, 0.0, %v1190
    %v1206 = vrot.slane %v1168, 1
    %v1207 = vrot.slane %v1173, 1
    %v1208 = vsel %vm663, %v1206, %v1207
    %v1209 = vrot.slane %v1178, 1
    %v1210 = vsel %vm663, %v1207, %v1209
    %v1211 = vrot.slane %v1183, 1
    %v1212 = vsel %vm663, %v1209, %v1211
    %v1217 = vsel %vm663, %v1211, 0.0
    %v1218 = vsel %vm680, %v1201, 0.0
    %v1219 = vsel %vm681, %v1192, 0.0
    %v1220 = vsel %vm682, %v1194, 0.0
    %v1221 = vsel %vm683, %v1196, 0.0
    %v1222 = vadd.f32 %v1218, %v1079
    %v1223 = vadd.f32 %v1219, %v1084
    %v1224 = vadd.f32 %v1220, %v1089
    %v1225 = vadd.f32 %v1221, %v1094
    %v1226 = vsel %vm696, %v1208, 0.0
    %v1227 = vsel %vm697, %v1210, 0.0
    %v1228 = vsel %vm698, %v1212, 0.0
    %v1229 = vsel %vm699, %v1217, 0.0
    %v1230 = vadd.f32 %v1222, %v1226
    %v1231 = vadd.f32 %v1223, %v1227
    %v1232 = vadd.f32 %v1224, %v1228
    %v1233 = vadd.f32 %v1225, %v1229
    %v1234 = vld [vmem:[%s27] sm:$0x1]
    %v1236 = vlaneseq
    %v1237 = vshrl.u32 %v1236, 7
    %v1238 = vsub.s32 0, %v1237
    %v1239 = vrot.slane %v1234, %v1238
    %v1241 = vadd.f32 %v1230, %v1239
    %v1242 = vadd.f32 %v1231, %v1239
    %v1243 = vadd.f32 %v1232, %v1239
    %v1244 = vadd.f32 %v1233, %v1239
    %v1245 = vsel %vm719, %v1241, 0.0
    %1246 = vadd.xlane.f32.xlu0 %v1245
    %v1247 = vpop.xlane.xlu0 %1246
    %v1248 = vsel %vm719, %v1242, 0.0
    %1249 = vadd.xlane.f32.xlu0 %v1248
    %v1250 = vpop.xlane.xlu0 %1249
    %v1251 = vsel %vm719, %v1243, 0.0
    %1252 = vadd.xlane.f32.xlu0 %v1251
    %v1253 = vpop.xlane.xlu0 %1252
    %v1254 = vsel %vm719, %v1244, 0.0
    %1255 = vadd.xlane.f32.xlu0 %v1254
    %v1256 = vpop.xlane.xlu0 %1255
    %v1257 = vmul.f32 %v1247, %v732
    %v1258 = vmul.f32 %v1250, %v732
    %v1259 = vmul.f32 %v1253, %v732
    %v1260 = vmul.f32 %v1256, %v732
    %v1261 = vsub.f32 %v1241, %v1257
    %v1262 = vsub.f32 %v1242, %v1258
    %v1263 = vsub.f32 %v1243, %v1259
    %v1264 = vsub.f32 %v1244, %v1260
    %v1265 = vmul.f32 %v1261, %v1261
    %v1266 = vmul.f32 %v1262, %v1262
    %v1267 = vmul.f32 %v1263, %v1263
    %v1268 = vmul.f32 %v1264, %v1264
    %v1269 = vsel %vm719, %v1265, 0.0
    %1270 = vadd.xlane.f32.xlu0 %v1269
    %v1271 = vpop.xlane.xlu0 %1270
    %v1272 = vsel %vm719, %v1266, 0.0
    %1273 = vadd.xlane.f32.xlu0 %v1272
    %v1274 = vpop.xlane.xlu0 %1273
    %v1275 = vsel %vm719, %v1267, 0.0
    %1276 = vadd.xlane.f32.xlu0 %v1275
    %v1277 = vpop.xlane.xlu0 %1276
    %v1278 = vsel %vm719, %v1268, 0.0
    %1279 = vadd.xlane.f32.xlu0 %v1278
    %v1280 = vpop.xlane.xlu0 %1279
    %v1281 = vmul.f32 %v1271, %v732
    %v1282 = vmul.f32 %v1274, %v732
    %v1283 = vmul.f32 %v1277, %v732
    %v1284 = vmul.f32 %v1280, %v732
    %v1285 = vadd.f32 %v1281, 1e-06
    %v1286 = vadd.f32 %v1282, 1e-06
    %v1287 = vadd.f32 %v1283, 1e-06
    %v1288 = vadd.f32 %v1284, 1e-06
    %v1289 = vrsqrt.pop %v1285
    %v1290 = vrsqrt.pop %v1286
    %v1291 = vrsqrt.pop %v1287
    %v1292 = vrsqrt.pop %v1288
    %v1293 = vmul.f32 %v1261, %v1289
    %v1294 = vmul.f32 %v1262, %v1290
    %v1295 = vmul.f32 %v1263, %v1291
    %v1296 = vmul.f32 %v1264, %v1292
    %v1297 = vld [vmem:[#allocation7] sm:$0x1]
    %v1299 = vlaneseq
    %v1300 = vshrl.u32 %v1299, 7
    %v1301 = vsub.s32 0, %v1300
    %v1302 = vrot.slane %v1297, %v1301
    %v1304 = vmul.f32 %v1293, %v1302
    %v1305 = vmul.f32 %v1294, %v1302
    %v1306 = vmul.f32 %v1295, %v1302
    %v1307 = vmul.f32 %v1296, %v1302
    %v1308 = vld [vmem:[#allocation9] sm:$0x1]
    %v1310 = vlaneseq
    %v1311 = vshrl.u32 %v1310, 7
    %v1312 = vsub.s32 0, %v1311
    %v1313 = vrot.slane %v1308, %v1312
    %v1315 = vadd.f32 %v1304, %v1313
    %v1316 = vadd.f32 %v1305, %v1313
    %v1317 = vadd.f32 %v1306, %v1313
    %v1318 = vadd.f32 %v1307, %v1313
    %v1319 = vld [vmem:[%s33] sm:$0xff]
    %v1320 = vld [vmem:[%s33 + $0x8] sm:$0xff]
    %v1321 = vld [vmem:[%s33 + $0x10] sm:$0xff]
    %v1322 = vld [vmem:[%s33 + $0x18] sm:$0xff]
    %v1323 = vld [vmem:[#allocation10] sm:$0x1]
    %v1325 = vlaneseq
    %v1326 = vshrl.u32 %v1325, 7
    %v1327 = vsub.s32 0, %v1326
    %v1328 = vrot.slane %v1323, %v1327
    %v1331 = vsel %vm719, %v1315, 0
    %v1334 = vsel %vm719, %v1316, 0
    %v1337 = vsel %vm719, %v1317, 0
    %v1340 = vsel %vm719, %v1318, 0
    %1342 = vmatprep.subr.mxu0 0.0
    %1343 = vmatpush1.msra.mxu0 0.0
    %1344 = vmatprep.subr.mxu0 0.0
    %1345 = vmatpush1.msra.mxu0 0.0
    %1346 = vmatprep.subr.mxu0 0.0
    %1347 = vmatpush1.msra.mxu0 0.0
    %1348 = vmatprep.subr.mxu0 0.0
    %1349 = vmatpush1.msra.mxu0 0.0
    %1350 = vmatprep.subr.mxu0 0.0
    %1351 = vmatpush1.msra.mxu0 0.0
    %1352 = vmatprep.subr.mxu0 0.0
    %1353 = vmatpush1.msra.mxu0 0.0
    %1354 = vmatprep.subr.mxu0 0.0
    %1355 = vmatpush1.msra.mxu0 0.0
    %1356 = vmatprep.subr.mxu0 0.0
    %1357 = vmatpush1.msra.mxu0 0.0
    %1358 = vmatprep.subr.mxu0 0.0
    %1359 = vmatpush1.msra.mxu0 0.0
    %1360 = vmatprep.subr.mxu0 0.0
    %1361 = vmatpush1.msra.mxu0 0.0
    %1362 = vmatprep.subr.mxu0 0.0
    %1363 = vmatpush1.msra.mxu0 0.0
    %1364 = vmatprep.subr.mxu0 0.0
    %1365 = vmatpush1.msra.mxu0 0.0
    %1366 = vmatprep.subr.mxu0 0.0
    %1367 = vmatpush1.msra.mxu0 %v1322
    %1368 = vmatprep.subr.mxu0 0.0
    %1369 = vmatpush1.msra.mxu0 %v1321
    %1370 = vmatprep.subr.mxu0 0.0
    %1371 = vmatpush1.msra.mxu0 %v1320
    %1372 = vmatprep.subr.mxu0 0.0
    %1373 = vmatpush1.msra.mxu0 %v1319
    %1374 = vmatprep.subr.mxu0 0.0
    %1375 = vmatpush2.msra.mxu0 0.0
    %1376 = vmatprep.subr.mxu0 0.0
    %1377 = vmatpush2.msra.mxu0 0.0
    %1378 = vmatprep.subr.mxu0 0.0
    %1379 = vmatpush2.msra.mxu0 0.0
    %1380 = vmatprep.subr.mxu0 0.0
    %1381 = vmatpush2.msra.mxu0 0.0
    %1382 = vmatprep.subr.mxu0 0.0
    %1383 = vmatpush2.msra.mxu0 0.0
    %1384 = vmatprep.subr.mxu0 0.0
    %1385 = vmatpush2.msra.mxu0 0.0
    %1386 = vmatprep.subr.mxu0 0.0
    %1387 = vmatpush2.msra.mxu0 0.0
    %1388 = vmatprep.subr.mxu0 0.0
    %1389 = vmatpush2.msra.mxu0 0.0
    %1390 = vmatprep.subr.mxu0 0.0
    %1391 = vmatpush2.msra.mxu0 0.0
    %1392 = vmatprep.subr.mxu0 0.0
    %1393 = vmatpush2.msra.mxu0 0.0
    %1394 = vmatprep.subr.mxu0 0.0
    %1395 = vmatpush2.msra.mxu0 0.0
    %1396 = vmatprep.subr.mxu0 0.0
    %1397 = vmatpush2.msra.mxu0 0.0
    %1398 = vmatprep.subr.mxu0 0.0
    %1399 = vmatpush2.msra.mxu0 0.0
    %1400 = vmatprep.subr.mxu0 0.0
    %1401 = vmatpush2.msra.mxu0 0.0
    %1402 = vmatprep.subr.mxu0 0.0
    %1403 = vmatpush2.msra.mxu0 0.0
    %1404 = vmatprep.subr.mxu0 0.0
    %1405 = vmatpush2.msra.mxu0 0.0
    %1406 = vmatprep.mubr.f32.mxu0 0.0
    %1407 = vmatmul.mubr.f32.gmra.mxu0 %v1331
    %v1408 = vpop.f32.mrf.mxu0
    %v1409 = vadd.f32 %v1328, %v1408
    %v1410 = vpop.f32.mrf.mxu0
    %1411 = vmatprep.mubr.f32.mxu0 0.0
    %1412 = vmatmul.mubr.f32.gmra.mxu0 %v1334
    %v1413 = vpop.f32.mrf.mxu0
    %v1414 = vadd.f32 %v1328, %v1413
    %v1415 = vpop.f32.mrf.mxu0
    %1416 = vmatprep.mubr.f32.mxu0 0.0
    %1417 = vmatmul.mubr.f32.gmra.mxu0 %v1337
    %v1418 = vpop.f32.mrf.mxu0
    %v1419 = vadd.f32 %v1328, %v1418
    %v1420 = vpop.f32.mrf.mxu0
    %1421 = vmatprep.mubr.f32.mxu0 0.0
    %1422 = vmatmul.mubr.f32.gmra.mxu0 %v1340
    %v1423 = vpop.f32.mrf.mxu0
    %v1424 = vadd.f32 %v1328, %v1423
    %v1425 = vpop.f32.mrf.mxu0
    %1426 = vdwg.mxu0
    %v1427 = vadd.f32 %v1409, %v903
    %v1428 = vadd.f32 %v1414, %v904
    %v1429 = vadd.f32 %v1419, %v905
    %v1430 = vadd.f32 %v1424, %v906
    %v1431 = vmax.f32 %v1427, 0.0
    %v1432 = vmax.f32 %v1428, 0.0
    %v1433 = vmax.f32 %v1429, 0.0
    %v1434 = vmax.f32 %v1430, 0.0
    %v1435 = vld [vmem:[%s37] sm:$0xff]
    %v1436 = vld [vmem:[%s37 + $0x8] sm:$0xff]
    %v1437 = vld [vmem:[%s37 + $0x10] sm:$0xff]
    %v1438 = vld [vmem:[%s37 + $0x18] sm:$0xff]
    %v1439 = vld [vmem:[%s39] sm:$0x1]
    %v1441 = vlaneseq
    %v1442 = vshrl.u32 %v1441, 7
    %v1443 = vsub.s32 0, %v1442
    %v1444 = vrot.slane %v1439, %v1443
    %v1447 = vsel %vm719, %v1431, 0
    %v1450 = vsel %vm719, %v1432, 0
    %v1453 = vsel %vm719, %v1433, 0
    %v1456 = vsel %vm719, %v1434, 0
    %1458 = vmatprep.subr.mxu0 0.0
    %1459 = vmatpush1.msra.mxu0 0.0
    %1460 = vmatprep.subr.mxu0 0.0
    %1461 = vmatpush1.msra.mxu0 0.0
    %1462 = vmatprep.subr.mxu0 0.0
    %1463 = vmatpush1.msra.mxu0 0.0
    %1464 = vmatprep.subr.mxu0 0.0
    %1465 = vmatpush1.msra.mxu0 0.0
    %1466 = vmatprep.subr.mxu0 0.0
    %1467 = vmatpush1.msra.mxu0 0.0
    %1468 = vmatprep.subr.mxu0 0.0
    %1469 = vmatpush1.msra.mxu0 0.0
    %1470 = vmatprep.subr.mxu0 0.0
    %1471 = vmatpush1.msra.mxu0 0.0
    %1472 = vmatprep.subr.mxu0 0.0
    %1473 = vmatpush1.msra.mxu0 0.0
    %1474 = vmatprep.subr.mxu0 0.0
    %1475 = vmatpush1.msra.mxu0 0.0
    %1476 = vmatprep.subr.mxu0 0.0
    %1477 = vmatpush1.msra.mxu0 0.0
    %1478 = vmatprep.subr.mxu0 0.0
    %1479 = vmatpush1.msra.mxu0 0.0
    %1480 = vmatprep.subr.mxu0 0.0
    %1481 = vmatpush1.msra.mxu0 0.0
    %1482 = vmatprep.subr.mxu0 0.0
    %1483 = vmatpush1.msra.mxu0 %v1438
    %1484 = vmatprep.subr.mxu0 0.0
    %1485 = vmatpush1.msra.mxu0 %v1437
    %1486 = vmatprep.subr.mxu0 0.0
    %1487 = vmatpush1.msra.mxu0 %v1436
    %1488 = vmatprep.subr.mxu0 0.0
    %1489 = vmatpush1.msra.mxu0 %v1435
    %1490 = vmatprep.subr.mxu0 0.0
    %1491 = vmatpush2.msra.mxu0 0.0
    %1492 = vmatprep.subr.mxu0 0.0
    %1493 = vmatpush2.msra.mxu0 0.0
    %1494 = vmatprep.subr.mxu0 0.0
    %1495 = vmatpush2.msra.mxu0 0.0
    %1496 = vmatprep.subr.mxu0 0.0
    %1497 = vmatpush2.msra.mxu0 0.0
    %1498 = vmatprep.subr.mxu0 0.0
    %1499 = vmatpush2.msra.mxu0 0.0
    %1500 = vmatprep.subr.mxu0 0.0
    %1501 = vmatpush2.msra.mxu0 0.0
    %1502 = vmatprep.subr.mxu0 0.0
    %1503 = vmatpush2.msra.mxu0 0.0
    %1504 = vmatprep.subr.mxu0 0.0
    %1505 = vmatpush2.msra.mxu0 0.0
    %1506 = vmatprep.subr.mxu0 0.0
    %1507 = vmatpush2.msra.mxu0 0.0
    %1508 = vmatprep.subr.mxu0 0.0
    %1509 = vmatpush2.msra.mxu0 0.0
    %1510 = vmatprep.subr.mxu0 0.0
    %1511 = vmatpush2.msra.mxu0 0.0
    %1512 = vmatprep.subr.mxu0 0.0
    %1513 = vmatpush2.msra.mxu0 0.0
    %1514 = vmatprep.subr.mxu0 0.0
    %1515 = vmatpush2.msra.mxu0 0.0
    %1516 = vmatprep.subr.mxu0 0.0
    %1517 = vmatpush2.msra.mxu0 0.0
    %1518 = vmatprep.subr.mxu0 0.0
    %1519 = vmatpush2.msra.mxu0 0.0
    %1520 = vmatprep.subr.mxu0 0.0
    %1521 = vmatpush2.msra.mxu0 0.0
    %1522 = vmatprep.mubr.f32.mxu0 0.0
    %1523 = vmatmul.mubr.f32.gmra.mxu0 %v1447
    %v1524 = vpop.f32.mrf.mxu0
    %v1525 = vadd.f32 %v1444, %v1524
    %v1526 = vpop.f32.mrf.mxu0
    %1527 = vmatprep.mubr.f32.mxu0 0.0
    %1528 = vmatmul.mubr.f32.gmra.mxu0 %v1450
    %v1529 = vpop.f32.mrf.mxu0
    %v1530 = vadd.f32 %v1444, %v1529
    %v1531 = vpop.f32.mrf.mxu0
    %1532 = vmatprep.mubr.f32.mxu0 0.0
    %1533 = vmatmul.mubr.f32.gmra.mxu0 %v1453
    %v1534 = vpop.f32.mrf.mxu0
    %v1535 = vadd.f32 %v1444, %v1534
    %v1536 = vpop.f32.mrf.mxu0
    %1537 = vmatprep.mubr.f32.mxu0 0.0
    %1538 = vmatmul.mubr.f32.gmra.mxu0 %v1456
    %v1539 = vpop.f32.mrf.mxu0
    %v1540 = vadd.f32 %v1444, %v1539
    %v1541 = vpop.f32.mrf.mxu0
    %1542 = vdwg.mxu0
    %v1543 = vld [vmem:[%s41] sm:$0xff]
    %v1544 = vld [vmem:[%s41 + $0x8] sm:$0xff]
    %v1545 = vld [vmem:[%s41 + $0x10] sm:$0xff]
    %v1546 = vld [vmem:[%s41 + $0x18] sm:$0xff]
    %v1547 = vld [vmem:[%s43] sm:$0xff]
    %v1548 = vld [vmem:[%s43 + $0x8] sm:$0x1]
    %vm1549 = vcmask 72704
    %v1551 = vsel %vm1549, %v286, 0
    %v1554 = vsel %vm1549, %v287, 0
    %v1557 = vsel %vm1549, %v288, 0
    %v1560 = vsel %vm1549, %v289, 0
    %v1563 = vsel %vm646, %v1548, 0
    %1565 = vmatprep.subr.mxu0 0.0
    %1566 = vmatpush1.msra.mxu0 0.0
    %1567 = vmatprep.subr.mxu0 0.0
    %1568 = vmatpush1.msra.mxu0 0.0
    %1569 = vmatprep.subr.mxu0 0.0
    %1570 = vmatpush1.msra.mxu0 0.0
    %1571 = vmatprep.subr.mxu0 0.0
    %1572 = vmatpush1.msra.mxu0 0.0
    %1573 = vmatprep.subr.mxu0 0.0
    %1574 = vmatpush1.msra.mxu0 0.0
    %1575 = vmatprep.subr.mxu0 0.0
    %1576 = vmatpush1.msra.mxu0 0.0
    %1577 = vmatprep.subr.mxu0 0.0
    %1578 = vmatpush1.msra.mxu0 0.0
    %1579 = vmatprep.subr.mxu0 0.0
    %1580 = vmatpush1.msra.mxu0 0.0
    %1581 = vmatprep.subr.mxu0 0.0
    %1582 = vmatpush1.msra.mxu0 0.0
    %1583 = vmatprep.subr.mxu0 0.0
    %1584 = vmatpush1.msra.mxu0 0.0
    %1585 = vmatprep.subr.mxu0 0.0
    %1586 = vmatpush1.msra.mxu0 0.0
    %1587 = vmatprep.subr.mxu0 0.0
    %1588 = vmatpush1.msra.mxu0 0.0
    %1589 = vmatprep.subr.mxu0 0.0
    %1590 = vmatpush1.msra.mxu0 0.0
    %1591 = vmatprep.subr.mxu0 0.0
    %1592 = vmatpush1.msra.mxu0 0.0
    %1593 = vmatprep.subr.mxu0 0.0
    %1594 = vmatpush1.msra.mxu0 %v1563
    %1595 = vmatprep.subr.mxu0 0.0
    %1596 = vmatpush1.msra.mxu0 %v1547
    %1597 = vmatprep.subr.mxu0 0.0
    %1598 = vmatpush2.msra.mxu0 0.0
    %1599 = vmatprep.subr.mxu0 0.0
    %1600 = vmatpush2.msra.mxu0 0.0
    %1601 = vmatprep.subr.mxu0 0.0
    %1602 = vmatpush2.msra.mxu0 0.0
    %1603 = vmatprep.subr.mxu0 0.0
    %1604 = vmatpush2.msra.mxu0 0.0
    %1605 = vmatprep.subr.mxu0 0.0
    %1606 = vmatpush2.msra.mxu0 0.0
    %1607 = vmatprep.subr.mxu0 0.0
    %1608 = vmatpush2.msra.mxu0 0.0
    %1609 = vmatprep.subr.mxu0 0.0
    %1610 = vmatpush2.msra.mxu0 0.0
    %1611 = vmatprep.subr.mxu0 0.0
    %1612 = vmatpush2.msra.mxu0 0.0
    %1613 = vmatprep.subr.mxu0 0.0
    %1614 = vmatpush2.msra.mxu0 0.0
    %1615 = vmatprep.subr.mxu0 0.0
    %1616 = vmatpush2.msra.mxu0 0.0
    %1617 = vmatprep.subr.mxu0 0.0
    %1618 = vmatpush2.msra.mxu0 0.0
    %1619 = vmatprep.subr.mxu0 0.0
    %1620 = vmatpush2.msra.mxu0 0.0
    %1621 = vmatprep.subr.mxu0 0.0
    %1622 = vmatpush2.msra.mxu0 0.0
    %1623 = vmatprep.subr.mxu0 0.0
    %1624 = vmatpush2.msra.mxu0 0.0
    %1625 = vmatprep.subr.mxu0 0.0
    %1626 = vmatpush2.msra.mxu0 0.0
    %1627 = vmatprep.subr.mxu0 0.0
    %1628 = vmatpush2.msra.mxu0 0.0
    %1629 = vmatprep.mubr.f32.mxu0 0.0
    %1630 = vmatmul.mubr.f32.gmra.mxu0 %v1551
    %v1631 = vpop.f32.mrf.mxu0
    %v1632 = vadd.f32 0.0, %v1631
    %v1633 = vpop.f32.mrf.mxu0
    %1634 = vmatprep.mubr.f32.mxu0 0.0
    %1635 = vmatmul.mubr.f32.gmra.mxu0 %v1554
    %v1636 = vpop.f32.mrf.mxu0
    %v1637 = vadd.f32 0.0, %v1636
    %v1638 = vpop.f32.mrf.mxu0
    %1639 = vmatprep.mubr.f32.mxu0 0.0
    %1640 = vmatmul.mubr.f32.gmra.mxu0 %v1557
    %v1641 = vpop.f32.mrf.mxu0
    %v1642 = vadd.f32 0.0, %v1641
    %v1643 = vpop.f32.mrf.mxu0
    %1644 = vmatprep.mubr.f32.mxu0 0.0
    %1645 = vmatmul.mubr.f32.gmra.mxu0 %v1560
    %v1646 = vpop.f32.mrf.mxu0
    %v1647 = vadd.f32 0.0, %v1646
    %v1648 = vpop.f32.mrf.mxu0
    %1649 = vdwg.mxu0
    %v1651 = vsel %vm719, %v1525, 0
    %v1654 = vsel %vm719, %v1530, 0
    %v1657 = vsel %vm719, %v1535, 0
    %v1660 = vsel %vm719, %v1540, 0
    %1662 = vmatprep.subr.mxu0 0.0
    %1663 = vmatpush1.msra.mxu0 0.0
    %1664 = vmatprep.subr.mxu0 0.0
    %1665 = vmatpush1.msra.mxu0 0.0
    %1666 = vmatprep.subr.mxu0 0.0
    %1667 = vmatpush1.msra.mxu0 0.0
    %1668 = vmatprep.subr.mxu0 0.0
    %1669 = vmatpush1.msra.mxu0 0.0
    %1670 = vmatprep.subr.mxu0 0.0
    %1671 = vmatpush1.msra.mxu0 0.0
    %1672 = vmatprep.subr.mxu0 0.0
    %1673 = vmatpush1.msra.mxu0 0.0
    %1674 = vmatprep.subr.mxu0 0.0
    %1675 = vmatpush1.msra.mxu0 0.0
    %1676 = vmatprep.subr.mxu0 0.0
    %1677 = vmatpush1.msra.mxu0 0.0
    %1678 = vmatprep.subr.mxu0 0.0
    %1679 = vmatpush1.msra.mxu0 0.0
    %1680 = vmatprep.subr.mxu0 0.0
    %1681 = vmatpush1.msra.mxu0 0.0
    %1682 = vmatprep.subr.mxu0 0.0
    %1683 = vmatpush1.msra.mxu0 0.0
    %1684 = vmatprep.subr.mxu0 0.0
    %1685 = vmatpush1.msra.mxu0 0.0
    %1686 = vmatprep.subr.mxu0 0.0
    %1687 = vmatpush1.msra.mxu0 %v1546
    %1688 = vmatprep.subr.mxu0 0.0
    %1689 = vmatpush1.msra.mxu0 %v1545
    %1690 = vmatprep.subr.mxu0 0.0
    %1691 = vmatpush1.msra.mxu0 %v1544
    %1692 = vmatprep.subr.mxu0 0.0
    %1693 = vmatpush1.msra.mxu0 %v1543
    %1694 = vmatprep.subr.mxu0 0.0
    %1695 = vmatpush2.msra.mxu0 0.0
    %1696 = vmatprep.subr.mxu0 0.0
    %1697 = vmatpush2.msra.mxu0 0.0
    %1698 = vmatprep.subr.mxu0 0.0
    %1699 = vmatpush2.msra.mxu0 0.0
    %1700 = vmatprep.subr.mxu0 0.0
    %1701 = vmatpush2.msra.mxu0 0.0
    %1702 = vmatprep.subr.mxu0 0.0
    %1703 = vmatpush2.msra.mxu0 0.0
    %1704 = vmatprep.subr.mxu0 0.0
    %1705 = vmatpush2.msra.mxu0 0.0
    %1706 = vmatprep.subr.mxu0 0.0
    %1707 = vmatpush2.msra.mxu0 0.0
    %1708 = vmatprep.subr.mxu0 0.0
    %1709 = vmatpush2.msra.mxu0 0.0
    %1710 = vmatprep.subr.mxu0 0.0
    %1711 = vmatpush2.msra.mxu0 0.0
    %1712 = vmatprep.subr.mxu0 0.0
    %1713 = vmatpush2.msra.mxu0 0.0
    %1714 = vmatprep.subr.mxu0 0.0
    %1715 = vmatpush2.msra.mxu0 0.0
    %1716 = vmatprep.subr.mxu0 0.0
    %1717 = vmatpush2.msra.mxu0 0.0
    %1718 = vmatprep.subr.mxu0 0.0
    %1719 = vmatpush2.msra.mxu0 0.0
    %1720 = vmatprep.subr.mxu0 0.0
    %1721 = vmatpush2.msra.mxu0 0.0
    %1722 = vmatprep.subr.mxu0 0.0
    %1723 = vmatpush2.msra.mxu0 0.0
    %1724 = vmatprep.subr.mxu0 0.0
    %1725 = vmatpush2.msra.mxu0 0.0
    %1726 = vmatprep.mubr.f32.mxu0 0.0
    %1727 = vmatmul.mubr.f32.gmra.mxu0 %v1651
    %v1728 = vpop.f32.mrf.mxu0
    %v1729 = vadd.f32 %v1632, %v1728
    %v1730 = vpop.f32.mrf.mxu0
    %1731 = vmatprep.mubr.f32.mxu0 0.0
    %1732 = vmatmul.mubr.f32.gmra.mxu0 %v1654
    %v1733 = vpop.f32.mrf.mxu0
    %v1734 = vadd.f32 %v1637, %v1733
    %v1735 = vpop.f32.mrf.mxu0
    %1736 = vmatprep.mubr.f32.mxu0 0.0
    %1737 = vmatmul.mubr.f32.gmra.mxu0 %v1657
    %v1738 = vpop.f32.mrf.mxu0
    %v1739 = vadd.f32 %v1642, %v1738
    %v1740 = vpop.f32.mrf.mxu0
    %1741 = vmatprep.mubr.f32.mxu0 0.0
    %1742 = vmatmul.mubr.f32.gmra.mxu0 %v1660
    %v1743 = vpop.f32.mrf.mxu0
    %v1744 = vadd.f32 %v1647, %v1743
    %v1745 = vpop.f32.mrf.mxu0
    %1746 = vdwg.mxu0
    %v1747 = vld [vmem:[%s45] sm:$0x1]
    %v1749 = vlaneseq
    %v1750 = vshrl.u32 %v1749, 7
    %v1751 = vsub.s32 0, %v1750
    %v1752 = vrot.slane %v1747, %v1751
    %v1754 = vadd.f32 %v1729, %v1752
    %v1755 = vadd.f32 %v1734, %v1752
    %v1756 = vadd.f32 %v1739, %v1752
    %v1757 = vadd.f32 %v1744, %v1752
    %v1758 = vmax.f32 %v1754, 0.0
    %v1759 = vmax.f32 %v1755, 0.0
    %v1760 = vmax.f32 %v1756, 0.0
    %v1761 = vmax.f32 %v1757, 0.0
    %v1762 = vld [vmem:[%s47] sm:$0xff]
    %v1763 = vld [vmem:[%s47 + $0x8] sm:$0xff]
    %v1764 = vld [vmem:[%s47 + $0x10] sm:$0xff]
    %v1765 = vld [vmem:[%s47 + $0x18] sm:$0xff]
    %v1766 = vld [vmem:[%s49] sm:$0x1]
    %v1768 = vlaneseq
    %v1769 = vshrl.u32 %v1768, 7
    %v1770 = vsub.s32 0, %v1769
    %v1771 = vrot.slane %v1766, %v1770
    %1773 = vmatprep.subr.mxu0 0.0
    %1774 = vmatpush1.msra.mxu0 0.0
    %1775 = vmatprep.subr.mxu0 0.0
    %1776 = vmatpush1.msra.mxu0 0.0
    %1777 = vmatprep.subr.mxu0 0.0
    %1778 = vmatpush1.msra.mxu0 0.0
    %1779 = vmatprep.subr.mxu0 0.0
    %1780 = vmatpush1.msra.mxu0 0.0
    %1781 = vmatprep.subr.mxu0 0.0
    %1782 = vmatpush1.msra.mxu0 0.0
    %1783 = vmatprep.subr.mxu0 0.0
    %1784 = vmatpush1.msra.mxu0 0.0
    %1785 = vmatprep.subr.mxu0 0.0
    %1786 = vmatpush1.msra.mxu0 0.0
    %1787 = vmatprep.subr.mxu0 0.0
    %1788 = vmatpush1.msra.mxu0 0.0
    %1789 = vmatprep.subr.mxu0 0.0
    %1790 = vmatpush1.msra.mxu0 0.0
    %1791 = vmatprep.subr.mxu0 0.0
    %1792 = vmatpush1.msra.mxu0 0.0
    %1793 = vmatprep.subr.mxu0 0.0
    %1794 = vmatpush1.msra.mxu0 0.0
    %1795 = vmatprep.subr.mxu0 0.0
    %1796 = vmatpush1.msra.mxu0 0.0
    %1797 = vmatprep.subr.mxu0 0.0
    %1798 = vmatpush1.msra.mxu0 %v1765
    %1799 = vmatprep.subr.mxu0 0.0
    %1800 = vmatpush1.msra.mxu0 %v1764
    %1801 = vmatprep.subr.mxu0 0.0
    %1802 = vmatpush1.msra.mxu0 %v1763
    %1803 = vmatprep.subr.mxu0 0.0
    %1804 = vmatpush1.msra.mxu0 %v1762
    %1805 = vmatprep.subr.mxu0 0.0
    %1806 = vmatpush2.msra.mxu0 0.0
    %1807 = vmatprep.subr.mxu0 0.0
    %1808 = vmatpush2.msra.mxu0 0.0
    %1809 = vmatprep.subr.mxu0 0.0
    %1810 = vmatpush2.msra.mxu0 0.0
    %1811 = vmatprep.subr.mxu0 0.0
    %1812 = vmatpush2.msra.mxu0 0.0
    %1813 = vmatprep.subr.mxu0 0.0
    %1814 = vmatpush2.msra.mxu0 0.0
    %1815 = vmatprep.subr.mxu0 0.0
    %1816 = vmatpush2.msra.mxu0 0.0
    %1817 = vmatprep.subr.mxu0 0.0
    %1818 = vmatpush2.msra.mxu0 0.0
    %1819 = vmatprep.subr.mxu0 0.0
    %1820 = vmatpush2.msra.mxu0 0.0
    %1821 = vmatprep.subr.mxu0 0.0
    %1822 = vmatpush2.msra.mxu0 0.0
    %1823 = vmatprep.subr.mxu0 0.0
    %1824 = vmatpush2.msra.mxu0 0.0
    %1825 = vmatprep.subr.mxu0 0.0
    %1826 = vmatpush2.msra.mxu0 0.0
    %1827 = vmatprep.subr.mxu0 0.0
    %1828 = vmatpush2.msra.mxu0 0.0
    %1829 = vmatprep.subr.mxu0 0.0
    %1830 = vmatpush2.msra.mxu0 0.0
    %1831 = vmatprep.subr.mxu0 0.0
    %1832 = vmatpush2.msra.mxu0 0.0
    %1833 = vmatprep.subr.mxu0 0.0
    %1834 = vmatpush2.msra.mxu0 0.0
    %1835 = vmatprep.subr.mxu0 0.0
    %1836 = vmatpush2.msra.mxu0 0.0
    %1837 = vmatprep.mubr.f32.mxu0 0.0
    %1838 = vmatmul.mubr.f32.gmra.mxu0 %v1447
    %v1839 = vpop.f32.mrf.mxu0
    %v1840 = vadd.f32 %v1771, %v1839
    %v1841 = vpop.f32.mrf.mxu0
    %1842 = vmatprep.mubr.f32.mxu0 0.0
    %1843 = vmatmul.mubr.f32.gmra.mxu0 %v1450
    %v1844 = vpop.f32.mrf.mxu0
    %v1845 = vadd.f32 %v1771, %v1844
    %v1846 = vpop.f32.mrf.mxu0
    %1847 = vmatprep.mubr.f32.mxu0 0.0
    %1848 = vmatmul.mubr.f32.gmra.mxu0 %v1453
    %v1849 = vpop.f32.mrf.mxu0
    %v1850 = vadd.f32 %v1771, %v1849
    %v1851 = vpop.f32.mrf.mxu0
    %1852 = vmatprep.mubr.f32.mxu0 0.0
    %1853 = vmatmul.mubr.f32.gmra.mxu0 %v1456
    %v1854 = vpop.f32.mrf.mxu0
    %v1855 = vadd.f32 %v1771, %v1854
    %v1856 = vpop.f32.mrf.mxu0
    %1857 = vdwg.mxu0
    %v1858 = vmax.f32 %v1840, 0.0
    %v1859 = vmax.f32 %v1845, 0.0
    %v1860 = vmax.f32 %v1850, 0.0
    %v1861 = vmax.f32 %v1855, 0.0
    %v1862 = vld [vmem:[%s51] sm:$0xff]
    %v1863 = vld [vmem:[%s51 + $0x8] sm:$0xff]
    %v1864 = vld [vmem:[%s51 + $0x10] sm:$0xff]
    %v1865 = vld [vmem:[%s51 + $0x18] sm:$0xff]
    %v1866 = vld [vmem:[%s51 + $0x20] sm:$0xff]
    %v1867 = vld [vmem:[%s51 + $0x28] sm:$0xff]
    %v1868 = vld [vmem:[%s51 + $0x30] sm:$0xff]
    %v1869 = vld [vmem:[%s51 + $0x38] sm:$0xff]
    %v1870 = vld [vmem:[%s53] sm:$0x1]
    %v1872 = vlaneseq
    %v1873 = vshrl.u32 %v1872, 7
    %v1874 = vsub.s32 0, %v1873
    %v1875 = vrot.slane %v1870, %v1874
    %vm1877 = vcmask 523264
    %v1879 = vsel %vm1877, %v1858, 0
    %v1882 = vsel %vm1877, %v1859, 0
    %v1885 = vsel %vm1877, %v1860, 0
    %v1888 = vsel %vm1877, %v1861, 0
    %1890 = vmatprep.subr.mxu0 0.0
    %1891 = vmatpush1.msra.mxu0 0.0
    %1892 = vmatprep.subr.mxu0 0.0
    %1893 = vmatpush1.msra.mxu0 0.0
    %1894 = vmatprep.subr.mxu0 0.0
    %1895 = vmatpush1.msra.mxu0 0.0
    %1896 = vmatprep.subr.mxu0 0.0
    %1897 = vmatpush1.msra.mxu0 0.0
    %1898 = vmatprep.subr.mxu0 0.0
    %1899 = vmatpush1.msra.mxu0 0.0
    %1900 = vmatprep.subr.mxu0 0.0
    %1901 = vmatpush1.msra.mxu0 0.0
    %1902 = vmatprep.subr.mxu0 0.0
    %1903 = vmatpush1.msra.mxu0 0.0
    %1904 = vmatprep.subr.mxu0 0.0
    %1905 = vmatpush1.msra.mxu0 0.0
    %1906 = vmatprep.subr.mxu0 0.0
    %1907 = vmatpush1.msra.mxu0 %v1869
    %1908 = vmatprep.subr.mxu0 0.0
    %1909 = vmatpush1.msra.mxu0 %v1868
    %1910 = vmatprep.subr.mxu0 0.0
    %1911 = vmatpush1.msra.mxu0 %v1867
    %1912 = vmatprep.subr.mxu0 0.0
    %1913 = vmatpush1.msra.mxu0 %v1866
    %1914 = vmatprep.subr.mxu0 0.0
    %1915 = vmatpush1.msra.mxu0 %v1865
    %1916 = vmatprep.subr.mxu0 0.0
    %1917 = vmatpush1.msra.mxu0 %v1864
    %1918 = vmatprep.subr.mxu0 0.0
    %1919 = vmatpush1.msra.mxu0 %v1863
    %1920 = vmatprep.subr.mxu0 0.0
    %1921 = vmatpush1.msra.mxu0 %v1862
    %1922 = vmatprep.subr.mxu0 0.0
    %1923 = vmatpush2.msra.mxu0 0.0
    %1924 = vmatprep.subr.mxu0 0.0
    %1925 = vmatpush2.msra.mxu0 0.0
    %1926 = vmatprep.subr.mxu0 0.0
    %1927 = vmatpush2.msra.mxu0 0.0
    %1928 = vmatprep.subr.mxu0 0.0
    %1929 = vmatpush2.msra.mxu0 0.0
    %1930 = vmatprep.subr.mxu0 0.0
    %1931 = vmatpush2.msra.mxu0 0.0
    %1932 = vmatprep.subr.mxu0 0.0
    %1933 = vmatpush2.msra.mxu0 0.0
    %1934 = vmatprep.subr.mxu0 0.0
    %1935 = vmatpush2.msra.mxu0 0.0
    %1936 = vmatprep.subr.mxu0 0.0
    %1937 = vmatpush2.msra.mxu0 0.0
    %1938 = vmatprep.subr.mxu0 0.0
    %1939 = vmatpush2.msra.mxu0 0.0
    %1940 = vmatprep.subr.mxu0 0.0
    %1941 = vmatpush2.msra.mxu0 0.0
    %1942 = vmatprep.subr.mxu0 0.0
    %1943 = vmatpush2.msra.mxu0 0.0
    %1944 = vmatprep.subr.mxu0 0.0
    %1945 = vmatpush2.msra.mxu0 0.0
    %1946 = vmatprep.subr.mxu0 0.0
    %1947 = vmatpush2.msra.mxu0 0.0
    %1948 = vmatprep.subr.mxu0 0.0
    %1949 = vmatpush2.msra.mxu0 0.0
    %1950 = vmatprep.subr.mxu0 0.0
    %1951 = vmatpush2.msra.mxu0 0.0
    %1952 = vmatprep.subr.mxu0 0.0
    %1953 = vmatpush2.msra.mxu0 0.0
    %1954 = vmatprep.mubr.f32.mxu0 0.0
    %1955 = vmatmul.mubr.f32.gmra.mxu0 %v1879
    %v1956 = vpop.f32.mrf.mxu0
    %v1957 = vadd.f32 %v1875, %v1956
    %v1958 = vpop.f32.mrf.mxu0
    %1959 = vmatprep.mubr.f32.mxu0 0.0
    %1960 = vmatmul.mubr.f32.gmra.mxu0 %v1882
    %v1961 = vpop.f32.mrf.mxu0
    %v1962 = vadd.f32 %v1875, %v1961
    %v1963 = vpop.f32.mrf.mxu0
    %1964 = vmatprep.mubr.f32.mxu0 0.0
    %1965 = vmatmul.mubr.f32.gmra.mxu0 %v1885
    %v1966 = vpop.f32.mrf.mxu0
    %v1967 = vadd.f32 %v1875, %v1966
    %v1968 = vpop.f32.mrf.mxu0
    %1969 = vmatprep.mubr.f32.mxu0 0.0
    %1970 = vmatmul.mubr.f32.gmra.mxu0 %v1888
    %v1971 = vpop.f32.mrf.mxu0
    %v1972 = vadd.f32 %v1875, %v1971
    %v1973 = vpop.f32.mrf.mxu0
    %1974 = vdwg.mxu0
    %v1975 = vadd.f32 %v1431, %v1957
    %v1976 = vadd.f32 %v1432, %v1962
    %v1977 = vadd.f32 %v1433, %v1967
    %v1978 = vadd.f32 %v1434, %v1972
    %v1979 = vmax.f32 %v1975, 0.0
    %v1980 = vmax.f32 %v1976, 0.0
    %v1981 = vmax.f32 %v1977, 0.0
    %v1982 = vmax.f32 %v1978, 0.0
    %v1983 = vld [vmem:[%s55] sm:$0xff]
    %v1984 = vld [vmem:[%s55 + $0x8] sm:$0xff]
    %v1985 = vld [vmem:[%s55 + $0x10] sm:$0xff]
    %v1986 = vld [vmem:[%s55 + $0x18] sm:$0xff]
    %v1987 = vld [vmem:[%s57] sm:$0x1]
    %v1989 = vlaneseq
    %v1990 = vshrl.u32 %v1989, 7
    %v1991 = vsub.s32 0, %v1990
    %v1992 = vrot.slane %v1987, %v1991
    %v1995 = vsel %vm719, %v1979, 0
    %v1998 = vsel %vm719, %v1980, 0
    %v2001 = vsel %vm719, %v1981, 0
    %v2004 = vsel %vm719, %v1982, 0
    %2006 = vmatprep.subr.mxu0 0.0
    %2007 = vmatpush1.msra.mxu0 0.0
    %2008 = vmatprep.subr.mxu0 0.0
    %2009 = vmatpush1.msra.mxu0 0.0
    %2010 = vmatprep.subr.mxu0 0.0
    %2011 = vmatpush1.msra.mxu0 0.0
    %2012 = vmatprep.subr.mxu0 0.0
    %2013 = vmatpush1.msra.mxu0 0.0
    %2014 = vmatprep.subr.mxu0 0.0
    %2015 = vmatpush1.msra.mxu0 0.0
    %2016 = vmatprep.subr.mxu0 0.0
    %2017 = vmatpush1.msra.mxu0 0.0
    %2018 = vmatprep.subr.mxu0 0.0
    %2019 = vmatpush1.msra.mxu0 0.0
    %2020 = vmatprep.subr.mxu0 0.0
    %2021 = vmatpush1.msra.mxu0 0.0
    %2022 = vmatprep.subr.mxu0 0.0
    %2023 = vmatpush1.msra.mxu0 0.0
    %2024 = vmatprep.subr.mxu0 0.0
    %2025 = vmatpush1.msra.mxu0 0.0
    %2026 = vmatprep.subr.mxu0 0.0
    %2027 = vmatpush1.msra.mxu0 0.0
    %2028 = vmatprep.subr.mxu0 0.0
    %2029 = vmatpush1.msra.mxu0 0.0
    %2030 = vmatprep.subr.mxu0 0.0
    %2031 = vmatpush1.msra.mxu0 %v1986
    %2032 = vmatprep.subr.mxu0 0.0
    %2033 = vmatpush1.msra.mxu0 %v1985
    %2034 = vmatprep.subr.mxu0 0.0
    %2035 = vmatpush1.msra.mxu0 %v1984
    %2036 = vmatprep.subr.mxu0 0.0
    %2037 = vmatpush1.msra.mxu0 %v1983
    %2038 = vmatprep.subr.mxu0 0.0
    %2039 = vmatpush2.msra.mxu0 0.0
    %2040 = vmatprep.subr.mxu0 0.0
    %2041 = vmatpush2.msra.mxu0 0.0
    %2042 = vmatprep.subr.mxu0 0.0
    %2043 = vmatpush2.msra.mxu0 0.0
    %2044 = vmatprep.subr.mxu0 0.0
    %2045 = vmatpush2.msra.mxu0 0.0
    %2046 = vmatprep.subr.mxu0 0.0
    %2047 = vmatpush2.msra.mxu0 0.0
    %2048 = vmatprep.subr.mxu0 0.0
    %2049 = vmatpush2.msra.mxu0 0.0
    %2050 = vmatprep.subr.mxu0 0.0
    %2051 = vmatpush2.msra.mxu0 0.0
    %2052 = vmatprep.subr.mxu0 0.0
    %2053 = vmatpush2.msra.mxu0 0.0
    %2054 = vmatprep.subr.mxu0 0.0
    %2055 = vmatpush2.msra.mxu0 0.0
    %2056 = vmatprep.subr.mxu0 0.0
    %2057 = vmatpush2.msra.mxu0 0.0
    %2058 = vmatprep.subr.mxu0 0.0
    %2059 = vmatpush2.msra.mxu0 0.0
    %2060 = vmatprep.subr.mxu0 0.0
    %2061 = vmatpush2.msra.mxu0 0.0
    %2062 = vmatprep.subr.mxu0 0.0
    %2063 = vmatpush2.msra.mxu0 0.0
    %2064 = vmatprep.subr.mxu0 0.0
    %2065 = vmatpush2.msra.mxu0 0.0
    %2066 = vmatprep.subr.mxu0 0.0
    %2067 = vmatpush2.msra.mxu0 0.0
    %2068 = vmatprep.subr.mxu0 0.0
    %2069 = vmatpush2.msra.mxu0 0.0
    %2070 = vmatprep.mubr.f32.mxu0 0.0
    %2071 = vmatmul.mubr.f32.gmra.mxu0 %v1995
    %v2072 = vpop.f32.mrf.mxu0
    %v2073 = vadd.f32 %v1992, %v2072
    %v2074 = vpop.f32.mrf.mxu0
    %2075 = vmatprep.mubr.f32.mxu0 0.0
    %2076 = vmatmul.mubr.f32.gmra.mxu0 %v1998
    %v2077 = vpop.f32.mrf.mxu0
    %v2078 = vadd.f32 %v1992, %v2077
    %v2079 = vpop.f32.mrf.mxu0
    %2080 = vmatprep.mubr.f32.mxu0 0.0
    %2081 = vmatmul.mubr.f32.gmra.mxu0 %v2001
    %v2082 = vpop.f32.mrf.mxu0
    %v2083 = vadd.f32 %v1992, %v2082
    %v2084 = vpop.f32.mrf.mxu0
    %2085 = vmatprep.mubr.f32.mxu0 0.0
    %2086 = vmatmul.mubr.f32.gmra.mxu0 %v2004
    %v2087 = vpop.f32.mrf.mxu0
    %v2088 = vadd.f32 %v1992, %v2087
    %v2089 = vpop.f32.mrf.mxu0
    %2090 = vdwg.mxu0
    %v2091 = vmax.f32 %v2073, 0.0
    %v2092 = vmax.f32 %v2078, 0.0
    %v2093 = vmax.f32 %v2083, 0.0
    %v2094 = vmax.f32 %v2088, 0.0
    %v2095 = vld [vmem:[%s59] sm:$0xff]
    %v2096 = vld [vmem:[%s59 + $0x8] sm:$0xff]
    %v2097 = vld [vmem:[%s59 + $0x10] sm:$0xff]
    %v2098 = vld [vmem:[%s59 + $0x18] sm:$0xff]
    %v2099 = vld [vmem:[%s59 + $0x20] sm:$0xff]
    %v2100 = vld [vmem:[%s59 + $0x28] sm:$0xff]
    %v2101 = vld [vmem:[%s59 + $0x30] sm:$0xff]
    %v2102 = vld [vmem:[%s59 + $0x38] sm:$0xff]
    %v2103 = vld [vmem:[%s61] sm:$0x1]
    %v2105 = vlaneseq
    %v2106 = vshrl.u32 %v2105, 7
    %v2107 = vsub.s32 0, %v2106
    %v2108 = vrot.slane %v2103, %v2107
    %v2111 = vsel %vm1877, %v2091, 0
    %v2114 = vsel %vm1877, %v2092, 0
    %v2117 = vsel %vm1877, %v2093, 0
    %v2120 = vsel %vm1877, %v2094, 0
    %2122 = vmatprep.subr.mxu0 0.0
    %2123 = vmatpush1.msra.mxu0 0.0
    %2124 = vmatprep.subr.mxu0 0.0
    %2125 = vmatpush1.msra.mxu0 0.0
    %2126 = vmatprep.subr.mxu0 0.0
    %2127 = vmatpush1.msra.mxu0 0.0
    %2128 = vmatprep.subr.mxu0 0.0
    %2129 = vmatpush1.msra.mxu0 0.0
    %2130 = vmatprep.subr.mxu0 0.0
    %2131 = vmatpush1.msra.mxu0 0.0
    %2132 = vmatprep.subr.mxu0 0.0
    %2133 = vmatpush1.msra.mxu0 0.0
    %2134 = vmatprep.subr.mxu0 0.0
    %2135 = vmatpush1.msra.mxu0 0.0
    %2136 = vmatprep.subr.mxu0 0.0
    %2137 = vmatpush1.msra.mxu0 0.0
    %2138 = vmatprep.subr.mxu0 0.0
    %2139 = vmatpush1.msra.mxu0 %v2102
    %2140 = vmatprep.subr.mxu0 0.0
    %2141 = vmatpush1.msra.mxu0 %v2101
    %2142 = vmatprep.subr.mxu0 0.0
    %2143 = vmatpush1.msra.mxu0 %v2100
    %2144 = vmatprep.subr.mxu0 0.0
    %2145 = vmatpush1.msra.mxu0 %v2099
    %2146 = vmatprep.subr.mxu0 0.0
    %2147 = vmatpush1.msra.mxu0 %v2098
    %2148 = vmatprep.subr.mxu0 0.0
    %2149 = vmatpush1.msra.mxu0 %v2097
    %2150 = vmatprep.subr.mxu0 0.0
    %2151 = vmatpush1.msra.mxu0 %v2096
    %2152 = vmatprep.subr.mxu0 0.0
    %2153 = vmatpush1.msra.mxu0 %v2095
    %2154 = vmatprep.subr.mxu0 0.0
    %2155 = vmatpush2.msra.mxu0 0.0
    %2156 = vmatprep.subr.mxu0 0.0
    %2157 = vmatpush2.msra.mxu0 0.0
    %2158 = vmatprep.subr.mxu0 0.0
    %2159 = vmatpush2.msra.mxu0 0.0
    %2160 = vmatprep.subr.mxu0 0.0
    %2161 = vmatpush2.msra.mxu0 0.0
    %2162 = vmatprep.subr.mxu0 0.0
    %2163 = vmatpush2.msra.mxu0 0.0
    %2164 = vmatprep.subr.mxu0 0.0
    %2165 = vmatpush2.msra.mxu0 0.0
    %2166 = vmatprep.subr.mxu0 0.0
    %2167 = vmatpush2.msra.mxu0 0.0
    %2168 = vmatprep.subr.mxu0 0.0
    %2169 = vmatpush2.msra.mxu0 0.0
    %2170 = vmatprep.subr.mxu0 0.0
    %2171 = vmatpush2.msra.mxu0 0.0
    %2172 = vmatprep.subr.mxu0 0.0
    %2173 = vmatpush2.msra.mxu0 0.0
    %2174 = vmatprep.subr.mxu0 0.0
    %2175 = vmatpush2.msra.mxu0 0.0
    %2176 = vmatprep.subr.mxu0 0.0
    %2177 = vmatpush2.msra.mxu0 0.0
    %2178 = vmatprep.subr.mxu0 0.0
    %2179 = vmatpush2.msra.mxu0 0.0
    %2180 = vmatprep.subr.mxu0 0.0
    %2181 = vmatpush2.msra.mxu0 0.0
    %2182 = vmatprep.subr.mxu0 0.0
    %2183 = vmatpush2.msra.mxu0 0.0
    %2184 = vmatprep.subr.mxu0 0.0
    %2185 = vmatpush2.msra.mxu0 0.0
    %2186 = vmatprep.mubr.f32.mxu0 0.0
    %2187 = vmatmul.mubr.f32.gmra.mxu0 %v2111
    %v2188 = vpop.f32.mrf.mxu0
    %v2189 = vadd.f32 %v2108, %v2188
    %v2190 = vpop.f32.mrf.mxu0
    %2191 = vmatprep.mubr.f32.mxu0 0.0
    %2192 = vmatmul.mubr.f32.gmra.mxu0 %v2114
    %v2193 = vpop.f32.mrf.mxu0
    %v2194 = vadd.f32 %v2108, %v2193
    %v2195 = vpop.f32.mrf.mxu0
    %2196 = vmatprep.mubr.f32.mxu0 0.0
    %2197 = vmatmul.mubr.f32.gmra.mxu0 %v2117
    %v2198 = vpop.f32.mrf.mxu0
    %v2199 = vadd.f32 %v2108, %v2198
    %v2200 = vpop.f32.mrf.mxu0
    %2201 = vmatprep.mubr.f32.mxu0 0.0
    %2202 = vmatmul.mubr.f32.gmra.mxu0 %v2120
    %v2203 = vpop.f32.mrf.mxu0
    %v2204 = vadd.f32 %v2108, %v2203
    %v2205 = vpop.f32.mrf.mxu0
    %2206 = vdwg.mxu0
    %v2207 = vadd.f32 %v1979, %v2189
    %v2208 = vadd.f32 %v1980, %v2194
    %v2209 = vadd.f32 %v1981, %v2199
    %v2210 = vadd.f32 %v1982, %v2204
    %v2211 = vmax.f32 %v2207, 0.0
    %v2212 = vmax.f32 %v2208, 0.0
    %v2213 = vmax.f32 %v2209, 0.0
    %v2214 = vmax.f32 %v2210, 0.0
    %v2215 = vld [vmem:[%s63] sm:$0xff]
    %v2216 = vld [vmem:[%s63 + $0x8] sm:$0xff]
    %v2217 = vld [vmem:[%s63 + $0x10] sm:$0xff]
    %v2218 = vld [vmem:[%s63 + $0x18] sm:$0xff]
    %v2219 = vld [vmem:[#allocation12] sm:$0x1]
    %v2221 = vlaneseq
    %v2222 = vshrl.u32 %v2221, 7
    %v2223 = vsub.s32 0, %v2222
    %v2224 = vrot.slane %v2219, %v2223
    %v2227 = vsel %vm719, %v2211, 0
    %v2230 = vsel %vm719, %v2212, 0
    %v2233 = vsel %vm719, %v2213, 0
    %v2236 = vsel %vm719, %v2214, 0
    %2238 = vmatprep.subr.mxu0 0.0
    %2239 = vmatpush1.msra.mxu0 0.0
    %2240 = vmatprep.subr.mxu0 0.0
    %2241 = vmatpush1.msra.mxu0 0.0
    %2242 = vmatprep.subr.mxu0 0.0
    %2243 = vmatpush1.msra.mxu0 0.0
    %2244 = vmatprep.subr.mxu0 0.0
    %2245 = vmatpush1.msra.mxu0 0.0
    %2246 = vmatprep.subr.mxu0 0.0
    %2247 = vmatpush1.msra.mxu0 0.0
    %2248 = vmatprep.subr.mxu0 0.0
    %2249 = vmatpush1.msra.mxu0 0.0
    %2250 = vmatprep.subr.mxu0 0.0
    %2251 = vmatpush1.msra.mxu0 0.0
    %2252 = vmatprep.subr.mxu0 0.0
    %2253 = vmatpush1.msra.mxu0 0.0
    %2254 = vmatprep.subr.mxu0 0.0
    %2255 = vmatpush1.msra.mxu0 0.0
    %2256 = vmatprep.subr.mxu0 0.0
    %2257 = vmatpush1.msra.mxu0 0.0
    %2258 = vmatprep.subr.mxu0 0.0
    %2259 = vmatpush1.msra.mxu0 0.0
    %2260 = vmatprep.subr.mxu0 0.0
    %2261 = vmatpush1.msra.mxu0 0.0
    %2262 = vmatprep.subr.mxu0 0.0
    %2263 = vmatpush1.msra.mxu0 %v2218
    %2264 = vmatprep.subr.mxu0 0.0
    %2265 = vmatpush1.msra.mxu0 %v2217
    %2266 = vmatprep.subr.mxu0 0.0
    %2267 = vmatpush1.msra.mxu0 %v2216
    %2268 = vmatprep.subr.mxu0 0.0
    %2269 = vmatpush1.msra.mxu0 %v2215
    %2270 = vmatprep.subr.mxu0 0.0
    %2271 = vmatpush2.msra.mxu0 0.0
    %2272 = vmatprep.subr.mxu0 0.0
    %2273 = vmatpush2.msra.mxu0 0.0
    %2274 = vmatprep.subr.mxu0 0.0
    %2275 = vmatpush2.msra.mxu0 0.0
    %2276 = vmatprep.subr.mxu0 0.0
    %2277 = vmatpush2.msra.mxu0 0.0
    %2278 = vmatprep.subr.mxu0 0.0
    %2279 = vmatpush2.msra.mxu0 0.0
    %2280 = vmatprep.subr.mxu0 0.0
    %2281 = vmatpush2.msra.mxu0 0.0
    %2282 = vmatprep.subr.mxu0 0.0
    %2283 = vmatpush2.msra.mxu0 0.0
    %2284 = vmatprep.subr.mxu0 0.0
    %2285 = vmatpush2.msra.mxu0 0.0
    %2286 = vmatprep.subr.mxu0 0.0
    %2287 = vmatpush2.msra.mxu0 0.0
    %2288 = vmatprep.subr.mxu0 0.0
    %2289 = vmatpush2.msra.mxu0 0.0
    %2290 = vmatprep.subr.mxu0 0.0
    %2291 = vmatpush2.msra.mxu0 0.0
    %2292 = vmatprep.subr.mxu0 0.0
    %2293 = vmatpush2.msra.mxu0 0.0
    %2294 = vmatprep.subr.mxu0 0.0
    %2295 = vmatpush2.msra.mxu0 0.0
    %2296 = vmatprep.subr.mxu0 0.0
    %2297 = vmatpush2.msra.mxu0 0.0
    %2298 = vmatprep.subr.mxu0 0.0
    %2299 = vmatpush2.msra.mxu0 0.0
    %2300 = vmatprep.subr.mxu0 0.0
    %2301 = vmatpush2.msra.mxu0 0.0
    %2302 = vmatprep.mubr.f32.mxu0 0.0
    %2303 = vmatmul.mubr.f32.gmra.mxu0 %v2227
    %v2304 = vpop.f32.mrf.mxu0
    %v2305 = vadd.f32 %v2224, %v2304
    %v2306 = vpop.f32.mrf.mxu0
    %2307 = vmatprep.mubr.f32.mxu0 0.0
    %2308 = vmatmul.mubr.f32.gmra.mxu0 %v2230
    %v2309 = vpop.f32.mrf.mxu0
    %v2310 = vadd.f32 %v2224, %v2309
    %v2311 = vpop.f32.mrf.mxu0
    %2312 = vmatprep.mubr.f32.mxu0 0.0
    %2313 = vmatmul.mubr.f32.gmra.mxu0 %v2233
    %v2314 = vpop.f32.mrf.mxu0
    %v2315 = vadd.f32 %v2224, %v2314
    %v2316 = vpop.f32.mrf.mxu0
    %2317 = vmatprep.mubr.f32.mxu0 0.0
    %2318 = vmatmul.mubr.f32.gmra.mxu0 %v2236
    %v2319 = vpop.f32.mrf.mxu0
    %v2320 = vadd.f32 %v2224, %v2319
    %v2321 = vpop.f32.mrf.mxu0
    %2322 = vdwg.mxu0
    %v2323 = vld [vmem:[%s67] sm:$0xff]
    %v2324 = vld [vmem:[%s67 + $0x8] sm:$0xff]
    %v2325 = vld [vmem:[%s67 + $0x10] sm:$0xff]
    %v2326 = vld [vmem:[%s67 + $0x18] sm:$0xff]
    %v2327 = vld [vmem:[#allocation13] sm:$0xff]
    %v2328 = vld [vmem:[#allocation13 + $0x8] sm:$0x1]
    %v2330 = vsel %vm646, %v2328, 0
    %2332 = vmatprep.subr.mxu0 0.0
    %2333 = vmatpush1.msra.mxu0 0.0
    %2334 = vmatprep.subr.mxu0 0.0
    %2335 = vmatpush1.msra.mxu0 0.0
    %2336 = vmatprep.subr.mxu0 0.0
    %2337 = vmatpush1.msra.mxu0 0.0
    %2338 = vmatprep.subr.mxu0 0.0
    %2339 = vmatpush1.msra.mxu0 0.0
    %2340 = vmatprep.subr.mxu0 0.0
    %2341 = vmatpush1.msra.mxu0 0.0
    %2342 = vmatprep.subr.mxu0 0.0
    %2343 = vmatpush1.msra.mxu0 0.0
    %2344 = vmatprep.subr.mxu0 0.0
    %2345 = vmatpush1.msra.mxu0 0.0
    %2346 = vmatprep.subr.mxu0 0.0
    %2347 = vmatpush1.msra.mxu0 0.0
    %2348 = vmatprep.subr.mxu0 0.0
    %2349 = vmatpush1.msra.mxu0 0.0
    %2350 = vmatprep.subr.mxu0 0.0
    %2351 = vmatpush1.msra.mxu0 0.0
    %2352 = vmatprep.subr.mxu0 0.0
    %2353 = vmatpush1.msra.mxu0 0.0
    %2354 = vmatprep.subr.mxu0 0.0
    %2355 = vmatpush1.msra.mxu0 0.0
    %2356 = vmatprep.subr.mxu0 0.0
    %2357 = vmatpush1.msra.mxu0 0.0
    %2358 = vmatprep.subr.mxu0 0.0
    %2359 = vmatpush1.msra.mxu0 0.0
    %2360 = vmatprep.subr.mxu0 0.0
    %2361 = vmatpush1.msra.mxu0 %v2330
    %2362 = vmatprep.subr.mxu0 0.0
    %2363 = vmatpush1.msra.mxu0 %v2327
    %2364 = vmatprep.subr.mxu0 0.0
    %2365 = vmatpush2.msra.mxu0 0.0
    %2366 = vmatprep.subr.mxu0 0.0
    %2367 = vmatpush2.msra.mxu0 0.0
    %2368 = vmatprep.subr.mxu0 0.0
    %2369 = vmatpush2.msra.mxu0 0.0
    %2370 = vmatprep.subr.mxu0 0.0
    %2371 = vmatpush2.msra.mxu0 0.0
    %2372 = vmatprep.subr.mxu0 0.0
    %2373 = vmatpush2.msra.mxu0 0.0
    %2374 = vmatprep.subr.mxu0 0.0
    %2375 = vmatpush2.msra.mxu0 0.0
    %2376 = vmatprep.subr.mxu0 0.0
    %2377 = vmatpush2.msra.mxu0 0.0
    %2378 = vmatprep.subr.mxu0 0.0
    %2379 = vmatpush2.msra.mxu0 0.0
    %2380 = vmatprep.subr.mxu0 0.0
    %2381 = vmatpush2.msra.mxu0 0.0
    %2382 = vmatprep.subr.mxu0 0.0
    %2383 = vmatpush2.msra.mxu0 0.0
    %2384 = vmatprep.subr.mxu0 0.0
    %2385 = vmatpush2.msra.mxu0 0.0
    %2386 = vmatprep.subr.mxu0 0.0
    %2387 = vmatpush2.msra.mxu0 0.0
    %2388 = vmatprep.subr.mxu0 0.0
    %2389 = vmatpush2.msra.mxu0 0.0
    %2390 = vmatprep.subr.mxu0 0.0
    %2391 = vmatpush2.msra.mxu0 0.0
    %2392 = vmatprep.subr.mxu0 0.0
    %2393 = vmatpush2.msra.mxu0 0.0
    %2394 = vmatprep.subr.mxu0 0.0
    %2395 = vmatpush2.msra.mxu0 0.0
    %2396 = vmatprep.mubr.f32.mxu0 0.0
    %2397 = vmatmul.mubr.f32.gmra.mxu0 %v1551
    %v2398 = vpop.f32.mrf.mxu0
    %v2399 = vadd.f32 0.0, %v2398
    %v2400 = vpop.f32.mrf.mxu0
    %2401 = vmatprep.mubr.f32.mxu0 0.0
    %2402 = vmatmul.mubr.f32.gmra.mxu0 %v1554
    %v2403 = vpop.f32.mrf.mxu0
    %v2404 = vadd.f32 0.0, %v2403
    %v2405 = vpop.f32.mrf.mxu0
    %2406 = vmatprep.mubr.f32.mxu0 0.0
    %2407 = vmatmul.mubr.f32.gmra.mxu0 %v1557
    %v2408 = vpop.f32.mrf.mxu0
    %v2409 = vadd.f32 0.0, %v2408
    %v2410 = vpop.f32.mrf.mxu0
    %2411 = vmatprep.mubr.f32.mxu0 0.0
    %2412 = vmatmul.mubr.f32.gmra.mxu0 %v1560
    %v2413 = vpop.f32.mrf.mxu0
    %v2414 = vadd.f32 0.0, %v2413
    %v2415 = vpop.f32.mrf.mxu0
    %2416 = vdwg.mxu0
    %v2418 = vsel %vm719, %v2305, 0
    %v2421 = vsel %vm719, %v2310, 0
    %v2424 = vsel %vm719, %v2315, 0
    %v2427 = vsel %vm719, %v2320, 0
    %2429 = vmatprep.subr.mxu0 0.0
    %2430 = vmatpush1.msra.mxu0 0.0
    %2431 = vmatprep.subr.mxu0 0.0
    %2432 = vmatpush1.msra.mxu0 0.0
    %2433 = vmatprep.subr.mxu0 0.0
    %2434 = vmatpush1.msra.mxu0 0.0
    %2435 = vmatprep.subr.mxu0 0.0
    %2436 = vmatpush1.msra.mxu0 0.0
    %2437 = vmatprep.subr.mxu0 0.0
    %2438 = vmatpush1.msra.mxu0 0.0
    %2439 = vmatprep.subr.mxu0 0.0
    %2440 = vmatpush1.msra.mxu0 0.0
    %2441 = vmatprep.subr.mxu0 0.0
    %2442 = vmatpush1.msra.mxu0 0.0
    %2443 = vmatprep.subr.mxu0 0.0
    %2444 = vmatpush1.msra.mxu0 0.0
    %2445 = vmatprep.subr.mxu0 0.0
    %2446 = vmatpush1.msra.mxu0 0.0
    %2447 = vmatprep.subr.mxu0 0.0
    %2448 = vmatpush1.msra.mxu0 0.0
    %2449 = vmatprep.subr.mxu0 0.0
    %2450 = vmatpush1.msra.mxu0 0.0
    %2451 = vmatprep.subr.mxu0 0.0
    %2452 = vmatpush1.msra.mxu0 0.0
    %2453 = vmatprep.subr.mxu0 0.0
    %2454 = vmatpush1.msra.mxu0 %v2326
    %2455 = vmatprep.subr.mxu0 0.0
    %2456 = vmatpush1.msra.mxu0 %v2325
    %2457 = vmatprep.subr.mxu0 0.0
    %2458 = vmatpush1.msra.mxu0 %v2324
    %2459 = vmatprep.subr.mxu0 0.0
    %2460 = vmatpush1.msra.mxu0 %v2323
    %2461 = vmatprep.subr.mxu0 0.0
    %2462 = vmatpush2.msra.mxu0 0.0
    %2463 = vmatprep.subr.mxu0 0.0
    %2464 = vmatpush2.msra.mxu0 0.0
    %2465 = vmatprep.subr.mxu0 0.0
    %2466 = vmatpush2.msra.mxu0 0.0
    %2467 = vmatprep.subr.mxu0 0.0
    %2468 = vmatpush2.msra.mxu0 0.0
    %2469 = vmatprep.subr.mxu0 0.0
    %2470 = vmatpush2.msra.mxu0 0.0
    %2471 = vmatprep.subr.mxu0 0.0
    %2472 = vmatpush2.msra.mxu0 0.0
    %2473 = vmatprep.subr.mxu0 0.0
    %2474 = vmatpush2.msra.mxu0 0.0
    %2475 = vmatprep.subr.mxu0 0.0
    %2476 = vmatpush2.msra.mxu0 0.0
    %2477 = vmatprep.subr.mxu0 0.0
    %2478 = vmatpush2.msra.mxu0 0.0
    %2479 = vmatprep.subr.mxu0 0.0
    %2480 = vmatpush2.msra.mxu0 0.0
    %2481 = vmatprep.subr.mxu0 0.0
    %2482 = vmatpush2.msra.mxu0 0.0
    %2483 = vmatprep.subr.mxu0 0.0
    %2484 = vmatpush2.msra.mxu0 0.0
    %2485 = vmatprep.subr.mxu0 0.0
    %2486 = vmatpush2.msra.mxu0 0.0
    %2487 = vmatprep.subr.mxu0 0.0
    %2488 = vmatpush2.msra.mxu0 0.0
    %2489 = vmatprep.subr.mxu0 0.0
    %2490 = vmatpush2.msra.mxu0 0.0
    %2491 = vmatprep.subr.mxu0 0.0
    %2492 = vmatpush2.msra.mxu0 0.0
    %2493 = vmatprep.mubr.f32.mxu0 0.0
    %2494 = vmatmul.mubr.f32.gmra.mxu0 %v2418
    %v2495 = vpop.f32.mrf.mxu0
    %v2496 = vadd.f32 %v2399, %v2495
    %v2497 = vpop.f32.mrf.mxu0
    %2498 = vmatprep.mubr.f32.mxu0 0.0
    %2499 = vmatmul.mubr.f32.gmra.mxu0 %v2421
    %v2500 = vpop.f32.mrf.mxu0
    %v2501 = vadd.f32 %v2404, %v2500
    %v2502 = vpop.f32.mrf.mxu0
    %2503 = vmatprep.mubr.f32.mxu0 0.0
    %2504 = vmatmul.mubr.f32.gmra.mxu0 %v2424
    %v2505 = vpop.f32.mrf.mxu0
    %v2506 = vadd.f32 %v2409, %v2505
    %v2507 = vpop.f32.mrf.mxu0
    %2508 = vmatprep.mubr.f32.mxu0 0.0
    %2509 = vmatmul.mubr.f32.gmra.mxu0 %v2427
    %v2510 = vpop.f32.mrf.mxu0
    %v2511 = vadd.f32 %v2414, %v2510
    %v2512 = vpop.f32.mrf.mxu0
    %2513 = vdwg.mxu0
    %v2514 = vld [vmem:[#allocation15] sm:$0x1]
    %v2516 = vlaneseq
    %v2517 = vshrl.u32 %v2516, 7
    %v2518 = vsub.s32 0, %v2517
    %v2519 = vrot.slane %v2514, %v2518
    %v2521 = vadd.f32 %v2496, %v2519
    %v2522 = vadd.f32 %v2501, %v2519
    %v2523 = vadd.f32 %v2506, %v2519
    %v2524 = vadd.f32 %v2511, %v2519
    %v2525 = vmax.f32 %v2521, 0.0
    %v2526 = vmax.f32 %v2522, 0.0
    %v2527 = vmax.f32 %v2523, 0.0
    %v2528 = vmax.f32 %v2524, 0.0
    %v2529 = vld [vmem:[%s73] sm:$0xff]
    %v2530 = vld [vmem:[%s73 + $0x8] sm:$0xff]
    %v2531 = vld [vmem:[%s75] sm:$0xff]
    %v2532 = vld [vmem:[%s75 + $0x8] sm:$0xff]
    %v2533 = vld [vmem:[%s75 + $0x10] sm:$0xff]
    %v2534 = vld [vmem:[%s75 + $0x18] sm:$0xff]
    %2535 = vmatprep.subr.mxu0 0.0
    %2536 = vmatpush1.msra.mxu0 0.0
    %2537 = vmatprep.subr.mxu0 0.0
    %2538 = vmatpush1.msra.mxu0 0.0
    %2539 = vmatprep.subr.mxu0 0.0
    %2540 = vmatpush1.msra.mxu0 0.0
    %2541 = vmatprep.subr.mxu0 0.0
    %2542 = vmatpush1.msra.mxu0 0.0
    %2543 = vmatprep.subr.mxu0 0.0
    %2544 = vmatpush1.msra.mxu0 0.0
    %2545 = vmatprep.subr.mxu0 0.0
    %2546 = vmatpush1.msra.mxu0 0.0
    %2547 = vmatprep.subr.mxu0 0.0
    %2548 = vmatpush1.msra.mxu0 0.0
    %2549 = vmatprep.subr.mxu0 0.0
    %2550 = vmatpush1.msra.mxu0 0.0
    %2551 = vmatprep.subr.mxu0 0.0
    %2552 = vmatpush1.msra.mxu0 0.0
    %2553 = vmatprep.subr.mxu0 0.0
    %2554 = vmatpush1.msra.mxu0 0.0
    %2555 = vmatprep.subr.mxu0 0.0
    %2556 = vmatpush1.msra.mxu0 0.0
    %2557 = vmatprep.subr.mxu0 0.0
    %2558 = vmatpush1.msra.mxu0 0.0
    %2559 = vmatprep.subr.mxu0 0.0
    %2560 = vmatpush1.msra.mxu0 %v2534
    %2561 = vmatprep.subr.mxu0 0.0
    %2562 = vmatpush1.msra.mxu0 %v2533
    %2563 = vmatprep.subr.mxu0 0.0
    %2564 = vmatpush1.msra.mxu0 %v2532
    %2565 = vmatprep.subr.mxu0 0.0
    %2566 = vmatpush1.msra.mxu0 %v2531
    %2567 = vmatprep.subr.mxu0 0.0
    %2568 = vmatpush2.msra.mxu0 0.0
    %2569 = vmatprep.subr.mxu0 0.0
    %2570 = vmatpush2.msra.mxu0 0.0
    %2571 = vmatprep.subr.mxu0 0.0
    %2572 = vmatpush2.msra.mxu0 0.0
    %2573 = vmatprep.subr.mxu0 0.0
    %2574 = vmatpush2.msra.mxu0 0.0
    %2575 = vmatprep.subr.mxu0 0.0
    %2576 = vmatpush2.msra.mxu0 0.0
    %2577 = vmatprep.subr.mxu0 0.0
    %2578 = vmatpush2.msra.mxu0 0.0
    %2579 = vmatprep.subr.mxu0 0.0
    %2580 = vmatpush2.msra.mxu0 0.0
    %2581 = vmatprep.subr.mxu0 0.0
    %2582 = vmatpush2.msra.mxu0 0.0
    %2583 = vmatprep.subr.mxu0 0.0
    %2584 = vmatpush2.msra.mxu0 0.0
    %2585 = vmatprep.subr.mxu0 0.0
    %2586 = vmatpush2.msra.mxu0 0.0
    %2587 = vmatprep.subr.mxu0 0.0
    %2588 = vmatpush2.msra.mxu0 0.0
    %2589 = vmatprep.subr.mxu0 0.0
    %2590 = vmatpush2.msra.mxu0 0.0
    %2591 = vmatprep.subr.mxu0 0.0
    %2592 = vmatpush2.msra.mxu0 0.0
    %2593 = vmatprep.subr.mxu0 0.0
    %2594 = vmatpush2.msra.mxu0 0.0
    %2595 = vmatprep.subr.mxu0 0.0
    %2596 = vmatpush2.msra.mxu0 0.0
    %2597 = vmatprep.subr.mxu0 0.0
    %2598 = vmatpush2.msra.mxu0 0.0
    %2599 = vmatprep.mubr.f32.mxu0 0.0
    %2600 = vmatmul.mubr.f32.gmra.mxu0 %v2227
    %v2601 = vpop.f32.mrf.mxu0
    %v2602 = vadd.f32 0.0, %v2601
    %v2603 = vpop.f32.mrf.mxu0
    %2604 = vmatprep.mubr.f32.mxu0 0.0
    %2605 = vmatmul.mubr.f32.gmra.mxu0 %v2230
    %v2606 = vpop.f32.mrf.mxu0
    %v2607 = vadd.f32 0.0, %v2606
    %v2608 = vpop.f32.mrf.mxu0
    %2609 = vmatprep.mubr.f32.mxu0 0.0
    %2610 = vmatmul.mubr.f32.gmra.mxu0 %v2233
    %v2611 = vpop.f32.mrf.mxu0
    %v2612 = vadd.f32 0.0, %v2611
    %v2613 = vpop.f32.mrf.mxu0
    %2614 = vmatprep.mubr.f32.mxu0 0.0
    %2615 = vmatmul.mubr.f32.gmra.mxu0 %v2236
    %v2616 = vpop.f32.mrf.mxu0
    %v2617 = vadd.f32 0.0, %v2616
    %v2618 = vpop.f32.mrf.mxu0
    %2619 = vdwg.mxu0
    %vm2620 = vcmask 130048
    %v2622 = vsel %vm2620, %v2525, 0
    %v2625 = vsel %vm2620, %v2526, 0
    %v2628 = vsel %vm2620, %v2527, 0
    %v2631 = vsel %vm2620, %v2528, 0
    %2633 = vmatprep.subr.mxu0 0.0
    %2634 = vmatpush1.msra.mxu0 0.0
    %2635 = vmatprep.subr.mxu0 0.0
    %2636 = vmatpush1.msra.mxu0 0.0
    %2637 = vmatprep.subr.mxu0 0.0
    %2638 = vmatpush1.msra.mxu0 0.0
    %2639 = vmatprep.subr.mxu0 0.0
    %2640 = vmatpush1.msra.mxu0 0.0
    %2641 = vmatprep.subr.mxu0 0.0
    %2642 = vmatpush1.msra.mxu0 0.0
    %2643 = vmatprep.subr.mxu0 0.0
    %2644 = vmatpush1.msra.mxu0 0.0
    %2645 = vmatprep.subr.mxu0 0.0
    %2646 = vmatpush1.msra.mxu0 0.0
    %2647 = vmatprep.subr.mxu0 0.0
    %2648 = vmatpush1.msra.mxu0 0.0
    %2649 = vmatprep.subr.mxu0 0.0
    %2650 = vmatpush1.msra.mxu0 0.0
    %2651 = vmatprep.subr.mxu0 0.0
    %2652 = vmatpush1.msra.mxu0 0.0
    %2653 = vmatprep.subr.mxu0 0.0
    %2654 = vmatpush1.msra.mxu0 0.0
    %2655 = vmatprep.subr.mxu0 0.0
    %2656 = vmatpush1.msra.mxu0 0.0
    %2657 = vmatprep.subr.mxu0 0.0
    %2658 = vmatpush1.msra.mxu0 0.0
    %2659 = vmatprep.subr.mxu0 0.0
    %2660 = vmatpush1.msra.mxu0 0.0
    %2661 = vmatprep.subr.mxu0 0.0
    %2662 = vmatpush1.msra.mxu0 %v2530
    %2663 = vmatprep.subr.mxu0 0.0
    %2664 = vmatpush1.msra.mxu0 %v2529
    %2665 = vmatprep.subr.mxu0 0.0
    %2666 = vmatpush2.msra.mxu0 0.0
    %2667 = vmatprep.subr.mxu0 0.0
    %2668 = vmatpush2.msra.mxu0 0.0
    %2669 = vmatprep.subr.mxu0 0.0
    %2670 = vmatpush2.msra.mxu0 0.0
    %2671 = vmatprep.subr.mxu0 0.0
    %2672 = vmatpush2.msra.mxu0 0.0
    %2673 = vmatprep.subr.mxu0 0.0
    %2674 = vmatpush2.msra.mxu0 0.0
    %2675 = vmatprep.subr.mxu0 0.0
    %2676 = vmatpush2.msra.mxu0 0.0
    %2677 = vmatprep.subr.mxu0 0.0
    %2678 = vmatpush2.msra.mxu0 0.0
    %2679 = vmatprep.subr.mxu0 0.0
    %2680 = vmatpush2.msra.mxu0 0.0
    %2681 = vmatprep.subr.mxu0 0.0
    %2682 = vmatpush2.msra.mxu0 0.0
    %2683 = vmatprep.subr.mxu0 0.0
    %2684 = vmatpush2.msra.mxu0 0.0
    %2685 = vmatprep.subr.mxu0 0.0
    %2686 = vmatpush2.msra.mxu0 0.0
    %2687 = vmatprep.subr.mxu0 0.0
    %2688 = vmatpush2.msra.mxu0 0.0
    %2689 = vmatprep.subr.mxu0 0.0
    %2690 = vmatpush2.msra.mxu0 0.0
    %2691 = vmatprep.subr.mxu0 0.0
    %2692 = vmatpush2.msra.mxu0 0.0
    %2693 = vmatprep.subr.mxu0 0.0
    %2694 = vmatpush2.msra.mxu0 0.0
    %2695 = vmatprep.subr.mxu0 0.0
    %2696 = vmatpush2.msra.mxu0 0.0
    %2697 = vmatprep.mubr.f32.mxu0 0.0
    %2698 = vmatmul.mubr.f32.gmra.mxu0 %v2622
    %v2699 = vpop.f32.mrf.mxu0
    %v2700 = vadd.f32 %v2602, %v2699
    %v2701 = vpop.f32.mrf.mxu0
    %2702 = vmatprep.mubr.f32.mxu0 0.0
    %2703 = vmatmul.mubr.f32.gmra.mxu0 %v2625
    %v2704 = vpop.f32.mrf.mxu0
    %v2705 = vadd.f32 %v2607, %v2704
    %v2706 = vpop.f32.mrf.mxu0
    %2707 = vmatprep.mubr.f32.mxu0 0.0
    %2708 = vmatmul.mubr.f32.gmra.mxu0 %v2628
    %v2709 = vpop.f32.mrf.mxu0
    %v2710 = vadd.f32 %v2612, %v2709
    %v2711 = vpop.f32.mrf.mxu0
    %2712 = vmatprep.mubr.f32.mxu0 0.0
    %2713 = vmatmul.mubr.f32.gmra.mxu0 %v2631
    %v2714 = vpop.f32.mrf.mxu0
    %v2715 = vadd.f32 %v2617, %v2714
    %v2716 = vpop.f32.mrf.mxu0
    %2717 = vdwg.mxu0
    %v2718 = vld [vmem:[%s77] sm:$0xff]
    %v2719 = vld [vmem:[%s77 + $0x8] sm:$0xff]
    %v2721 = vsel %vm2620, %v1758, 0
    %v2724 = vsel %vm2620, %v1759, 0
    %v2727 = vsel %vm2620, %v1760, 0
    %v2730 = vsel %vm2620, %v1761, 0
    %2732 = vmatprep.subr.mxu0 0.0
    %2733 = vmatpush1.msra.mxu0 0.0
    %2734 = vmatprep.subr.mxu0 0.0
    %2735 = vmatpush1.msra.mxu0 0.0
    %2736 = vmatprep.subr.mxu0 0.0
    %2737 = vmatpush1.msra.mxu0 0.0
    %2738 = vmatprep.subr.mxu0 0.0
    %2739 = vmatpush1.msra.mxu0 0.0
    %2740 = vmatprep.subr.mxu0 0.0
    %2741 = vmatpush1.msra.mxu0 0.0
    %2742 = vmatprep.subr.mxu0 0.0
    %2743 = vmatpush1.msra.mxu0 0.0
    %2744 = vmatprep.subr.mxu0 0.0
    %2745 = vmatpush1.msra.mxu0 0.0
    %2746 = vmatprep.subr.mxu0 0.0
    %2747 = vmatpush1.msra.mxu0 0.0
    %2748 = vmatprep.subr.mxu0 0.0
    %2749 = vmatpush1.msra.mxu0 0.0
    %2750 = vmatprep.subr.mxu0 0.0
    %2751 = vmatpush1.msra.mxu0 0.0
    %2752 = vmatprep.subr.mxu0 0.0
    %2753 = vmatpush1.msra.mxu0 0.0
    %2754 = vmatprep.subr.mxu0 0.0
    %2755 = vmatpush1.msra.mxu0 0.0
    %2756 = vmatprep.subr.mxu0 0.0
    %2757 = vmatpush1.msra.mxu0 0.0
    %2758 = vmatprep.subr.mxu0 0.0
    %2759 = vmatpush1.msra.mxu0 0.0
    %2760 = vmatprep.subr.mxu0 0.0
    %2761 = vmatpush1.msra.mxu0 %v2719
    %2762 = vmatprep.subr.mxu0 0.0
    %2763 = vmatpush1.msra.mxu0 %v2718
    %2764 = vmatprep.subr.mxu0 0.0
    %2765 = vmatpush2.msra.mxu0 0.0
    %2766 = vmatprep.subr.mxu0 0.0
    %2767 = vmatpush2.msra.mxu0 0.0
    %2768 = vmatprep.subr.mxu0 0.0
    %2769 = vmatpush2.msra.mxu0 0.0
    %2770 = vmatprep.subr.mxu0 0.0
    %2771 = vmatpush2.msra.mxu0 0.0
    %2772 = vmatprep.subr.mxu0 0.0
    %2773 = vmatpush2.msra.mxu0 0.0
    %2774 = vmatprep.subr.mxu0 0.0
    %2775 = vmatpush2.msra.mxu0 0.0
    %2776 = vmatprep.subr.mxu0 0.0
    %2777 = vmatpush2.msra.mxu0 0.0
    %2778 = vmatprep.subr.mxu0 0.0
    %2779 = vmatpush2.msra.mxu0 0.0
    %2780 = vmatprep.subr.mxu0 0.0
    %2781 = vmatpush2.msra.mxu0 0.0
    %2782 = vmatprep.subr.mxu0 0.0
    %2783 = vmatpush2.msra.mxu0 0.0
    %2784 = vmatprep.subr.mxu0 0.0
    %2785 = vmatpush2.msra.mxu0 0.0
    %2786 = vmatprep.subr.mxu0 0.0
    %2787 = vmatpush2.msra.mxu0 0.0
    %2788 = vmatprep.subr.mxu0 0.0
    %2789 = vmatpush2.msra.mxu0 0.0
    %2790 = vmatprep.subr.mxu0 0.0
    %2791 = vmatpush2.msra.mxu0 0.0
    %2792 = vmatprep.subr.mxu0 0.0
    %2793 = vmatpush2.msra.mxu0 0.0
    %2794 = vmatprep.subr.mxu0 0.0
    %2795 = vmatpush2.msra.mxu0 0.0
    %2796 = vmatprep.mubr.f32.mxu0 0.0
    %2797 = vmatmul.mubr.f32.gmra.mxu0 %v2721
    %v2798 = vpop.f32.mrf.mxu0
    %v2799 = vadd.f32 0.0, %v2798
    %v2800 = vpop.f32.mrf.mxu0
    %2801 = vmatprep.mubr.f32.mxu0 0.0
    %2802 = vmatmul.mubr.f32.gmra.mxu0 %v2724
    %v2803 = vpop.f32.mrf.mxu0
    %v2804 = vadd.f32 0.0, %v2803
    %v2805 = vpop.f32.mrf.mxu0
    %2806 = vmatprep.mubr.f32.mxu0 0.0
    %2807 = vmatmul.mubr.f32.gmra.mxu0 %v2727
    %v2808 = vpop.f32.mrf.mxu0
    %v2809 = vadd.f32 0.0, %v2808
    %v2810 = vpop.f32.mrf.mxu0
    %2811 = vmatprep.mubr.f32.mxu0 0.0
    %2812 = vmatmul.mubr.f32.gmra.mxu0 %v2730
    %v2813 = vpop.f32.mrf.mxu0
    %v2814 = vadd.f32 0.0, %v2813
    %v2815 = vpop.f32.mrf.mxu0
    %2816 = vdwg.mxu0
    %v2817 = vadd.f32 %v2700, %v2799
    %v2818 = vadd.f32 %v2705, %v2804
    %v2819 = vadd.f32 %v2710, %v2809
    %v2820 = vadd.f32 %v2715, %v2814
    %v2821 = vld [vmem:[#allocation16] sm:$0x1]
    %v2823 = vlaneseq
    %v2824 = vshrl.u32 %v2823, 7
    %v2825 = vsub.s32 0, %v2824
    %v2826 = vrot.slane %v2821, %v2825
    %v2828 = vadd.f32 %v2817, %v2826
    %v2829 = vadd.f32 %v2818, %v2826
    %v2830 = vadd.f32 %v2819, %v2826
    %v2831 = vadd.f32 %v2820, %v2826
    %v2832 = vlaneseq
    %v2833 = vand.u32 %v2832, 127
    %vm2834 = vcmp.eq.s32.totalorder %v2833, 4
    %v2835 = vxor.u32 %v2828, 2147483648
    %v2836 = vxor.u32 %v2829, 2147483648
    %v2837 = vxor.u32 %v2830, 2147483648
    %v2838 = vxor.u32 %v2831, 2147483648
    %v2839 = vmul.f32 %v2835, 1.442695
    %v2840 = vpow.pop %v2839
    %v2841 = vmul.f32 %v2836, 1.442695
    %v2842 = vpow.pop %v2841
    %v2843 = vmul.f32 %v2837, 1.442695
    %v2844 = vpow.pop %v2843
    %v2845 = vmul.f32 %v2838, 1.442695
    %v2846 = vpow.pop %v2845
    %v2847 = vadd.f32 %v2840, 1.0
    %v2848 = vadd.f32 %v2842, 1.0
    %v2849 = vadd.f32 %v2844, 1.0
    %v2850 = vadd.f32 %v2846, 1.0
    %v2851 = vrcp.pop %v2847
    %v2852 = vmul.f32 1.0, %v2851
    %v2853 = vrcp.pop %v2848
    %v2854 = vmul.f32 1.0, %v2853
    %v2855 = vrcp.pop %v2849
    %v2856 = vmul.f32 1.0, %v2855
    %v2857 = vrcp.pop %v2850
    %v2858 = vmul.f32 1.0, %v2857
    %v2859 = vsel %vm2834, %v2852, %v2828
    %v2860 = vsel %vm2834, %v2854, %v2829
    %v2861 = vsel %vm2834, %v2856, %v2830
    %v2862 = vsel %vm2834, %v2858, %v2831
    %vm2863 = vcmask 64512
    %2864 = vst.msk [vmem:[%s81] sm:$0xff] %vm2863, %v2859
    %2865 = vst.msk [vmem:[%s81 + $0x8] sm:$0xff] %vm2863, %v2860
    %2866 = vst.msk [vmem:[%s81 + $0x10] sm:$0xff] %vm2863, %v2861
    %2867 = vst.msk [vmem:[%s81 + $0x18] sm:$0xff] %vm2863, %v2862
    // Predicated region
    $region202: #{cnn_forward.1} parent=1 // pred_check
      _
    $region203: #{cnn_forward.1} parent=1 // pred_check_branch
      %2869 = sbr.rel (0) target = $region205
    $region204: #{cnn_forward.1} parent=1 // pred_region
      _
    $region205: #{cnn_forward.1} parent=1 // pred_fallthru
      _
    // Predicated region
    $region206: #{cnn_forward.1} parent=1 // pred_check
      _
    $region207: #{cnn_forward.1} parent=1 // pred_check_branch
      %2871 = sbr.rel (0) target = $region209
    $region208: #{cnn_forward.1} parent=1 // pred_region
      _
    $region209: #{cnn_forward.1} parent=1 // pred_fallthru
      _
    %2872 = vsyncpa [#allocation3], 1
    %2873 = vsyncpa [#allocation5], 1
    %2874 = vsyncpa [#allocation8], 1
    %2875 = vsyncpa [#allocation11], 1
    %2876 = vsyncpa [#allocation14], 1
    %2877 = vsyncpa [#allocation17], 1

</llo_original>
